<compile_context>
chip_gen: v6e
topology: v6e:2x2x1
jax: 0.10.0
libtpu: 0.0.40
codegen_flags: <defaults>
</compile_context>

<pallas_src>
import math

import jax
import jax.numpy as jnp
import numpy as np
from jax.experimental import pallas as pl
from jax.experimental.pallas import tpu as pltpu

WINDOW_SIZE = 11
SIGMA = 1.5
PAD = WINDOW_SIZE // 2
C1 = 0.01 ** 2
C2 = 0.03 ** 2


def gaussian_1d(window_size: int, sigma: float):
    """Matches gaussian() in the PyTorch reference (float32 normalization)."""
    g = np.array(
        [math.exp(-((x - window_size // 2) ** 2) / (2.0 * sigma ** 2))
         for x in range(window_size)],
        dtype=np.float32,
    )
    return g / g.sum()


# Deterministic "parameter" of the module (the 1-D Gaussian window).
_W1D = gaussian_1d(WINDOW_SIZE, SIGMA)


def _banded_blur_matrix(n: int) -> np.ndarray:
    """M[i, j] = w1d[j - i + PAD] for |j - i| <= PAD else 0.

    Encodes the zero-padded 1-D Gaussian convolution along an axis of size n
    (out = M @ in for a left apply; the matrix is symmetric so it also works
    as a right apply).
    """
    m = np.zeros((n, n), dtype=np.float32)
    for i in range(n):
        for k in range(WINDOW_SIZE):
            j = i + k - PAD
            if 0 <= j < n:
                m[i, j] = _W1D[k]
    return m


def _make_kernel(B: int, D: int, HW: int):
    """Kernel processing B volumes per grid step, layout (B, D, H*W)."""
    S = 5 * B  # five blurred fields (x1, x2, x1^2, x2^2, x1*x2) per volume

    def kernel(x1_ref, x2_ref, bd_ref, bhw_ref, out_ref):
        # x*_ref block: (B, D, H*W) unpadded volumes for B (n, c) pairs.
        x1 = x1_ref[...].astype(jnp.float32)
        x2 = x2_ref[...].astype(jnp.float32)

        # Stack all fields that need blurring: (5, B, D, HW) -> (5*B*D, HW).
        stacked = jnp.stack(
            [x1, x2, x1 * x1, x2 * x2, x1 * x2], axis=0
        ).reshape(S * D, HW)

        # ---- D blur: block-diagonal banded matmul (left apply, MXU) ----
        t = jnp.dot(bd_ref[...], stacked,
                    preferred_element_type=jnp.float32,
                    precision=jax.lax.Precision.HIGHEST)
        # ---- H and W blur: banded kron(B_H, B_W) matmul (right apply) ----
        blurred = jnp.dot(t, bhw_ref[...],
                          preferred_element_type=jnp.float32,
                          precision=jax.lax.Precision.HIGHEST)

        b = blurred.reshape(5, B, D, HW)
        mu1, mu2 = b[0], b[1]
        mu1_sq = mu1 * mu1
        mu2_sq = mu2 * mu2
        mu1_mu2 = mu1 * mu2
        sigma1_sq = b[2] - mu1_sq
        sigma2_sq = b[3] - mu2_sq
        sigma12 = b[4] - mu1_mu2

        num = (2.0 * mu1_mu2 + C1) * (2.0 * sigma12 + C2)
        den = (mu1_sq + mu2_sq + C1) * (sigma1_sq + sigma2_sq + C2)
        ssim_map = num * pl.reciprocal(den, approx=False)

        # Per-step partial sum, stored lane-dense (no carried accumulator, so
        # the grid axis stays "parallel").  Wrapper reads out[:, 0, 0].
        out_ref[0] = jnp.full((8, 128), jnp.sum(ssim_map), jnp.float32)

    return kernel


def _pick_batch(nc: int) -> int:
    """Volumes per grid step: amortize step overhead but keep >= 2 steps."""
    best = 1
    for b in range(1, min(8, nc) + 1):
        if nc % b == 0 and (nc // b >= 2 or nc < 2):
            best = b
    return best


def ssim3d_loss(img1, img2, size_average=True):
    """1 - SSIM3D(img1, img2), matching the PyTorch module's forward."""
    assert img1.shape == img2.shape
    # TODO(synk): size_average=False path (per-sample means) not implemented;
    # the module's default (and typical use) is size_average=True.
    assert size_average, "size_average=False not supported"
    N, C, D, H, W = img1.shape
    HW = H * W
    NC = N * C
    B = _pick_batch(NC)
    S = 5 * B

    # Free, contiguous reshapes only — no padding / cast / relayout in HBM.
    x1 = img1.reshape(NC, D, HW)
    x2 = img2.reshape(NC, D, HW)

    # Compile-time banded blur matrices (zero padding folded in), passed as
    # kernel INPUTS (Pallas forbids captured array constants).
    bd = jnp.asarray(
        np.kron(np.eye(S, dtype=np.float32), _banded_blur_matrix(D)))
    bhw = jnp.asarray(
        np.kron(_banded_blur_matrix(H), _banded_blur_matrix(W)))

    vol_spec = pl.BlockSpec((B, D, HW), lambda i: (i, 0, 0))
    out = pl.pallas_call(
        _make_kernel(B, D, HW),
        out_shape=jax.ShapeDtypeStruct((NC // B, 8, 128), jnp.float32),
        grid_spec=pltpu.PrefetchScalarGridSpec(
            num_scalar_prefetch=0,
            grid=(NC // B,),
            in_specs=[
                vol_spec,
                vol_spec,
                pl.BlockSpec((S * D, S * D), lambda i: (0, 0)),
                pl.BlockSpec((HW, HW), lambda i: (0, 0)),
            ],
            out_specs=pl.BlockSpec((1, 8, 128), lambda i: (i, 0, 0)),
        ),
        compiler_params=pltpu.CompilerParams(
            dimension_semantics=("parallel",)),  # independent per-step work
    )(x1, x2, bd, bhw)

    ssim_sum = jnp.sum(out[:, 0, 0])
    ssim_mean = ssim_sum / float(NC * D * H * W)
    return (1.0 - ssim_mean).astype(jnp.float32)


def _ref_ssim3d_loss(img1, img2):
    """Pure-JAX reference (lax.conv) mirroring the PyTorch code."""
    N, C, D, H, W = img1.shape
    w1d = jnp.asarray(_W1D, jnp.float32)
    w3d = w1d[:, None, None] * w1d[None, :, None] * w1d[None, None, :]
    window = jnp.broadcast_to(
        w3d, (C, 1, WINDOW_SIZE, WINDOW_SIZE, WINDOW_SIZE))

    def conv(x):
        return jax.lax.conv_general_dilated(
            x.astype(jnp.float32), window, (1, 1, 1),
            [(PAD, PAD)] * 3,
            dimension_numbers=("NCDHW", "OIDHW", "NCDHW"),
            feature_group_count=C,
            precision=jax.lax.Precision.HIGHEST)

    mu1, mu2 = conv(img1), conv(img2)
    mu1_sq, mu2_sq, mu1_mu2 = mu1 * mu1, mu2 * mu2, mu1 * mu2
    s1 = conv(img1 * img1) - mu1_sq
    s2 = conv(img2 * img2) - mu2_sq
    s12 = conv(img1 * img2) - mu1_mu2
    ssim_map = ((2 * mu1_mu2 + C1) * (2 * s12 + C2)) / (
        (mu1_sq + mu2_sq + C1) * (s1 + s2 + C2))
    return 1.0 - jnp.mean(ssim_map)


if __name__ == "__main__":
    key = jax.random.PRNGKey(0)
    k1, k2 = jax.random.split(key)
    # Small NCDHW volumes (batch=2, channels=2, 16^3 spatial).
    img1 = jax.random.uniform(k1, (2, 2, 16, 16, 16), dtype=jnp.float32)
    img2 = jax.random.uniform(k2, (2, 2, 16, 16, 16), dtype=jnp.float32)

    loss = jax.block_until_ready(ssim3d_loss(img1, img2))
    ref = jax.block_until_ready(_ref_ssim3d_loss(img1, img2))

    np.testing.assert_allclose(np.asarray(loss), np.asarray(ref),
                               rtol=1e-4, atol=1e-4)
    print("KERNEL_OK")
</pallas_src>

<mosaic_0001>
module attributes {stable_mosaic.version = 11 : i64} {
  func.func @kernel(%arg0: i32, %arg1: memref<2x16x256xf32, #tpu.memory_space<vmem>>, %arg2: memref<2x16x256xf32, #tpu.memory_space<vmem>>, %arg3: memref<160x160xf32, #tpu.memory_space<vmem>>, %arg4: memref<256x256xf32, #tpu.memory_space<vmem>>, %arg5: memref<1x8x128xf32, #tpu.memory_space<vmem>>) attributes {dimension_semantics = [#tpu.dimension_semantics<parallel>], iteration_bounds = array<i64: 2>, scalar_prefetch = 0 : i64, scratch_operands = 0 : i64, tpu.core_type = #tpu.core_type<tc>, window_params = [{transform_indices = @transform_0, window_bounds = array<i64: 2, 16, 256>}, {transform_indices = @transform_1, window_bounds = array<i64: 2, 16, 256>}, {pipeline_mode = #tpu.pipeline_mode<synchronous>, transform_indices = @transform_2, window_bounds = array<i64: 160, 160>}, {pipeline_mode = #tpu.pipeline_mode<synchronous>, transform_indices = @transform_3, window_bounds = array<i64: 256, 256>}, {transform_indices = @transform_4, window_bounds = array<i64: 1, 8, 128>}]} {
    %c0 = arith.constant 0 : index
    %c0_0 = arith.constant 0 : index
    %c0_1 = arith.constant 0 : index
    %0 = vector.load %arg1[%c0, %c0_0, %c0_1] : memref<2x16x256xf32, #tpu.memory_space<vmem>>, vector<2x16x256xf32>
    %c0_2 = arith.constant 0 : index
    %c0_3 = arith.constant 0 : index
    %c0_4 = arith.constant 0 : index
    %1 = vector.load %arg2[%c0_2, %c0_3, %c0_4] : memref<2x16x256xf32, #tpu.memory_space<vmem>>, vector<2x16x256xf32>
    %2 = arith.mulf %0, %0 : vector<2x16x256xf32>
    %3 = arith.mulf %1, %1 : vector<2x16x256xf32>
    %4 = arith.mulf %0, %1 : vector<2x16x256xf32>
    %5 = vector.shape_cast %0 : vector<2x16x256xf32> to vector<1x2x16x256xf32>
    %6 = vector.shape_cast %1 : vector<2x16x256xf32> to vector<1x2x16x256xf32>
    %7 = vector.shape_cast %2 : vector<2x16x256xf32> to vector<1x2x16x256xf32>
    %8 = vector.shape_cast %3 : vector<2x16x256xf32> to vector<1x2x16x256xf32>
    %9 = vector.shape_cast %4 : vector<2x16x256xf32> to vector<1x2x16x256xf32>
    %10 = tpu.concatenate %5, %6, %7, %8, %9 in 0 : vector<1x2x16x256xf32>, vector<1x2x16x256xf32>, vector<1x2x16x256xf32>, vector<1x2x16x256xf32>, vector<1x2x16x256xf32> -> vector<5x2x16x256xf32>
    %11 = vector.shape_cast %10 : vector<5x2x16x256xf32> to vector<160x256xf32>
    %c0_5 = arith.constant 0 : index
    %c0_6 = arith.constant 0 : index
    %12 = vector.load %arg3[%c0_5, %c0_6] : memref<160x160xf32, #tpu.memory_space<vmem>>, vector<160x160xf32>
    %cst = arith.constant dense<0.000000e+00> : vector<160x256xf32>
    %13 = tpu.matmul %12, %11, %cst {dimension_numbers = #tpu.dot_dimension_numbers<[1], [0], [0], [1], [0, 0, 1, 1], [], []>, precision = #tpu.contract_precision<fp32>} : vector<160x160xf32>, vector<160x256xf32>, vector<160x256xf32> -> vector<160x256xf32>
    %c0_7 = arith.constant 0 : index
    %c0_8 = arith.constant 0 : index
    %14 = vector.load %arg4[%c0_7, %c0_8] : memref<256x256xf32, #tpu.memory_space<vmem>>, vector<256x256xf32>
    %cst_9 = arith.constant dense<0.000000e+00> : vector<160x256xf32>
    %15 = tpu.matmul %13, %14, %cst_9 {dimension_numbers = #tpu.dot_dimension_numbers<[1], [0], [0], [1], [0, 0, 1, 1], [], []>, precision = #tpu.contract_precision<fp32>} : vector<160x256xf32>, vector<256x256xf32>, vector<160x256xf32> -> vector<160x256xf32>
    %16 = vector.shape_cast %15 : vector<160x256xf32> to vector<5x2x16x256xf32>
    %17 = vector.extract_strided_slice %16 {offsets = [0, 0, 0, 0], sizes = [1, 2, 16, 256], strides = [1, 1, 1, 1]} : vector<5x2x16x256xf32> to vector<1x2x16x256xf32>
    %18 = vector.shape_cast %17 : vector<1x2x16x256xf32> to vector<2x16x256xf32>
    %19 = vector.extract_strided_slice %16 {offsets = [1, 0, 0, 0], sizes = [1, 2, 16, 256], strides = [1, 1, 1, 1]} : vector<5x2x16x256xf32> to vector<1x2x16x256xf32>
    %20 = vector.shape_cast %19 : vector<1x2x16x256xf32> to vector<2x16x256xf32>
    %21 = arith.mulf %18, %18 : vector<2x16x256xf32>
    %22 = arith.mulf %20, %20 : vector<2x16x256xf32>
    %23 = arith.mulf %18, %20 : vector<2x16x256xf32>
    %24 = vector.extract_strided_slice %16 {offsets = [2, 0, 0, 0], sizes = [1, 2, 16, 256], strides = [1, 1, 1, 1]} : vector<5x2x16x256xf32> to vector<1x2x16x256xf32>
    %25 = vector.shape_cast %24 : vector<1x2x16x256xf32> to vector<2x16x256xf32>
    %26 = arith.subf %25, %21 : vector<2x16x256xf32>
    %27 = vector.extract_strided_slice %16 {offsets = [3, 0, 0, 0], sizes = [1, 2, 16, 256], strides = [1, 1, 1, 1]} : vector<5x2x16x256xf32> to vector<1x2x16x256xf32>
    %28 = vector.shape_cast %27 : vector<1x2x16x256xf32> to vector<2x16x256xf32>
    %29 = arith.subf %28, %22 : vector<2x16x256xf32>
    %30 = vector.extract_strided_slice %16 {offsets = [4, 0, 0, 0], sizes = [1, 2, 16, 256], strides = [1, 1, 1, 1]} : vector<5x2x16x256xf32> to vector<1x2x16x256xf32>
    %31 = vector.shape_cast %30 : vector<1x2x16x256xf32> to vector<2x16x256xf32>
    %32 = arith.subf %31, %23 : vector<2x16x256xf32>
    %cst_10 = arith.constant 2.000000e+00 : f32
    %33 = vector.broadcast %cst_10 : f32 to vector<2x16x256xf32>
    %34 = arith.mulf %33, %23 : vector<2x16x256xf32>
    %cst_11 = arith.constant 9.99999974E-5 : f32
    %35 = vector.broadcast %cst_11 : f32 to vector<2x16x256xf32>
    %36 = arith.addf %34, %35 : vector<2x16x256xf32>
    %cst_12 = arith.constant 2.000000e+00 : f32
    %37 = vector.broadcast %cst_12 : f32 to vector<2x16x256xf32>
    %38 = arith.mulf %37, %32 : vector<2x16x256xf32>
    %cst_13 = arith.constant 8.99999984E-4 : f32
    %39 = vector.broadcast %cst_13 : f32 to vector<2x16x256xf32>
    %40 = arith.addf %38, %39 : vector<2x16x256xf32>
    %41 = arith.mulf %36, %40 : vector<2x16x256xf32>
    %42 = arith.addf %21, %22 : vector<2x16x256xf32>
    %cst_14 = arith.constant 9.99999974E-5 : f32
    %43 = vector.broadcast %cst_14 : f32 to vector<2x16x256xf32>
    %44 = arith.addf %42, %43 : vector<2x16x256xf32>
    %45 = arith.addf %26, %29 : vector<2x16x256xf32>
    %cst_15 = arith.constant 8.99999984E-4 : f32
    %46 = vector.broadcast %cst_15 : f32 to vector<2x16x256xf32>
    %47 = arith.addf %45, %46 : vector<2x16x256xf32>
    %48 = arith.mulf %44, %47 : vector<2x16x256xf32>
    %49 = tpu.reciprocal %48 : vector<2x16x256xf32> -> vector<2x16x256xf32>
    %50 = arith.mulf %41, %49 : vector<2x16x256xf32>
    %51 = vector.shape_cast %50 : vector<2x16x256xf32> to vector<1x2x16x256xf32>
    %cst_16 = arith.constant dense<0.000000e+00> : vector<1xf32>
    %52 = vector.multi_reduction <add>, %51, %cst_16 [1, 2, 3] : vector<1x2x16x256xf32> to vector<1xf32>
    %53 = vector.shape_cast %52 : vector<1xf32> to vector<1x1x1x1xf32>
    %54 = vector.extract %53[0, 0, 0, 0] : f32 from vector<1x1x1x1xf32>
    %55 = vector.broadcast %54 : f32 to vector<8x128xf32>
    %c0_17 = arith.constant 0 : index
    %c0_18 = arith.constant 0 : index
    %c0_19 = arith.constant 0 : index
    %56 = vector.load %arg5[%c0_17, %c0_18, %c0_19] : memref<1x8x128xf32, #tpu.memory_space<vmem>>, vector<1x8x128xf32>
    %57 = vector.shape_cast %56 : vector<1x8x128xf32> to vector<8x128xf32>
    %58 = vector.shape_cast %55 : vector<8x128xf32> to vector<1x8x128xf32>
    tpu.vector_store %arg5[%c0_17, %c0_18, %c0_19], %58 {strides = array<i32>} : memref<1x8x128xf32, #tpu.memory_space<vmem>>, vector<1x8x128xf32>,
    return
  }
  func.func @transform_0(%arg0: i32) -> (i32, i32, i32) {
    %c0_i32 = arith.constant 0 : i32
    %c0_i32_0 = arith.constant 0 : i32
    %c0_i32_1 = arith.constant 0 : i32
    return %arg0, %c0_i32, %c0_i32_0 : i32, i32, i32
  }
  func.func @transform_1(%arg0: i32) -> (i32, i32, i32) {
    %c0_i32 = arith.constant 0 : i32
    %c0_i32_0 = arith.constant 0 : i32
    %c0_i32_1 = arith.constant 0 : i32
    return %arg0, %c0_i32, %c0_i32_0 : i32, i32, i32
  }
  func.func @transform_2(%arg0: i32) -> (i32, i32) {
    %c0_i32 = arith.constant 0 : i32
    %c0_i32_0 = arith.constant 0 : i32
    %c0_i32_1 = arith.constant 0 : i32
    return %c0_i32, %c0_i32_0 : i32, i32
  }
  func.func @transform_3(%arg0: i32) -> (i32, i32) {
    %c0_i32 = arith.constant 0 : i32
    %c0_i32_0 = arith.constant 0 : i32
    %c0_i32_1 = arith.constant 0 : i32
    return %c0_i32, %c0_i32_0 : i32, i32
  }
  func.func @transform_4(%arg0: i32) -> (i32, i32, i32) {
    %c0_i32 = arith.constant 0 : i32
    %c0_i32_0 = arith.constant 0 : i32
    %c0_i32_1 = arith.constant 0 : i32
    return %arg0, %c0_i32, %c0_i32_0 : i32, i32, i32
  }
}

</mosaic_0001>

<llo_original>
// kernel: tpu_custom_call.1
$region0: #{tpu_custom_call.1}
  #allocation0 [shape = 'u32[]', space=smem, size = 0x4, offset = 0x4, fixed_abs, tag = 'smem constant byte address 0x4 - core index']
  #allocation1 [shape = 'u32[144,128]{1,0:T(1,128)}', space=vmem, size = 0x12000, scoped, tag = 'internal scratch']
  %s0 = inlined_call_operand.hbm [shape: f32[4,16,256], index: 0, kind: input, shape index: {}]
  %s1 = inlined_call_operand.hbm [shape: f32[4,16,256], index: 1, kind: input, shape index: {}]
  %s2 = inlined_call_operand.hbm [shape: f32[160,160], index: 2, kind: input, shape index: {}]
  %s3 = inlined_call_operand.hbm [shape: f32[256,256], index: 3, kind: input, shape index: {}]
  %s4 = inlined_call_operand.hbm [shape: f32[2,8,128], index: 4, kind: output, shape index: {}]
  %s5 = sld [smem:[#allocation0]]
  $region65: #{tpu_custom_call.1} parent=0
    _
  %s7 = ssub.s32 1, %s5
  %s8 = scalar_select 0, %s7, %s5
  $region1: #{tpu_custom_call.1} parent=0
    #allocation2 [shape = 'u8[65536]{0}', space=vmem, size = 0x10000, scoped, tag = 'input window, operand 0']
    #allocation3 [shape = 's32[2]{0}', space=sflag, size = 0x8, scoped, tag = 'scoped memory for tpu_custom_call.1']
    #allocation4 [shape = 's32[2]{0}', space=sflag, size = 0x8, scoped, tag = 'scoped memory for tpu_custom_call.1']
    #allocation5 [shape = 'u8[65536]{0}', space=vmem, size = 0x10000, scoped, tag = 'input window, operand 1']
    #allocation6 [shape = 's32[2]{0}', space=sflag, size = 0x8, scoped, tag = 'scoped memory for tpu_custom_call.1']
    #allocation7 [shape = 'u8[163840]{0}', space=vmem, size = 0x28000, scoped, tag = 'input window, operand 2, single buffered']
    #allocation8 [shape = 'u8[262144]{0}', space=vmem, size = 0x40000, scoped, tag = 'input window, operand 3, single buffered']
    #allocation9 [shape = 's32[1]{0}', space=sflag, size = 0x4, scoped, tag = 'scoped memory for tpu_custom_call.1']
    #allocation10 [shape = 'u8[8192]{0}', space=vmem, size = 0x2000, scoped, tag = 'output window, operand 0']
    %9 = vsyncpa [#allocation3], 0
    %s10 = scalar_lea.sflag [#allocation3], 1
    %11 = vsyncpa %s10, 0
    %12 = vsyncpa [#allocation6], 0
    %s13 = scalar_lea.sflag [#allocation6], 1
    %14 = vsyncpa %s13, 0
    %15 = vsyncpa [#allocation9], 0
    %16 = vsyncpa [#allocation4], 0
    %s17 = scalar_lea.sflag [#allocation4], 1
    %18 = vsyncpa %s17, 0
    loop: start=0, step=1, limit=4
    $region2: #{tpu_custom_call.1} parent=1 // loop_pre_header
      _
    $region3: #{tpu_custom_call.1} parent=1 // loop_header
      %s20 = sphi 0, %s24
      %p21 = scmp.ge.s32.totalorder %s20, 4
      %s30 = sphi 0, %s32
      %s33 = sphi 0, %s30
      %s34 = sphi 0, %s33
      %s50 = sphi 0, %s34
      %s56 = sphi 0, %s58
      %s59 = sphi 0, %s56
      %s60 = sphi 0, %s59
      %s76 = sphi 0, %s60
      %s80 = sphi 0, %s80
      %s82 = sphi 0, %s80
      %s83 = sphi 0, %s82
      %s97 = sphi 0, %s83
      %s101 = sphi 0, %s101
      %s103 = sphi 0, %s101
      %s104 = sphi 0, %s103
      %s118 = sphi 0, %s104
      %s124 = sphi 0, %s126
      %s127 = sphi 0, %s124
      %s128 = sphi 0, %s127
      %s144 = sphi 0, %s128
    $region4: #{tpu_custom_call.1} parent=1 // loop_header_branch
      %23 = sbr.rel (%p21) target = $region8
    $region5: #{tpu_custom_call.1} parent=1 // loop_body
      %s25 = ssub.s32 %s20, 1
      %s26 = ssub.s32 %s20, 2
      %s27 = sadd.s32 %s20, 1
      %s28 = ssub.s32 %s20, %s27
      %p29 = scmp.eq.s32.totalorder %s28, 0
      %s31 = sadd.s32 %s30, 1
      %s32 = scalar_select %p29, %s30, %s31
      %p35 = pneg %p29
      %p36 = scmp.eq.s32.totalorder %s20, 1
      %p37 = por %p35, %p36
      %p38 = scmp.ne.s32.totalorder %s30, %s33
      %p39 = scmp.eq.s32.totalorder %s20, 0
      %p40 = por %p38, %p39
      %p41 = scmp.ne.s32.totalorder %s30, %s33
      %p42 = scmp.eq.s32.totalorder %s25, 1
      %p43 = por %p41, %p42
      %p44 = scmp.ne.s32.totalorder %s33, %s34
      %p45 = scmp.eq.s32.totalorder %s25, 0
      %p46 = por %p44, %p45
      %p47 = scmp.ne.s32.totalorder %s33, %s34
      %p48 = scmp.eq.s32.totalorder %s26, 1
      %p49 = por %p47, %p48
      %p51 = scmp.ne.s32.totalorder %s34, %s50
      %p52 = scmp.eq.s32.totalorder %s26, 0
      %p53 = por %p51, %p52
      %s54 = ssub.s32 %s20, %s27
      %p55 = scmp.eq.s32.totalorder %s54, 0
      %s57 = sadd.s32 %s56, 1
      %s58 = scalar_select %p55, %s56, %s57
      %p61 = pneg %p55
      %p62 = scmp.eq.s32.totalorder %s20, 1
      %p63 = por %p61, %p62
      %p64 = scmp.ne.s32.totalorder %s56, %s59
      %p65 = scmp.eq.s32.totalorder %s20, 0
      %p66 = por %p64, %p65
      %p67 = scmp.ne.s32.totalorder %s56, %s59
      %p68 = scmp.eq.s32.totalorder %s25, 1
      %p69 = por %p67, %p68
      %p70 = scmp.ne.s32.totalorder %s59, %s60
      %p71 = scmp.eq.s32.totalorder %s25, 0
      %p72 = por %p70, %p71
      %p73 = scmp.ne.s32.totalorder %s59, %s60
      %p74 = scmp.eq.s32.totalorder %s26, 1
      %p75 = por %p73, %p74
      %p77 = scmp.ne.s32.totalorder %s60, %s76
      %p78 = scmp.eq.s32.totalorder %s26, 0
      %p79 = por %p77, %p78
      %s81 = sadd.s32 %s80, 1
      %p84 = scmp.eq.s32.totalorder %s20, 1
      %p85 = scmp.ne.s32.totalorder %s80, %s82
      %p86 = scmp.eq.s32.totalorder %s20, 0
      %p87 = por %p85, %p86
      %p88 = scmp.ne.s32.totalorder %s80, %s82
      %p89 = scmp.eq.s32.totalorder %s25, 1
      %p90 = por %p88, %p89
      %p91 = scmp.ne.s32.totalorder %s82, %s83
      %p92 = scmp.eq.s32.totalorder %s25, 0
      %p93 = por %p91, %p92
      %p94 = scmp.ne.s32.totalorder %s82, %s83
      %p95 = scmp.eq.s32.totalorder %s26, 1
      %p96 = por %p94, %p95
      %p98 = scmp.ne.s32.totalorder %s83, %s97
      %p99 = scmp.eq.s32.totalorder %s26, 0
      %p100 = por %p98, %p99
      %s102 = sadd.s32 %s101, 1
      %p105 = scmp.eq.s32.totalorder %s20, 1
      %p106 = scmp.ne.s32.totalorder %s101, %s103
      %p107 = scmp.eq.s32.totalorder %s20, 0
      %p108 = por %p106, %p107
      %p109 = scmp.ne.s32.totalorder %s101, %s103
      %p110 = scmp.eq.s32.totalorder %s25, 1
      %p111 = por %p109, %p110
      %p112 = scmp.ne.s32.totalorder %s103, %s104
      %p113 = scmp.eq.s32.totalorder %s25, 0
      %p114 = por %p112, %p113
      %p115 = scmp.ne.s32.totalorder %s103, %s104
      %p116 = scmp.eq.s32.totalorder %s26, 1
      %p117 = por %p115, %p116
      %p119 = scmp.ne.s32.totalorder %s104, %s118
      %p120 = scmp.eq.s32.totalorder %s26, 0
      %p121 = por %p119, %p120
      %s122 = ssub.s32 %s20, %s27
      %p123 = scmp.eq.s32.totalorder %s122, 0
      %s125 = sadd.s32 %s124, 1
      %s126 = scalar_select %p123, %s124, %s125
      %p129 = pneg %p123
      %p130 = scmp.eq.s32.totalorder %s20, 1
      %p131 = por %p129, %p130
      %p132 = scmp.ne.s32.totalorder %s124, %s127
      %p133 = scmp.eq.s32.totalorder %s20, 0
      %p134 = por %p132, %p133
      %p135 = scmp.ne.s32.totalorder %s124, %s127
      %p136 = scmp.eq.s32.totalorder %s25, 1
      %p137 = por %p135, %p136
      %p138 = scmp.ne.s32.totalorder %s127, %s128
      %p139 = scmp.eq.s32.totalorder %s25, 0
      %p140 = por %p138, %p139
      %p141 = scmp.ne.s32.totalorder %s127, %s128
      %p142 = scmp.eq.s32.totalorder %s26, 1
      %p143 = por %p141, %p142
      %p145 = scmp.ne.s32.totalorder %s128, %s144
      %p146 = scmp.eq.s32.totalorder %s26, 0
      %p147 = por %p145, %p146
      %p148 = scmp.le.s32.totalorder 1, %s20
      %p149 = scmp.lt.s32.totalorder %s20, 3
      %p150 = pnand %p148, %p149
      %p151 = pneg %p150
      // Predicated region
      $region9: #{tpu_custom_call.1} parent=5 // pred_check
        _
      $region10: #{tpu_custom_call.1} parent=5 // pred_check_branch
        %153 = sbr.rel (%p150) target = $region12
      $region11: #{tpu_custom_call.1} parent=5 // pred_region
        %s154 = ssub.s32 %s20, 1
        // Predicated region
        $region13: #{tpu_custom_call.1} parent=11 // pred_check
          %p155 = pneg %p93
        $region14: #{tpu_custom_call.1} parent=11 // pred_check_branch
          %157 = sbr.rel (%p155) target = $region16
        $region15: #{tpu_custom_call.1} parent=11 // pred_region
          %s159 = ssub.s32 5120, 5120
          %160 = vsyncadd [#allocation6], %s159
          %s161 = sshll.u32 [#allocation7], 4
          %s162 = int_to_ptr.vmem [resolvable:$true] %s161
          %167 = dma.hbm_to_vmem [thread:$0]  %s2, 5120, %s162, [#allocation6], 256, 256, 16
        $region16: #{tpu_custom_call.1} parent=11 // pred_fallthru
          _
        // Predicated region
        $region17: #{tpu_custom_call.1} parent=11 // pred_check
          %p168 = pneg %p114
        $region18: #{tpu_custom_call.1} parent=11 // pred_check_branch
          %170 = sbr.rel (%p168) target = $region20
        $region19: #{tpu_custom_call.1} parent=11 // pred_region
          %s172 = ssub.s32 8192, 8192
          %173 = vsyncadd [#allocation9], %s172
          %s174 = sshll.u32 [#allocation8], 4
          %s175 = int_to_ptr.vmem [resolvable:$true] %s174
          %180 = dma.hbm_to_vmem [thread:$0]  %s3, 8192, %s175, [#allocation9], 256, 256, 16
        $region20: #{tpu_custom_call.1} parent=11 // pred_fallthru
          _
      $region12: #{tpu_custom_call.1} parent=5 // pred_fallthru
        _
      %p181 = scmp.lt.s32.totalorder %s20, 2
      // Predicated region
      $region21: #{tpu_custom_call.1} parent=5 // pred_check
        %p182 = pneg %p181
      $region22: #{tpu_custom_call.1} parent=5 // pred_check_branch
        %184 = sbr.rel (%p182) target = $region24
      $region23: #{tpu_custom_call.1} parent=5 // pred_region
        // Predicated region
        $region25: #{tpu_custom_call.1} parent=23 // pred_check
          %p185 = pneg %p40
        $region26: #{tpu_custom_call.1} parent=23 // pred_check_branch
          %187 = sbr.rel (%p185) target = $region28
        $region27: #{tpu_custom_call.1} parent=23 // pred_region
          %s188 = sand.u32 %s30, 1
          %s189 = scalar_lea.sflag [#allocation3], %s188
          %s190 = sand.u32 %s30, 1
          %s191 = smul.addr %s190, 64
          %s192 = scalar_lea.vmem [#allocation2], %s191
          %s193 = smul.u32 2, %s20
          %s195 = ssub.s32 1024, 1024
          %196 = vsyncadd %s189, %s195
          %s197 = smul.addr %s193, 4
          %s198 = smul.addr %s197, 128
          %s199 = scalar_lea.hbm %s0, %s198
          %s200 = sshll.u32 %s192, 4
          %s201 = int_to_ptr.vmem [resolvable:$true] %s200
          %206 = dma.hbm_to_vmem [thread:$0]  %s199, 1024, %s201, %s189, 256, 256, 16
        $region28: #{tpu_custom_call.1} parent=23 // pred_fallthru
          _
        // Predicated region
        $region29: #{tpu_custom_call.1} parent=23 // pred_check
          %p207 = pneg %p66
        $region30: #{tpu_custom_call.1} parent=23 // pred_check_branch
          %209 = sbr.rel (%p207) target = $region32
        $region31: #{tpu_custom_call.1} parent=23 // pred_region
          %s210 = sand.u32 %s20, 1
          %s211 = scalar_lea.sflag [#allocation6], %s210
          %s212 = sand.u32 %s56, 1
          %s213 = smul.addr %s212, 64
          %s214 = scalar_lea.vmem [#allocation5], %s213
          %s215 = smul.u32 2, %s20
          %s217 = ssub.s32 1024, 1024
          %218 = vsyncadd %s211, %s217
          %s219 = smul.addr %s215, 4
          %s220 = smul.addr %s219, 128
          %s221 = scalar_lea.hbm %s1, %s220
          %s222 = sshll.u32 %s214, 4
          %s223 = int_to_ptr.vmem [resolvable:$true] %s222
          %228 = dma.hbm_to_vmem [thread:$0]  %s221, 1024, %s223, %s211, 256, 256, 16
        $region32: #{tpu_custom_call.1} parent=23 // pred_fallthru
          _
      $region24: #{tpu_custom_call.1} parent=5 // pred_fallthru
        _
      %p229 = scmp.le.s32.totalorder 1, %s20
      %p230 = scmp.lt.s32.totalorder %s20, 3
      %p231 = pnand %p229, %p230
      %p232 = pneg %p231
      // Predicated region
      $region33: #{tpu_custom_call.1} parent=5 // pred_check
        _
      $region34: #{tpu_custom_call.1} parent=5 // pred_check_branch
        %234 = sbr.rel (%p231) target = $region36
      $region35: #{tpu_custom_call.1} parent=5 // pred_region
        %s235 = ssub.s32 %s20, 1
        %s236 = sand.u32 %s33, 1
        %s237 = scalar_lea.sflag [#allocation3], %s236
        %s238 = sand.u32 %s33, 1
        %s239 = smul.addr %s238, 64
        %s240 = scalar_lea.vmem [#allocation2], %s239
        // Predicated region
        $region37: #{tpu_custom_call.1} parent=35 // pred_check
          %p241 = pneg %p46
        $region38: #{tpu_custom_call.1} parent=35 // pred_check_branch
          %243 = sbr.rel (%p241) target = $region40
        $region39: #{tpu_custom_call.1} parent=35 // pred_region
          %244 = dma.done %s237, 1024
        $region40: #{tpu_custom_call.1} parent=35 // pred_fallthru
          _
        %s245 = sand.u32 %s25, 1
        %s246 = scalar_lea.sflag [#allocation6], %s245
        %s247 = sand.u32 %s59, 1
        %s248 = smul.addr %s247, 64
        %s249 = scalar_lea.vmem [#allocation5], %s248
        // Predicated region
        $region41: #{tpu_custom_call.1} parent=35 // pred_check
          %p250 = pneg %p72
        $region42: #{tpu_custom_call.1} parent=35 // pred_check_branch
          %252 = sbr.rel (%p250) target = $region44
        $region43: #{tpu_custom_call.1} parent=35 // pred_region
          %253 = dma.done %s246, 1024
        $region44: #{tpu_custom_call.1} parent=35 // pred_fallthru
          _
        // Predicated region
        $region45: #{tpu_custom_call.1} parent=35 // pred_check
          %p254 = pneg %p93
        $region46: #{tpu_custom_call.1} parent=35 // pred_check_branch
          %256 = sbr.rel (%p254) target = $region48
        $region47: #{tpu_custom_call.1} parent=35 // pred_region
          %257 = dma.done [#allocation6], 5120
        $region48: #{tpu_custom_call.1} parent=35 // pred_fallthru
          _
        // Predicated region
        $region49: #{tpu_custom_call.1} parent=35 // pred_check
          %p258 = pneg %p114
        $region50: #{tpu_custom_call.1} parent=35 // pred_check_branch
          %260 = sbr.rel (%p258) target = $region52
        $region51: #{tpu_custom_call.1} parent=35 // pred_region
          %261 = dma.done [#allocation9], 8192
        $region52: #{tpu_custom_call.1} parent=35 // pred_fallthru
          _
        %s262 = sand.u32 %s33, 1
        %s263 = scalar_lea.sflag [#allocation3], %s262
        %s264 = sand.u32 %s33, 1
        %s265 = smul.addr %s264, 64
        %s266 = scalar_lea.vmem [#allocation2], %s265
        %p267 = pneg %p46
        %p268 = pneg %p43
        %s269 = sand.u32 %s25, 1
        %s270 = scalar_lea.sflag [#allocation6], %s269
        %s271 = sand.u32 %s59, 1
        %s272 = smul.addr %s271, 64
        %s273 = scalar_lea.vmem [#allocation5], %s272
        %p274 = pneg %p72
        %p275 = pneg %p69
        %p276 = pneg %p93
        %p277 = pneg %p90
        %p278 = pneg %p114
        %p279 = pneg %p111
        %p280 = pneg %p140
        %p281 = pneg %p137
        %s282 = sand.u32 %s127, 1
        %s283 = scalar_lea.sflag [#allocation4], %s282
        %s284 = sand.u32 %s127, 1
        %s285 = smul.addr %s284, 8
        %s286 = scalar_lea.vmem [#allocation10], %s285
        %s287 = smul.u32 2, %s25
        %s288 = smul.u32 2, %s25
        %v289 = vld [vmem:[%s240] sm:$0xff]
        %v290 = vld [vmem:[%s240 + $0x8] sm:$0xff]
        %v291 = vld [vmem:[%s240 + $0x10] sm:$0xff]
        %v292 = vld [vmem:[%s240 + $0x18] sm:$0xff]
        %v293 = vld [vmem:[%s240 + $0x20] sm:$0xff]
        %v294 = vld [vmem:[%s240 + $0x28] sm:$0xff]
        %v295 = vld [vmem:[%s240 + $0x30] sm:$0xff]
        %v296 = vld [vmem:[%s240 + $0x38] sm:$0xff]
        %v297 = vld [vmem:[%s249] sm:$0xff]
        %v298 = vld [vmem:[%s249 + $0x8] sm:$0xff]
        %v299 = vld [vmem:[%s249 + $0x10] sm:$0xff]
        %v300 = vld [vmem:[%s249 + $0x18] sm:$0xff]
        %v301 = vld [vmem:[%s249 + $0x20] sm:$0xff]
        %v302 = vld [vmem:[%s249 + $0x28] sm:$0xff]
        %v303 = vld [vmem:[%s249 + $0x30] sm:$0xff]
        %v304 = vld [vmem:[%s249 + $0x38] sm:$0xff]
        %v305 = vmul.f32 %v289, %v289
        %v306 = vmul.f32 %v290, %v290
        %v307 = vmul.f32 %v291, %v291
        %v308 = vmul.f32 %v292, %v292
        %v309 = vmul.f32 %v293, %v293
        %v310 = vmul.f32 %v294, %v294
        %v311 = vmul.f32 %v295, %v295
        %v312 = vmul.f32 %v296, %v296
        %v313 = vmul.f32 %v297, %v297
        %v314 = vmul.f32 %v298, %v298
        %v315 = vmul.f32 %v299, %v299
        %v316 = vmul.f32 %v300, %v300
        %v317 = vmul.f32 %v301, %v301
        %v318 = vmul.f32 %v302, %v302
        %v319 = vmul.f32 %v303, %v303
        %v320 = vmul.f32 %v304, %v304
        %v321 = vmul.f32 %v289, %v297
        %v322 = vmul.f32 %v290, %v298
        %v323 = vmul.f32 %v291, %v299
        %v324 = vmul.f32 %v292, %v300
        %v325 = vmul.f32 %v293, %v301
        %v326 = vmul.f32 %v294, %v302
        %v327 = vmul.f32 %v295, %v303
        %v328 = vmul.f32 %v296, %v304
        %v329 = vld [vmem:[#allocation7] sm:$0xff]
        %v330 = vld [vmem:[#allocation7 + $0x8] sm:$0xff]
        %v331 = vld [vmem:[#allocation7 + $0x10] sm:$0xff]
        %v332 = vld [vmem:[#allocation7 + $0x18] sm:$0xff]
        %v333 = vld [vmem:[#allocation7 + $0x20] sm:$0xff]
        %v334 = vld [vmem:[#allocation7 + $0x28] sm:$0xff]
        %v335 = vld [vmem:[#allocation7 + $0x30] sm:$0xff]
        %v336 = vld [vmem:[#allocation7 + $0x38] sm:$0xff]
        %v337 = vld [vmem:[#allocation7 + $0x40] sm:$0xff]
        %v338 = vld [vmem:[#allocation7 + $0x48] sm:$0xff]
        %v339 = vld [vmem:[#allocation7 + $0x50] sm:$0xff]
        %v340 = vld [vmem:[#allocation7 + $0x58] sm:$0xff]
        %v341 = vld [vmem:[#allocation7 + $0x60] sm:$0xff]
        %v342 = vld [vmem:[#allocation7 + $0x68] sm:$0xff]
        %v343 = vld [vmem:[#allocation7 + $0x70] sm:$0xff]
        %v344 = vld [vmem:[#allocation7 + $0x78] sm:$0xff]
        %v345 = vld [vmem:[#allocation7 + $0x80] sm:$0xff]
        %v346 = vld [vmem:[#allocation7 + $0x88] sm:$0xff]
        %v347 = vld [vmem:[#allocation7 + $0x90] sm:$0xff]
        %v348 = vld [vmem:[#allocation7 + $0x98] sm:$0xff]
        %v349 = vld [vmem:[#allocation7 + $0xa0] sm:$0xff]
        %v350 = vld [vmem:[#allocation7 + $0xa8] sm:$0xff]
        %v351 = vld [vmem:[#allocation7 + $0xb0] sm:$0xff]
        %v352 = vld [vmem:[#allocation7 + $0xb8] sm:$0xff]
        %v353 = vld [vmem:[#allocation7 + $0xc0] sm:$0xff]
        %v354 = vld [vmem:[#allocation7 + $0xc8] sm:$0xff]
        %v355 = vld [vmem:[#allocation7 + $0xd0] sm:$0xff]
        %v356 = vld [vmem:[#allocation7 + $0xd8] sm:$0xff]
        %v357 = vld [vmem:[#allocation7 + $0xe0] sm:$0xff]
        %v358 = vld [vmem:[#allocation7 + $0xe8] sm:$0xff]
        %v359 = vld [vmem:[#allocation7 + $0xf0] sm:$0xff]
        %v360 = vld [vmem:[#allocation7 + $0xf8] sm:$0xff]
        %v361 = vld [vmem:[#allocation7 + $0x100] sm:$0xff]
        %v362 = vld [vmem:[#allocation7 + $0x108] sm:$0xff]
        %v363 = vld [vmem:[#allocation7 + $0x110] sm:$0xff]
        %v364 = vld [vmem:[#allocation7 + $0x118] sm:$0xff]
        %v365 = vld [vmem:[#allocation7 + $0x120] sm:$0xff]
        %v366 = vld [vmem:[#allocation7 + $0x128] sm:$0xff]
        %v367 = vld [vmem:[#allocation7 + $0x130] sm:$0xff]
        %v368 = vld [vmem:[#allocation7 + $0x138] sm:$0xff]
        %vm369 = vcmask 261120
        %v371 = vsel %vm369, %v330, 0
        %v374 = vsel %vm369, %v332, 0
        %v377 = vsel %vm369, %v334, 0
        %v380 = vsel %vm369, %v336, 0
        %v383 = vsel %vm369, %v338, 0
        %v386 = vsel %vm369, %v340, 0
        %v389 = vsel %vm369, %v342, 0
        %v392 = vsel %vm369, %v344, 0
        %v395 = vsel %vm369, %v346, 0
        %v398 = vsel %vm369, %v348, 0
        %v401 = vsel %vm369, %v350, 0
        %v404 = vsel %vm369, %v352, 0
        %v407 = vsel %vm369, %v354, 0
        %v410 = vsel %vm369, %v356, 0
        %v413 = vsel %vm369, %v358, 0
        %v416 = vsel %vm369, %v360, 0
        %v419 = vsel %vm369, %v362, 0
        %v422 = vsel %vm369, %v364, 0
        %v425 = vsel %vm369, %v366, 0
        %v428 = vsel %vm369, %v368, 0
        %v430 = vand.u32 %v320, 4294901760
        %431 = vmatprep.subr.mxu0 %v430
        %v432 = vand.u32 %v319, 4294901760
        %433 = vmatpush1.msra.mxu0 %v432
        %v434 = vand.u32 %v318, 4294901760
        %435 = vmatprep.subr.mxu0 %v434
        %v436 = vand.u32 %v317, 4294901760
        %437 = vmatpush1.msra.mxu0 %v436
        %v438 = vand.u32 %v316, 4294901760
        %439 = vmatprep.subr.mxu0 %v438
        %v440 = vand.u32 %v315, 4294901760
        %441 = vmatpush1.msra.mxu0 %v440
        %v442 = vand.u32 %v314, 4294901760
        %443 = vmatprep.subr.mxu0 %v442
        %v444 = vand.u32 %v313, 4294901760
        %445 = vmatpush1.msra.mxu0 %v444
        %v446 = vand.u32 %v312, 4294901760
        %447 = vmatprep.subr.mxu0 %v446
        %v448 = vand.u32 %v311, 4294901760
        %449 = vmatpush1.msra.mxu0 %v448
        %v450 = vand.u32 %v310, 4294901760
        %451 = vmatprep.subr.mxu0 %v450
        %v452 = vand.u32 %v309, 4294901760
        %453 = vmatpush1.msra.mxu0 %v452
        %v454 = vand.u32 %v308, 4294901760
        %455 = vmatprep.subr.mxu0 %v454
        %v456 = vand.u32 %v307, 4294901760
        %457 = vmatpush1.msra.mxu0 %v456
        %v458 = vand.u32 %v306, 4294901760
        %459 = vmatprep.subr.mxu0 %v458
        %v460 = vand.u32 %v305, 4294901760
        %461 = vmatpush1.msra.mxu0 %v460
        %v462 = vand.u32 %v304, 4294901760
        %463 = vmatprep.subr.mxu0 %v462
        %v464 = vand.u32 %v303, 4294901760
        %465 = vmatpush1.msra.mxu0 %v464
        %v466 = vand.u32 %v302, 4294901760
        %467 = vmatprep.subr.mxu0 %v466
        %v468 = vand.u32 %v301, 4294901760
        %469 = vmatpush1.msra.mxu0 %v468
        %v470 = vand.u32 %v300, 4294901760
        %471 = vmatprep.subr.mxu0 %v470
        %v472 = vand.u32 %v299, 4294901760
        %473 = vmatpush1.msra.mxu0 %v472
        %v474 = vand.u32 %v298, 4294901760
        %475 = vmatprep.subr.mxu0 %v474
        %v476 = vand.u32 %v297, 4294901760
        %477 = vmatpush1.msra.mxu0 %v476
        %v478 = vand.u32 %v296, 4294901760
        %479 = vmatprep.subr.mxu0 %v478
        %v480 = vand.u32 %v295, 4294901760
        %481 = vmatpush1.msra.mxu0 %v480
        %v482 = vand.u32 %v294, 4294901760
        %483 = vmatprep.subr.mxu0 %v482
        %v484 = vand.u32 %v293, 4294901760
        %485 = vmatpush1.msra.mxu0 %v484
        %v486 = vand.u32 %v292, 4294901760
        %487 = vmatprep.subr.mxu0 %v486
        %v488 = vand.u32 %v291, 4294901760
        %489 = vmatpush1.msra.mxu0 %v488
        %v490 = vand.u32 %v290, 4294901760
        %491 = vmatprep.subr.mxu0 %v490
        %v492 = vand.u32 %v289, 4294901760
        %493 = vmatpush1.msra.mxu0 %v492
        %494 = vmatprep.subr.mxu0 0.0
        %495 = vmatpush2.msra.mxu0 0.0
        %496 = vmatprep.subr.mxu0 0.0
        %497 = vmatpush2.msra.mxu0 0.0
        %498 = vmatprep.subr.mxu0 0.0
        %499 = vmatpush2.msra.mxu0 0.0
        %500 = vmatprep.subr.mxu0 0.0
        %501 = vmatpush2.msra.mxu0 0.0
        %502 = vmatprep.subr.mxu0 0.0
        %503 = vmatpush2.msra.mxu0 0.0
        %504 = vmatprep.subr.mxu0 0.0
        %505 = vmatpush2.msra.mxu0 0.0
        %506 = vmatprep.subr.mxu0 0.0
        %507 = vmatpush2.msra.mxu0 0.0
        %508 = vmatprep.subr.mxu0 0.0
        %509 = vmatpush2.msra.mxu0 0.0
        %510 = vmatprep.subr.mxu0 0.0
        %511 = vmatpush2.msra.mxu0 0.0
        %512 = vmatprep.subr.mxu0 0.0
        %513 = vmatpush2.msra.mxu0 0.0
        %514 = vmatprep.subr.mxu0 0.0
        %515 = vmatpush2.msra.mxu0 0.0
        %516 = vmatprep.subr.mxu0 0.0
        %517 = vmatpush2.msra.mxu0 0.0
        %v518 = vand.u32 %v328, 4294901760
        %519 = vmatprep.subr.mxu0 %v518
        %v520 = vand.u32 %v327, 4294901760
        %521 = vmatpush2.msra.mxu0 %v520
        %v522 = vand.u32 %v326, 4294901760
        %523 = vmatprep.subr.mxu0 %v522
        %v524 = vand.u32 %v325, 4294901760
        %525 = vmatpush2.msra.mxu0 %v524
        %v526 = vand.u32 %v324, 4294901760
        %527 = vmatprep.subr.mxu0 %v526
        %v528 = vand.u32 %v323, 4294901760
        %529 = vmatpush2.msra.mxu0 %v528
        %v530 = vand.u32 %v322, 4294901760
        %531 = vmatprep.subr.mxu0 %v530
        %v532 = vand.u32 %v321, 4294901760
        %533 = vmatpush2.msra.mxu0 %v532
        %v534 = vand.u32 %v371, 4294901760
        %v535 = vsub.f32 %v371, %v534
        %v536 = vand.u32 %v535, 4294901760
        %v537 = vsub.f32 %v535, %v536
        %v538 = vand.u32 %v537, 4294901760
        %539 = vmatprep.mubr.f32.mxu0 %v538
        %v540 = vand.u32 %v329, 4294901760
        %v541 = vsub.f32 %v329, %v540
        %v542 = vand.u32 %v541, 4294901760
        %v543 = vsub.f32 %v541, %v542
        %v544 = vand.u32 %v543, 4294901760
        %545 = vmatmul.mubr.f32.gmra.mxu0 %v544
        %v546 = vpop.f32.mrf.mxu0
        %v547 = vadd.f32 0.0, %v546
        %v548 = vpop.f32.mrf.mxu0
        %v549 = vadd.f32 0.0, %v548
        %v550 = vand.u32 %v374, 4294901760
        %v551 = vsub.f32 %v374, %v550
        %v552 = vand.u32 %v551, 4294901760
        %v553 = vsub.f32 %v551, %v552
        %v554 = vand.u32 %v553, 4294901760
        %555 = vmatprep.mubr.f32.mxu0 %v554
        %v556 = vand.u32 %v331, 4294901760
        %v557 = vsub.f32 %v331, %v556
        %v558 = vand.u32 %v557, 4294901760
        %v559 = vsub.f32 %v557, %v558
        %v560 = vand.u32 %v559, 4294901760
        %561 = vmatmul.mubr.f32.gmra.mxu0 %v560
        %v562 = vpop.f32.mrf.mxu0
        %v563 = vadd.f32 0.0, %v562
        %v564 = vpop.f32.mrf.mxu0
        %v565 = vadd.f32 0.0, %v564
        %v566 = vand.u32 %v377, 4294901760
        %v567 = vsub.f32 %v377, %v566
        %v568 = vand.u32 %v567, 4294901760
        %v569 = vsub.f32 %v567, %v568
        %v570 = vand.u32 %v569, 4294901760
        %571 = vmatprep.mubr.f32.mxu0 %v570
        %v572 = vand.u32 %v333, 4294901760
        %v573 = vsub.f32 %v333, %v572
        %v574 = vand.u32 %v573, 4294901760
        %v575 = vsub.f32 %v573, %v574
        %v576 = vand.u32 %v575, 4294901760
        %577 = vmatmul.mubr.f32.gmra.mxu0 %v576
        %v578 = vpop.f32.mrf.mxu0
        %v579 = vadd.f32 0.0, %v578
        %v580 = vpop.f32.mrf.mxu0
        %v581 = vadd.f32 0.0, %v580
        %v582 = vand.u32 %v380, 4294901760
        %v583 = vsub.f32 %v380, %v582
        %v584 = vand.u32 %v583, 4294901760
        %v585 = vsub.f32 %v583, %v584
        %v586 = vand.u32 %v585, 4294901760
        %587 = vmatprep.mubr.f32.mxu0 %v586
        %v588 = vand.u32 %v335, 4294901760
        %v589 = vsub.f32 %v335, %v588
        %v590 = vand.u32 %v589, 4294901760
        %v591 = vsub.f32 %v589, %v590
        %v592 = vand.u32 %v591, 4294901760
        %593 = vmatmul.mubr.f32.gmra.mxu0 %v592
        %v594 = vpop.f32.mrf.mxu0
        %v595 = vadd.f32 0.0, %v594
        %v596 = vpop.f32.mrf.mxu0
        %v597 = vadd.f32 0.0, %v596
        %v598 = vand.u32 %v383, 4294901760
        %v599 = vsub.f32 %v383, %v598
        %v600 = vand.u32 %v599, 4294901760
        %v601 = vsub.f32 %v599, %v600
        %v602 = vand.u32 %v601, 4294901760
        %603 = vmatprep.mubr.f32.mxu0 %v602
        %v604 = vand.u32 %v337, 4294901760
        %v605 = vsub.f32 %v337, %v604
        %v606 = vand.u32 %v605, 4294901760
        %v607 = vsub.f32 %v605, %v606
        %v608 = vand.u32 %v607, 4294901760
        %609 = vmatmul.mubr.f32.gmra.mxu0 %v608
        %v610 = vpop.f32.mrf.mxu0
        %v611 = vadd.f32 0.0, %v610
        %v612 = vpop.f32.mrf.mxu0
        %v613 = vadd.f32 0.0, %v612
        %v614 = vand.u32 %v386, 4294901760
        %v615 = vsub.f32 %v386, %v614
        %v616 = vand.u32 %v615, 4294901760
        %v617 = vsub.f32 %v615, %v616
        %v618 = vand.u32 %v617, 4294901760
        %619 = vmatprep.mubr.f32.mxu0 %v618
        %v620 = vand.u32 %v339, 4294901760
        %v621 = vsub.f32 %v339, %v620
        %v622 = vand.u32 %v621, 4294901760
        %v623 = vsub.f32 %v621, %v622
        %v624 = vand.u32 %v623, 4294901760
        %625 = vmatmul.mubr.f32.gmra.mxu0 %v624
        %v626 = vpop.f32.mrf.mxu0
        %v627 = vadd.f32 0.0, %v626
        %v628 = vpop.f32.mrf.mxu0
        %v629 = vadd.f32 0.0, %v628
        %v630 = vand.u32 %v389, 4294901760
        %v631 = vsub.f32 %v389, %v630
        %v632 = vand.u32 %v631, 4294901760
        %v633 = vsub.f32 %v631, %v632
        %v634 = vand.u32 %v633, 4294901760
        %635 = vmatprep.mubr.f32.mxu0 %v634
        %v636 = vand.u32 %v341, 4294901760
        %v637 = vsub.f32 %v341, %v636
        %v638 = vand.u32 %v637, 4294901760
        %v639 = vsub.f32 %v637, %v638
        %v640 = vand.u32 %v639, 4294901760
        %641 = vmatmul.mubr.f32.gmra.mxu0 %v640
        %v642 = vpop.f32.mrf.mxu0
        %v643 = vadd.f32 0.0, %v642
        %v644 = vpop.f32.mrf.mxu0
        %v645 = vadd.f32 0.0, %v644
        %v646 = vand.u32 %v392, 4294901760
        %v647 = vsub.f32 %v392, %v646
        %v648 = vand.u32 %v647, 4294901760
        %v649 = vsub.f32 %v647, %v648
        %v650 = vand.u32 %v649, 4294901760
        %651 = vmatprep.mubr.f32.mxu0 %v650
        %v652 = vand.u32 %v343, 4294901760
        %v653 = vsub.f32 %v343, %v652
        %v654 = vand.u32 %v653, 4294901760
        %v655 = vsub.f32 %v653, %v654
        %v656 = vand.u32 %v655, 4294901760
        %657 = vmatmul.mubr.f32.gmra.mxu0 %v656
        %v658 = vpop.f32.mrf.mxu0
        %v659 = vadd.f32 0.0, %v658
        %v660 = vpop.f32.mrf.mxu0
        %v661 = vadd.f32 0.0, %v660
        %v662 = vand.u32 %v395, 4294901760
        %v663 = vsub.f32 %v395, %v662
        %v664 = vand.u32 %v663, 4294901760
        %v665 = vsub.f32 %v663, %v664
        %v666 = vand.u32 %v665, 4294901760
        %667 = vmatprep.mubr.f32.mxu0 %v666
        %v668 = vand.u32 %v345, 4294901760
        %v669 = vsub.f32 %v345, %v668
        %v670 = vand.u32 %v669, 4294901760
        %v671 = vsub.f32 %v669, %v670
        %v672 = vand.u32 %v671, 4294901760
        %673 = vmatmul.mubr.f32.gmra.mxu0 %v672
        %v674 = vpop.f32.mrf.mxu0
        %v675 = vadd.f32 0.0, %v674
        %v676 = vpop.f32.mrf.mxu0
        %v677 = vadd.f32 0.0, %v676
        %v678 = vand.u32 %v398, 4294901760
        %v679 = vsub.f32 %v398, %v678
        %v680 = vand.u32 %v679, 4294901760
        %v681 = vsub.f32 %v679, %v680
        %v682 = vand.u32 %v681, 4294901760
        %683 = vmatprep.mubr.f32.mxu0 %v682
        %v684 = vand.u32 %v347, 4294901760
        %v685 = vsub.f32 %v347, %v684
        %v686 = vand.u32 %v685, 4294901760
        %v687 = vsub.f32 %v685, %v686
        %v688 = vand.u32 %v687, 4294901760
        %689 = vmatmul.mubr.f32.gmra.mxu0 %v688
        %v690 = vpop.f32.mrf.mxu0
        %v691 = vadd.f32 0.0, %v690
        %v692 = vpop.f32.mrf.mxu0
        %v693 = vadd.f32 0.0, %v692
        %v694 = vand.u32 %v401, 4294901760
        %v695 = vsub.f32 %v401, %v694
        %v696 = vand.u32 %v695, 4294901760
        %v697 = vsub.f32 %v695, %v696
        %v698 = vand.u32 %v697, 4294901760
        %699 = vmatprep.mubr.f32.mxu0 %v698
        %v700 = vand.u32 %v349, 4294901760
        %v701 = vsub.f32 %v349, %v700
        %v702 = vand.u32 %v701, 4294901760
        %v703 = vsub.f32 %v701, %v702
        %v704 = vand.u32 %v703, 4294901760
        %705 = vmatmul.mubr.f32.gmra.mxu0 %v704
        %v706 = vpop.f32.mrf.mxu0
        %v707 = vadd.f32 0.0, %v706
        %v708 = vpop.f32.mrf.mxu0
        %v709 = vadd.f32 0.0, %v708
        %v710 = vand.u32 %v404, 4294901760
        %v711 = vsub.f32 %v404, %v710
        %v712 = vand.u32 %v711, 4294901760
        %v713 = vsub.f32 %v711, %v712
        %v714 = vand.u32 %v713, 4294901760
        %715 = vmatprep.mubr.f32.mxu0 %v714
        %v716 = vand.u32 %v351, 4294901760
        %v717 = vsub.f32 %v351, %v716
        %v718 = vand.u32 %v717, 4294901760
        %v719 = vsub.f32 %v717, %v718
        %v720 = vand.u32 %v719, 4294901760
        %721 = vmatmul.mubr.f32.gmra.mxu0 %v720
        %v722 = vpop.f32.mrf.mxu0
        %v723 = vadd.f32 0.0, %v722
        %v724 = vpop.f32.mrf.mxu0
        %v725 = vadd.f32 0.0, %v724
        %v726 = vand.u32 %v407, 4294901760
        %v727 = vsub.f32 %v407, %v726
        %v728 = vand.u32 %v727, 4294901760
        %v729 = vsub.f32 %v727, %v728
        %v730 = vand.u32 %v729, 4294901760
        %731 = vmatprep.mubr.f32.mxu0 %v730
        %v732 = vand.u32 %v353, 4294901760
        %v733 = vsub.f32 %v353, %v732
        %v734 = vand.u32 %v733, 4294901760
        %v735 = vsub.f32 %v733, %v734
        %v736 = vand.u32 %v735, 4294901760
        %737 = vmatmul.mubr.f32.gmra.mxu0 %v736
        %v738 = vpop.f32.mrf.mxu0
        %v739 = vadd.f32 0.0, %v738
        %v740 = vpop.f32.mrf.mxu0
        %v741 = vadd.f32 0.0, %v740
        %v742 = vand.u32 %v410, 4294901760
        %v743 = vsub.f32 %v410, %v742
        %v744 = vand.u32 %v743, 4294901760
        %v745 = vsub.f32 %v743, %v744
        %v746 = vand.u32 %v745, 4294901760
        %747 = vmatprep.mubr.f32.mxu0 %v746
        %v748 = vand.u32 %v355, 4294901760
        %v749 = vsub.f32 %v355, %v748
        %v750 = vand.u32 %v749, 4294901760
        %v751 = vsub.f32 %v749, %v750
        %v752 = vand.u32 %v751, 4294901760
        %753 = vmatmul.mubr.f32.gmra.mxu0 %v752
        %v754 = vpop.f32.mrf.mxu0
        %v755 = vadd.f32 0.0, %v754
        %v756 = vpop.f32.mrf.mxu0
        %v757 = vadd.f32 0.0, %v756
        %v758 = vand.u32 %v413, 4294901760
        %v759 = vsub.f32 %v413, %v758
        %v760 = vand.u32 %v759, 4294901760
        %v761 = vsub.f32 %v759, %v760
        %v762 = vand.u32 %v761, 4294901760
        %763 = vmatprep.mubr.f32.mxu0 %v762
        %v764 = vand.u32 %v357, 4294901760
        %v765 = vsub.f32 %v357, %v764
        %v766 = vand.u32 %v765, 4294901760
        %v767 = vsub.f32 %v765, %v766
        %v768 = vand.u32 %v767, 4294901760
        %769 = vmatmul.mubr.f32.gmra.mxu0 %v768
        %v770 = vpop.f32.mrf.mxu0
        %v771 = vadd.f32 0.0, %v770
        %v772 = vpop.f32.mrf.mxu0
        %v773 = vadd.f32 0.0, %v772
        %v774 = vand.u32 %v416, 4294901760
        %v775 = vsub.f32 %v416, %v774
        %v776 = vand.u32 %v775, 4294901760
        %v777 = vsub.f32 %v775, %v776
        %v778 = vand.u32 %v777, 4294901760
        %779 = vmatprep.mubr.f32.mxu0 %v778
        %v780 = vand.u32 %v359, 4294901760
        %v781 = vsub.f32 %v359, %v780
        %v782 = vand.u32 %v781, 4294901760
        %v783 = vsub.f32 %v781, %v782
        %v784 = vand.u32 %v783, 4294901760
        %785 = vmatmul.mubr.f32.gmra.mxu0 %v784
        %v786 = vpop.f32.mrf.mxu0
        %v787 = vadd.f32 0.0, %v786
        %v788 = vpop.f32.mrf.mxu0
        %v789 = vadd.f32 0.0, %v788
        %v790 = vand.u32 %v419, 4294901760
        %v791 = vsub.f32 %v419, %v790
        %v792 = vand.u32 %v791, 4294901760
        %v793 = vsub.f32 %v791, %v792
        %v794 = vand.u32 %v793, 4294901760
        %795 = vmatprep.mubr.f32.mxu0 %v794
        %v796 = vand.u32 %v361, 4294901760
        %v797 = vsub.f32 %v361, %v796
        %v798 = vand.u32 %v797, 4294901760
        %v799 = vsub.f32 %v797, %v798
        %v800 = vand.u32 %v799, 4294901760
        %801 = vmatmul.mubr.f32.gmra.mxu0 %v800
        %v802 = vpop.f32.mrf.mxu0
        %v803 = vadd.f32 0.0, %v802
        %v804 = vpop.f32.mrf.mxu0
        %v805 = vadd.f32 0.0, %v804
        %v806 = vand.u32 %v422, 4294901760
        %v807 = vsub.f32 %v422, %v806
        %v808 = vand.u32 %v807, 4294901760
        %v809 = vsub.f32 %v807, %v808
        %v810 = vand.u32 %v809, 4294901760
        %811 = vmatprep.mubr.f32.mxu0 %v810
        %v812 = vand.u32 %v363, 4294901760
        %v813 = vsub.f32 %v363, %v812
        %v814 = vand.u32 %v813, 4294901760
        %v815 = vsub.f32 %v813, %v814
        %v816 = vand.u32 %v815, 4294901760
        %817 = vmatmul.mubr.f32.gmra.mxu0 %v816
        %v818 = vpop.f32.mrf.mxu0
        %v819 = vadd.f32 0.0, %v818
        %v820 = vpop.f32.mrf.mxu0
        %v821 = vadd.f32 0.0, %v820
        %v822 = vand.u32 %v425, 4294901760
        %v823 = vsub.f32 %v425, %v822
        %v824 = vand.u32 %v823, 4294901760
        %v825 = vsub.f32 %v823, %v824
        %v826 = vand.u32 %v825, 4294901760
        %827 = vmatprep.mubr.f32.mxu0 %v826
        %v828 = vand.u32 %v365, 4294901760
        %v829 = vsub.f32 %v365, %v828
        %v830 = vand.u32 %v829, 4294901760
        %v831 = vsub.f32 %v829, %v830
        %v832 = vand.u32 %v831, 4294901760
        %833 = vmatmul.mubr.f32.gmra.mxu0 %v832
        %v834 = vpop.f32.mrf.mxu0
        %v835 = vadd.f32 0.0, %v834
        %v836 = vpop.f32.mrf.mxu0
        %v837 = vadd.f32 0.0, %v836
        %v838 = vand.u32 %v428, 4294901760
        %v839 = vsub.f32 %v428, %v838
        %v840 = vand.u32 %v839, 4294901760
        %v841 = vsub.f32 %v839, %v840
        %v842 = vand.u32 %v841, 4294901760
        %843 = vmatprep.mubr.f32.mxu0 %v842
        %v844 = vand.u32 %v367, 4294901760
        %v845 = vsub.f32 %v367, %v844
        %v846 = vand.u32 %v845, 4294901760
        %v847 = vsub.f32 %v845, %v846
        %v848 = vand.u32 %v847, 4294901760
        %849 = vmatmul.mubr.f32.gmra.mxu0 %v848
        %v850 = vpop.f32.mrf.mxu0
        %v851 = vadd.f32 0.0, %v850
        %v852 = vpop.f32.mrf.mxu0
        %v853 = vadd.f32 0.0, %v852
        %854 = vdwg.mxu0
        %v855 = vand.u32 %v320, 4294901760
        %v856 = vsub.f32 %v320, %v855
        %v857 = vand.u32 %v856, 4294901760
        %v858 = vsub.f32 %v856, %v857
        %v859 = vand.u32 %v858, 4294901760
        %860 = vmatprep.subr.mxu0 %v859
        %v861 = vand.u32 %v319, 4294901760
        %v862 = vsub.f32 %v319, %v861
        %v863 = vand.u32 %v862, 4294901760
        %v864 = vsub.f32 %v862, %v863
        %v865 = vand.u32 %v864, 4294901760
        %866 = vmatpush1.msra.mxu0 %v865
        %v867 = vand.u32 %v318, 4294901760
        %v868 = vsub.f32 %v318, %v867
        %v869 = vand.u32 %v868, 4294901760
        %v870 = vsub.f32 %v868, %v869
        %v871 = vand.u32 %v870, 4294901760
        %872 = vmatprep.subr.mxu0 %v871
        %v873 = vand.u32 %v317, 4294901760
        %v874 = vsub.f32 %v317, %v873
        %v875 = vand.u32 %v874, 4294901760
        %v876 = vsub.f32 %v874, %v875
        %v877 = vand.u32 %v876, 4294901760
        %878 = vmatpush1.msra.mxu0 %v877
        %v879 = vand.u32 %v316, 4294901760
        %v880 = vsub.f32 %v316, %v879
        %v881 = vand.u32 %v880, 4294901760
        %v882 = vsub.f32 %v880, %v881
        %v883 = vand.u32 %v882, 4294901760
        %884 = vmatprep.subr.mxu0 %v883
        %v885 = vand.u32 %v315, 4294901760
        %v886 = vsub.f32 %v315, %v885
        %v887 = vand.u32 %v886, 4294901760
        %v888 = vsub.f32 %v886, %v887
        %v889 = vand.u32 %v888, 4294901760
        %890 = vmatpush1.msra.mxu0 %v889
        %v891 = vand.u32 %v314, 4294901760
        %v892 = vsub.f32 %v314, %v891
        %v893 = vand.u32 %v892, 4294901760
        %v894 = vsub.f32 %v892, %v893
        %v895 = vand.u32 %v894, 4294901760
        %896 = vmatprep.subr.mxu0 %v895
        %v897 = vand.u32 %v313, 4294901760
        %v898 = vsub.f32 %v313, %v897
        %v899 = vand.u32 %v898, 4294901760
        %v900 = vsub.f32 %v898, %v899
        %v901 = vand.u32 %v900, 4294901760
        %902 = vmatpush1.msra.mxu0 %v901
        %v903 = vand.u32 %v312, 4294901760
        %v904 = vsub.f32 %v312, %v903
        %v905 = vand.u32 %v904, 4294901760
        %v906 = vsub.f32 %v904, %v905
        %v907 = vand.u32 %v906, 4294901760
        %908 = vmatprep.subr.mxu0 %v907
        %v909 = vand.u32 %v311, 4294901760
        %v910 = vsub.f32 %v311, %v909
        %v911 = vand.u32 %v910, 4294901760
        %v912 = vsub.f32 %v910, %v911
        %v913 = vand.u32 %v912, 4294901760
        %914 = vmatpush1.msra.mxu0 %v913
        %v915 = vand.u32 %v310, 4294901760
        %v916 = vsub.f32 %v310, %v915
        %v917 = vand.u32 %v916, 4294901760
        %v918 = vsub.f32 %v916, %v917
        %v919 = vand.u32 %v918, 4294901760
        %920 = vmatprep.subr.mxu0 %v919
        %v921 = vand.u32 %v309, 4294901760
        %v922 = vsub.f32 %v309, %v921
        %v923 = vand.u32 %v922, 4294901760
        %v924 = vsub.f32 %v922, %v923
        %v925 = vand.u32 %v924, 4294901760
        %926 = vmatpush1.msra.mxu0 %v925
        %v927 = vand.u32 %v308, 4294901760
        %v928 = vsub.f32 %v308, %v927
        %v929 = vand.u32 %v928, 4294901760
        %v930 = vsub.f32 %v928, %v929
        %v931 = vand.u32 %v930, 4294901760
        %932 = vmatprep.subr.mxu0 %v931
        %v933 = vand.u32 %v307, 4294901760
        %v934 = vsub.f32 %v307, %v933
        %v935 = vand.u32 %v934, 4294901760
        %v936 = vsub.f32 %v934, %v935
        %v937 = vand.u32 %v936, 4294901760
        %938 = vmatpush1.msra.mxu0 %v937
        %v939 = vand.u32 %v306, 4294901760
        %v940 = vsub.f32 %v306, %v939
        %v941 = vand.u32 %v940, 4294901760
        %v942 = vsub.f32 %v940, %v941
        %v943 = vand.u32 %v942, 4294901760
        %944 = vmatprep.subr.mxu0 %v943
        %v945 = vand.u32 %v305, 4294901760
        %v946 = vsub.f32 %v305, %v945
        %v947 = vand.u32 %v946, 4294901760
        %v948 = vsub.f32 %v946, %v947
        %v949 = vand.u32 %v948, 4294901760
        %950 = vmatpush1.msra.mxu0 %v949
        %v951 = vand.u32 %v304, 4294901760
        %v952 = vsub.f32 %v304, %v951
        %v953 = vand.u32 %v952, 4294901760
        %v954 = vsub.f32 %v952, %v953
        %v955 = vand.u32 %v954, 4294901760
        %956 = vmatprep.subr.mxu0 %v955
        %v957 = vand.u32 %v303, 4294901760
        %v958 = vsub.f32 %v303, %v957
        %v959 = vand.u32 %v958, 4294901760
        %v960 = vsub.f32 %v958, %v959
        %v961 = vand.u32 %v960, 4294901760
        %962 = vmatpush1.msra.mxu0 %v961
        %v963 = vand.u32 %v302, 4294901760
        %v964 = vsub.f32 %v302, %v963
        %v965 = vand.u32 %v964, 4294901760
        %v966 = vsub.f32 %v964, %v965
        %v967 = vand.u32 %v966, 4294901760
        %968 = vmatprep.subr.mxu0 %v967
        %v969 = vand.u32 %v301, 4294901760
        %v970 = vsub.f32 %v301, %v969
        %v971 = vand.u32 %v970, 4294901760
        %v972 = vsub.f32 %v970, %v971
        %v973 = vand.u32 %v972, 4294901760
        %974 = vmatpush1.msra.mxu0 %v973
        %v975 = vand.u32 %v300, 4294901760
        %v976 = vsub.f32 %v300, %v975
        %v977 = vand.u32 %v976, 4294901760
        %v978 = vsub.f32 %v976, %v977
        %v979 = vand.u32 %v978, 4294901760
        %980 = vmatprep.subr.mxu0 %v979
        %v981 = vand.u32 %v299, 4294901760
        %v982 = vsub.f32 %v299, %v981
        %v983 = vand.u32 %v982, 4294901760
        %v984 = vsub.f32 %v982, %v983
        %v985 = vand.u32 %v984, 4294901760
        %986 = vmatpush1.msra.mxu0 %v985
        %v987 = vand.u32 %v298, 4294901760
        %v988 = vsub.f32 %v298, %v987
        %v989 = vand.u32 %v988, 4294901760
        %v990 = vsub.f32 %v988, %v989
        %v991 = vand.u32 %v990, 4294901760
        %992 = vmatprep.subr.mxu0 %v991
        %v993 = vand.u32 %v297, 4294901760
        %v994 = vsub.f32 %v297, %v993
        %v995 = vand.u32 %v994, 4294901760
        %v996 = vsub.f32 %v994, %v995
        %v997 = vand.u32 %v996, 4294901760
        %998 = vmatpush1.msra.mxu0 %v997
        %v999 = vand.u32 %v296, 4294901760
        %v1000 = vsub.f32 %v296, %v999
        %v1001 = vand.u32 %v1000, 4294901760
        %v1002 = vsub.f32 %v1000, %v1001
        %v1003 = vand.u32 %v1002, 4294901760
        %1004 = vmatprep.subr.mxu0 %v1003
        %v1005 = vand.u32 %v295, 4294901760
        %v1006 = vsub.f32 %v295, %v1005
        %v1007 = vand.u32 %v1006, 4294901760
        %v1008 = vsub.f32 %v1006, %v1007
        %v1009 = vand.u32 %v1008, 4294901760
        %1010 = vmatpush1.msra.mxu0 %v1009
        %v1011 = vand.u32 %v294, 4294901760
        %v1012 = vsub.f32 %v294, %v1011
        %v1013 = vand.u32 %v1012, 4294901760
        %v1014 = vsub.f32 %v1012, %v1013
        %v1015 = vand.u32 %v1014, 4294901760
        %1016 = vmatprep.subr.mxu0 %v1015
        %v1017 = vand.u32 %v293, 4294901760
        %v1018 = vsub.f32 %v293, %v1017
        %v1019 = vand.u32 %v1018, 4294901760
        %v1020 = vsub.f32 %v1018, %v1019
        %v1021 = vand.u32 %v1020, 4294901760
        %1022 = vmatpush1.msra.mxu0 %v1021
        %v1023 = vand.u32 %v292, 4294901760
        %v1024 = vsub.f32 %v292, %v1023
        %v1025 = vand.u32 %v1024, 4294901760
        %v1026 = vsub.f32 %v1024, %v1025
        %v1027 = vand.u32 %v1026, 4294901760
        %1028 = vmatprep.subr.mxu0 %v1027
        %v1029 = vand.u32 %v291, 4294901760
        %v1030 = vsub.f32 %v291, %v1029
        %v1031 = vand.u32 %v1030, 4294901760
        %v1032 = vsub.f32 %v1030, %v1031
        %v1033 = vand.u32 %v1032, 4294901760
        %1034 = vmatpush1.msra.mxu0 %v1033
        %v1035 = vand.u32 %v290, 4294901760
        %v1036 = vsub.f32 %v290, %v1035
        %v1037 = vand.u32 %v1036, 4294901760
        %v1038 = vsub.f32 %v1036, %v1037
        %v1039 = vand.u32 %v1038, 4294901760
        %1040 = vmatprep.subr.mxu0 %v1039
        %v1041 = vand.u32 %v289, 4294901760
        %v1042 = vsub.f32 %v289, %v1041
        %v1043 = vand.u32 %v1042, 4294901760
        %v1044 = vsub.f32 %v1042, %v1043
        %v1045 = vand.u32 %v1044, 4294901760
        %1046 = vmatpush1.msra.mxu0 %v1045
        %1047 = vmatprep.subr.mxu0 0.0
        %1048 = vmatpush2.msra.mxu0 0.0
        %1049 = vmatprep.subr.mxu0 0.0
        %1050 = vmatpush2.msra.mxu0 0.0
        %1051 = vmatprep.subr.mxu0 0.0
        %1052 = vmatpush2.msra.mxu0 0.0
        %1053 = vmatprep.subr.mxu0 0.0
        %1054 = vmatpush2.msra.mxu0 0.0
        %1055 = vmatprep.subr.mxu0 0.0
        %1056 = vmatpush2.msra.mxu0 0.0
        %1057 = vmatprep.subr.mxu0 0.0
        %1058 = vmatpush2.msra.mxu0 0.0
        %1059 = vmatprep.subr.mxu0 0.0
        %1060 = vmatpush2.msra.mxu0 0.0
        %1061 = vmatprep.subr.mxu0 0.0
        %1062 = vmatpush2.msra.mxu0 0.0
        %1063 = vmatprep.subr.mxu0 0.0
        %1064 = vmatpush2.msra.mxu0 0.0
        %1065 = vmatprep.subr.mxu0 0.0
        %1066 = vmatpush2.msra.mxu0 0.0
        %1067 = vmatprep.subr.mxu0 0.0
        %1068 = vmatpush2.msra.mxu0 0.0
        %1069 = vmatprep.subr.mxu0 0.0
        %1070 = vmatpush2.msra.mxu0 0.0
        %v1071 = vand.u32 %v328, 4294901760
        %v1072 = vsub.f32 %v328, %v1071
        %v1073 = vand.u32 %v1072, 4294901760
        %v1074 = vsub.f32 %v1072, %v1073
        %v1075 = vand.u32 %v1074, 4294901760
        %1076 = vmatprep.subr.mxu0 %v1075
        %v1077 = vand.u32 %v327, 4294901760
        %v1078 = vsub.f32 %v327, %v1077
        %v1079 = vand.u32 %v1078, 4294901760
        %v1080 = vsub.f32 %v1078, %v1079
        %v1081 = vand.u32 %v1080, 4294901760
        %1082 = vmatpush2.msra.mxu0 %v1081
        %v1083 = vand.u32 %v326, 4294901760
        %v1084 = vsub.f32 %v326, %v1083
        %v1085 = vand.u32 %v1084, 4294901760
        %v1086 = vsub.f32 %v1084, %v1085
        %v1087 = vand.u32 %v1086, 4294901760
        %1088 = vmatprep.subr.mxu0 %v1087
        %v1089 = vand.u32 %v325, 4294901760
        %v1090 = vsub.f32 %v325, %v1089
        %v1091 = vand.u32 %v1090, 4294901760
        %v1092 = vsub.f32 %v1090, %v1091
        %v1093 = vand.u32 %v1092, 4294901760
        %1094 = vmatpush2.msra.mxu0 %v1093
        %v1095 = vand.u32 %v324, 4294901760
        %v1096 = vsub.f32 %v324, %v1095
        %v1097 = vand.u32 %v1096, 4294901760
        %v1098 = vsub.f32 %v1096, %v1097
        %v1099 = vand.u32 %v1098, 4294901760
        %1100 = vmatprep.subr.mxu0 %v1099
        %v1101 = vand.u32 %v323, 4294901760
        %v1102 = vsub.f32 %v323, %v1101
        %v1103 = vand.u32 %v1102, 4294901760
        %v1104 = vsub.f32 %v1102, %v1103
        %v1105 = vand.u32 %v1104, 4294901760
        %1106 = vmatpush2.msra.mxu0 %v1105
        %v1107 = vand.u32 %v322, 4294901760
        %v1108 = vsub.f32 %v322, %v1107
        %v1109 = vand.u32 %v1108, 4294901760
        %v1110 = vsub.f32 %v1108, %v1109
        %v1111 = vand.u32 %v1110, 4294901760
        %1112 = vmatprep.subr.mxu0 %v1111
        %v1113 = vand.u32 %v321, 4294901760
        %v1114 = vsub.f32 %v321, %v1113
        %v1115 = vand.u32 %v1114, 4294901760
        %v1116 = vsub.f32 %v1114, %v1115
        %v1117 = vand.u32 %v1116, 4294901760
        %1118 = vmatpush2.msra.mxu0 %v1117
        %v1119 = vand.u32 %v371, 4294901760
        %1120 = vmatprep.mubr.f32.mxu0 %v1119
        %v1121 = vand.u32 %v329, 4294901760
        %1122 = vmatmul.mubr.f32.gmra.mxu0 %v1121
        %v1123 = vpop.f32.mrf.mxu0
        %v1124 = vadd.f32 %v547, %v1123
        %v1125 = vpop.f32.mrf.mxu0
        %v1126 = vadd.f32 %v549, %v1125
        %v1127 = vand.u32 %v374, 4294901760
        %1128 = vmatprep.mubr.f32.mxu0 %v1127
        %v1129 = vand.u32 %v331, 4294901760
        %1130 = vmatmul.mubr.f32.gmra.mxu0 %v1129
        %v1131 = vpop.f32.mrf.mxu0
        %v1132 = vadd.f32 %v563, %v1131
        %v1133 = vpop.f32.mrf.mxu0
        %v1134 = vadd.f32 %v565, %v1133
        %v1135 = vand.u32 %v377, 4294901760
        %1136 = vmatprep.mubr.f32.mxu0 %v1135
        %v1137 = vand.u32 %v333, 4294901760
        %1138 = vmatmul.mubr.f32.gmra.mxu0 %v1137
        %v1139 = vpop.f32.mrf.mxu0
        %v1140 = vadd.f32 %v579, %v1139
        %v1141 = vpop.f32.mrf.mxu0
        %v1142 = vadd.f32 %v581, %v1141
        %v1143 = vand.u32 %v380, 4294901760
        %1144 = vmatprep.mubr.f32.mxu0 %v1143
        %v1145 = vand.u32 %v335, 4294901760
        %1146 = vmatmul.mubr.f32.gmra.mxu0 %v1145
        %v1147 = vpop.f32.mrf.mxu0
        %v1148 = vadd.f32 %v595, %v1147
        %v1149 = vpop.f32.mrf.mxu0
        %v1150 = vadd.f32 %v597, %v1149
        %v1151 = vand.u32 %v383, 4294901760
        %1152 = vmatprep.mubr.f32.mxu0 %v1151
        %v1153 = vand.u32 %v337, 4294901760
        %1154 = vmatmul.mubr.f32.gmra.mxu0 %v1153
        %v1155 = vpop.f32.mrf.mxu0
        %v1156 = vadd.f32 %v611, %v1155
        %v1157 = vpop.f32.mrf.mxu0
        %v1158 = vadd.f32 %v613, %v1157
        %v1159 = vand.u32 %v386, 4294901760
        %1160 = vmatprep.mubr.f32.mxu0 %v1159
        %v1161 = vand.u32 %v339, 4294901760
        %1162 = vmatmul.mubr.f32.gmra.mxu0 %v1161
        %v1163 = vpop.f32.mrf.mxu0
        %v1164 = vadd.f32 %v627, %v1163
        %v1165 = vpop.f32.mrf.mxu0
        %v1166 = vadd.f32 %v629, %v1165
        %v1167 = vand.u32 %v389, 4294901760
        %1168 = vmatprep.mubr.f32.mxu0 %v1167
        %v1169 = vand.u32 %v341, 4294901760
        %1170 = vmatmul.mubr.f32.gmra.mxu0 %v1169
        %v1171 = vpop.f32.mrf.mxu0
        %v1172 = vadd.f32 %v643, %v1171
        %v1173 = vpop.f32.mrf.mxu0
        %v1174 = vadd.f32 %v645, %v1173
        %v1175 = vand.u32 %v392, 4294901760
        %1176 = vmatprep.mubr.f32.mxu0 %v1175
        %v1177 = vand.u32 %v343, 4294901760
        %1178 = vmatmul.mubr.f32.gmra.mxu0 %v1177
        %v1179 = vpop.f32.mrf.mxu0
        %v1180 = vadd.f32 %v659, %v1179
        %v1181 = vpop.f32.mrf.mxu0
        %v1182 = vadd.f32 %v661, %v1181
        %v1183 = vand.u32 %v395, 4294901760
        %1184 = vmatprep.mubr.f32.mxu0 %v1183
        %v1185 = vand.u32 %v345, 4294901760
        %1186 = vmatmul.mubr.f32.gmra.mxu0 %v1185
        %v1187 = vpop.f32.mrf.mxu0
        %v1188 = vadd.f32 %v675, %v1187
        %v1189 = vpop.f32.mrf.mxu0
        %v1190 = vadd.f32 %v677, %v1189
        %v1191 = vand.u32 %v398, 4294901760
        %1192 = vmatprep.mubr.f32.mxu0 %v1191
        %v1193 = vand.u32 %v347, 4294901760
        %1194 = vmatmul.mubr.f32.gmra.mxu0 %v1193
        %v1195 = vpop.f32.mrf.mxu0
        %v1196 = vadd.f32 %v691, %v1195
        %v1197 = vpop.f32.mrf.mxu0
        %v1198 = vadd.f32 %v693, %v1197
        %v1199 = vand.u32 %v401, 4294901760
        %1200 = vmatprep.mubr.f32.mxu0 %v1199
        %v1201 = vand.u32 %v349, 4294901760
        %1202 = vmatmul.mubr.f32.gmra.mxu0 %v1201
        %v1203 = vpop.f32.mrf.mxu0
        %v1204 = vadd.f32 %v707, %v1203
        %v1205 = vpop.f32.mrf.mxu0
        %v1206 = vadd.f32 %v709, %v1205
        %v1207 = vand.u32 %v404, 4294901760
        %1208 = vmatprep.mubr.f32.mxu0 %v1207
        %v1209 = vand.u32 %v351, 4294901760
        %1210 = vmatmul.mubr.f32.gmra.mxu0 %v1209
        %v1211 = vpop.f32.mrf.mxu0
        %v1212 = vadd.f32 %v723, %v1211
        %v1213 = vpop.f32.mrf.mxu0
        %v1214 = vadd.f32 %v725, %v1213
        %v1215 = vand.u32 %v407, 4294901760
        %1216 = vmatprep.mubr.f32.mxu0 %v1215
        %v1217 = vand.u32 %v353, 4294901760
        %1218 = vmatmul.mubr.f32.gmra.mxu0 %v1217
        %v1219 = vpop.f32.mrf.mxu0
        %v1220 = vadd.f32 %v739, %v1219
        %v1221 = vpop.f32.mrf.mxu0
        %v1222 = vadd.f32 %v741, %v1221
        %v1223 = vand.u32 %v410, 4294901760
        %1224 = vmatprep.mubr.f32.mxu0 %v1223
        %v1225 = vand.u32 %v355, 4294901760
        %1226 = vmatmul.mubr.f32.gmra.mxu0 %v1225
        %v1227 = vpop.f32.mrf.mxu0
        %v1228 = vadd.f32 %v755, %v1227
        %v1229 = vpop.f32.mrf.mxu0
        %v1230 = vadd.f32 %v757, %v1229
        %v1231 = vand.u32 %v413, 4294901760
        %1232 = vmatprep.mubr.f32.mxu0 %v1231
        %v1233 = vand.u32 %v357, 4294901760
        %1234 = vmatmul.mubr.f32.gmra.mxu0 %v1233
        %v1235 = vpop.f32.mrf.mxu0
        %v1236 = vadd.f32 %v771, %v1235
        %v1237 = vpop.f32.mrf.mxu0
        %v1238 = vadd.f32 %v773, %v1237
        %v1239 = vand.u32 %v416, 4294901760
        %1240 = vmatprep.mubr.f32.mxu0 %v1239
        %v1241 = vand.u32 %v359, 4294901760
        %1242 = vmatmul.mubr.f32.gmra.mxu0 %v1241
        %v1243 = vpop.f32.mrf.mxu0
        %v1244 = vadd.f32 %v787, %v1243
        %v1245 = vpop.f32.mrf.mxu0
        %v1246 = vadd.f32 %v789, %v1245
        %v1247 = vand.u32 %v419, 4294901760
        %1248 = vmatprep.mubr.f32.mxu0 %v1247
        %v1249 = vand.u32 %v361, 4294901760
        %1250 = vmatmul.mubr.f32.gmra.mxu0 %v1249
        %v1251 = vpop.f32.mrf.mxu0
        %v1252 = vadd.f32 %v803, %v1251
        %v1253 = vpop.f32.mrf.mxu0
        %v1254 = vadd.f32 %v805, %v1253
        %v1255 = vand.u32 %v422, 4294901760
        %1256 = vmatprep.mubr.f32.mxu0 %v1255
        %v1257 = vand.u32 %v363, 4294901760
        %1258 = vmatmul.mubr.f32.gmra.mxu0 %v1257
        %v1259 = vpop.f32.mrf.mxu0
        %v1260 = vadd.f32 %v819, %v1259
        %v1261 = vpop.f32.mrf.mxu0
        %v1262 = vadd.f32 %v821, %v1261
        %v1263 = vand.u32 %v425, 4294901760
        %1264 = vmatprep.mubr.f32.mxu0 %v1263
        %v1265 = vand.u32 %v365, 4294901760
        %1266 = vmatmul.mubr.f32.gmra.mxu0 %v1265
        %v1267 = vpop.f32.mrf.mxu0
        %v1268 = vadd.f32 %v835, %v1267
        %v1269 = vpop.f32.mrf.mxu0
        %v1270 = vadd.f32 %v837, %v1269
        %v1271 = vand.u32 %v428, 4294901760
        %1272 = vmatprep.mubr.f32.mxu0 %v1271
        %v1273 = vand.u32 %v367, 4294901760
        %1274 = vmatmul.mubr.f32.gmra.mxu0 %v1273
        %v1275 = vpop.f32.mrf.mxu0
        %v1276 = vadd.f32 %v851, %v1275
        %v1277 = vpop.f32.mrf.mxu0
        %v1278 = vadd.f32 %v853, %v1277
        %1279 = vdwg.mxu0
        %v1280 = vand.u32 %v320, 4294901760
        %v1281 = vsub.f32 %v320, %v1280
        %1282 = vmatprep.subr.mxu0 %v1281
        %v1283 = vand.u32 %v319, 4294901760
        %v1284 = vsub.f32 %v319, %v1283
        %1285 = vmatpush1.msra.mxu0 %v1284
        %v1286 = vand.u32 %v318, 4294901760
        %v1287 = vsub.f32 %v318, %v1286
        %1288 = vmatprep.subr.mxu0 %v1287
        %v1289 = vand.u32 %v317, 4294901760
        %v1290 = vsub.f32 %v317, %v1289
        %1291 = vmatpush1.msra.mxu0 %v1290
        %v1292 = vand.u32 %v316, 4294901760
        %v1293 = vsub.f32 %v316, %v1292
        %1294 = vmatprep.subr.mxu0 %v1293
        %v1295 = vand.u32 %v315, 4294901760
        %v1296 = vsub.f32 %v315, %v1295
        %1297 = vmatpush1.msra.mxu0 %v1296
        %v1298 = vand.u32 %v314, 4294901760
        %v1299 = vsub.f32 %v314, %v1298
        %1300 = vmatprep.subr.mxu0 %v1299
        %v1301 = vand.u32 %v313, 4294901760
        %v1302 = vsub.f32 %v313, %v1301
        %1303 = vmatpush1.msra.mxu0 %v1302
        %v1304 = vand.u32 %v312, 4294901760
        %v1305 = vsub.f32 %v312, %v1304
        %1306 = vmatprep.subr.mxu0 %v1305
        %v1307 = vand.u32 %v311, 4294901760
        %v1308 = vsub.f32 %v311, %v1307
        %1309 = vmatpush1.msra.mxu0 %v1308
        %v1310 = vand.u32 %v310, 4294901760
        %v1311 = vsub.f32 %v310, %v1310
        %1312 = vmatprep.subr.mxu0 %v1311
        %v1313 = vand.u32 %v309, 4294901760
        %v1314 = vsub.f32 %v309, %v1313
        %1315 = vmatpush1.msra.mxu0 %v1314
        %v1316 = vand.u32 %v308, 4294901760
        %v1317 = vsub.f32 %v308, %v1316
        %1318 = vmatprep.subr.mxu0 %v1317
        %v1319 = vand.u32 %v307, 4294901760
        %v1320 = vsub.f32 %v307, %v1319
        %1321 = vmatpush1.msra.mxu0 %v1320
        %v1322 = vand.u32 %v306, 4294901760
        %v1323 = vsub.f32 %v306, %v1322
        %1324 = vmatprep.subr.mxu0 %v1323
        %v1325 = vand.u32 %v305, 4294901760
        %v1326 = vsub.f32 %v305, %v1325
        %1327 = vmatpush1.msra.mxu0 %v1326
        %v1328 = vand.u32 %v304, 4294901760
        %v1329 = vsub.f32 %v304, %v1328
        %1330 = vmatprep.subr.mxu0 %v1329
        %v1331 = vand.u32 %v303, 4294901760
        %v1332 = vsub.f32 %v303, %v1331
        %1333 = vmatpush1.msra.mxu0 %v1332
        %v1334 = vand.u32 %v302, 4294901760
        %v1335 = vsub.f32 %v302, %v1334
        %1336 = vmatprep.subr.mxu0 %v1335
        %v1337 = vand.u32 %v301, 4294901760
        %v1338 = vsub.f32 %v301, %v1337
        %1339 = vmatpush1.msra.mxu0 %v1338
        %v1340 = vand.u32 %v300, 4294901760
        %v1341 = vsub.f32 %v300, %v1340
        %1342 = vmatprep.subr.mxu0 %v1341
        %v1343 = vand.u32 %v299, 4294901760
        %v1344 = vsub.f32 %v299, %v1343
        %1345 = vmatpush1.msra.mxu0 %v1344
        %v1346 = vand.u32 %v298, 4294901760
        %v1347 = vsub.f32 %v298, %v1346
        %1348 = vmatprep.subr.mxu0 %v1347
        %v1349 = vand.u32 %v297, 4294901760
        %v1350 = vsub.f32 %v297, %v1349
        %1351 = vmatpush1.msra.mxu0 %v1350
        %v1352 = vand.u32 %v296, 4294901760
        %v1353 = vsub.f32 %v296, %v1352
        %1354 = vmatprep.subr.mxu0 %v1353
        %v1355 = vand.u32 %v295, 4294901760
        %v1356 = vsub.f32 %v295, %v1355
        %1357 = vmatpush1.msra.mxu0 %v1356
        %v1358 = vand.u32 %v294, 4294901760
        %v1359 = vsub.f32 %v294, %v1358
        %1360 = vmatprep.subr.mxu0 %v1359
        %v1361 = vand.u32 %v293, 4294901760
        %v1362 = vsub.f32 %v293, %v1361
        %1363 = vmatpush1.msra.mxu0 %v1362
        %v1364 = vand.u32 %v292, 4294901760
        %v1365 = vsub.f32 %v292, %v1364
        %1366 = vmatprep.subr.mxu0 %v1365
        %v1367 = vand.u32 %v291, 4294901760
        %v1368 = vsub.f32 %v291, %v1367
        %1369 = vmatpush1.msra.mxu0 %v1368
        %v1370 = vand.u32 %v290, 4294901760
        %v1371 = vsub.f32 %v290, %v1370
        %1372 = vmatprep.subr.mxu0 %v1371
        %v1373 = vand.u32 %v289, 4294901760
        %v1374 = vsub.f32 %v289, %v1373
        %1375 = vmatpush1.msra.mxu0 %v1374
        %1376 = vmatprep.subr.mxu0 0.0
        %1377 = vmatpush2.msra.mxu0 0.0
        %1378 = vmatprep.subr.mxu0 0.0
        %1379 = vmatpush2.msra.mxu0 0.0
        %1380 = vmatprep.subr.mxu0 0.0
        %1381 = vmatpush2.msra.mxu0 0.0
        %1382 = vmatprep.subr.mxu0 0.0
        %1383 = vmatpush2.msra.mxu0 0.0
        %1384 = vmatprep.subr.mxu0 0.0
        %1385 = vmatpush2.msra.mxu0 0.0
        %1386 = vmatprep.subr.mxu0 0.0
        %1387 = vmatpush2.msra.mxu0 0.0
        %1388 = vmatprep.subr.mxu0 0.0
        %1389 = vmatpush2.msra.mxu0 0.0
        %1390 = vmatprep.subr.mxu0 0.0
        %1391 = vmatpush2.msra.mxu0 0.0
        %1392 = vmatprep.subr.mxu0 0.0
        %1393 = vmatpush2.msra.mxu0 0.0
        %1394 = vmatprep.subr.mxu0 0.0
        %1395 = vmatpush2.msra.mxu0 0.0
        %1396 = vmatprep.subr.mxu0 0.0
        %1397 = vmatpush2.msra.mxu0 0.0
        %1398 = vmatprep.subr.mxu0 0.0
        %1399 = vmatpush2.msra.mxu0 0.0
        %v1400 = vand.u32 %v328, 4294901760
        %v1401 = vsub.f32 %v328, %v1400
        %1402 = vmatprep.subr.mxu0 %v1401
        %v1403 = vand.u32 %v327, 4294901760
        %v1404 = vsub.f32 %v327, %v1403
        %1405 = vmatpush2.msra.mxu0 %v1404
        %v1406 = vand.u32 %v326, 4294901760
        %v1407 = vsub.f32 %v326, %v1406
        %1408 = vmatprep.subr.mxu0 %v1407
        %v1409 = vand.u32 %v325, 4294901760
        %v1410 = vsub.f32 %v325, %v1409
        %1411 = vmatpush2.msra.mxu0 %v1410
        %v1412 = vand.u32 %v324, 4294901760
        %v1413 = vsub.f32 %v324, %v1412
        %1414 = vmatprep.subr.mxu0 %v1413
        %v1415 = vand.u32 %v323, 4294901760
        %v1416 = vsub.f32 %v323, %v1415
        %1417 = vmatpush2.msra.mxu0 %v1416
        %v1418 = vand.u32 %v322, 4294901760
        %v1419 = vsub.f32 %v322, %v1418
        %1420 = vmatprep.subr.mxu0 %v1419
        %v1421 = vand.u32 %v321, 4294901760
        %v1422 = vsub.f32 %v321, %v1421
        %1423 = vmatpush2.msra.mxu0 %v1422
        %v1424 = vand.u32 %v371, 4294901760
        %v1425 = vsub.f32 %v371, %v1424
        %1426 = vmatprep.mubr.f32.mxu0 %v1425
        %v1427 = vand.u32 %v329, 4294901760
        %v1428 = vsub.f32 %v329, %v1427
        %1429 = vmatmul.mubr.f32.gmra.mxu0 %v1428
        %v1430 = vpop.f32.mrf.mxu0
        %v1431 = vadd.f32 %v1124, %v1430
        %v1432 = vpop.f32.mrf.mxu0
        %v1433 = vadd.f32 %v1126, %v1432
        %v1434 = vand.u32 %v374, 4294901760
        %v1435 = vsub.f32 %v374, %v1434
        %1436 = vmatprep.mubr.f32.mxu0 %v1435
        %v1437 = vand.u32 %v331, 4294901760
        %v1438 = vsub.f32 %v331, %v1437
        %1439 = vmatmul.mubr.f32.gmra.mxu0 %v1438
        %v1440 = vpop.f32.mrf.mxu0
        %v1441 = vadd.f32 %v1132, %v1440
        %v1442 = vpop.f32.mrf.mxu0
        %v1443 = vadd.f32 %v1134, %v1442
        %v1444 = vand.u32 %v377, 4294901760
        %v1445 = vsub.f32 %v377, %v1444
        %1446 = vmatprep.mubr.f32.mxu0 %v1445
        %v1447 = vand.u32 %v333, 4294901760
        %v1448 = vsub.f32 %v333, %v1447
        %1449 = vmatmul.mubr.f32.gmra.mxu0 %v1448
        %v1450 = vpop.f32.mrf.mxu0
        %v1451 = vadd.f32 %v1140, %v1450
        %v1452 = vpop.f32.mrf.mxu0
        %v1453 = vadd.f32 %v1142, %v1452
        %v1454 = vand.u32 %v380, 4294901760
        %v1455 = vsub.f32 %v380, %v1454
        %1456 = vmatprep.mubr.f32.mxu0 %v1455
        %v1457 = vand.u32 %v335, 4294901760
        %v1458 = vsub.f32 %v335, %v1457
        %1459 = vmatmul.mubr.f32.gmra.mxu0 %v1458
        %v1460 = vpop.f32.mrf.mxu0
        %v1461 = vadd.f32 %v1148, %v1460
        %v1462 = vpop.f32.mrf.mxu0
        %v1463 = vadd.f32 %v1150, %v1462
        %v1464 = vand.u32 %v383, 4294901760
        %v1465 = vsub.f32 %v383, %v1464
        %1466 = vmatprep.mubr.f32.mxu0 %v1465
        %v1467 = vand.u32 %v337, 4294901760
        %v1468 = vsub.f32 %v337, %v1467
        %1469 = vmatmul.mubr.f32.gmra.mxu0 %v1468
        %v1470 = vpop.f32.mrf.mxu0
        %v1471 = vadd.f32 %v1156, %v1470
        %v1472 = vpop.f32.mrf.mxu0
        %v1473 = vadd.f32 %v1158, %v1472
        %v1474 = vand.u32 %v386, 4294901760
        %v1475 = vsub.f32 %v386, %v1474
        %1476 = vmatprep.mubr.f32.mxu0 %v1475
        %v1477 = vand.u32 %v339, 4294901760
        %v1478 = vsub.f32 %v339, %v1477
        %1479 = vmatmul.mubr.f32.gmra.mxu0 %v1478
        %v1480 = vpop.f32.mrf.mxu0
        %v1481 = vadd.f32 %v1164, %v1480
        %v1482 = vpop.f32.mrf.mxu0
        %v1483 = vadd.f32 %v1166, %v1482
        %v1484 = vand.u32 %v389, 4294901760
        %v1485 = vsub.f32 %v389, %v1484
        %1486 = vmatprep.mubr.f32.mxu0 %v1485
        %v1487 = vand.u32 %v341, 4294901760
        %v1488 = vsub.f32 %v341, %v1487
        %1489 = vmatmul.mubr.f32.gmra.mxu0 %v1488
        %v1490 = vpop.f32.mrf.mxu0
        %v1491 = vadd.f32 %v1172, %v1490
        %v1492 = vpop.f32.mrf.mxu0
        %v1493 = vadd.f32 %v1174, %v1492
        %v1494 = vand.u32 %v392, 4294901760
        %v1495 = vsub.f32 %v392, %v1494
        %1496 = vmatprep.mubr.f32.mxu0 %v1495
        %v1497 = vand.u32 %v343, 4294901760
        %v1498 = vsub.f32 %v343, %v1497
        %1499 = vmatmul.mubr.f32.gmra.mxu0 %v1498
        %v1500 = vpop.f32.mrf.mxu0
        %v1501 = vadd.f32 %v1180, %v1500
        %v1502 = vpop.f32.mrf.mxu0
        %v1503 = vadd.f32 %v1182, %v1502
        %v1504 = vand.u32 %v395, 4294901760
        %v1505 = vsub.f32 %v395, %v1504
        %1506 = vmatprep.mubr.f32.mxu0 %v1505
        %v1507 = vand.u32 %v345, 4294901760
        %v1508 = vsub.f32 %v345, %v1507
        %1509 = vmatmul.mubr.f32.gmra.mxu0 %v1508
        %v1510 = vpop.f32.mrf.mxu0
        %v1511 = vadd.f32 %v1188, %v1510
        %v1512 = vpop.f32.mrf.mxu0
        %v1513 = vadd.f32 %v1190, %v1512
        %v1514 = vand.u32 %v398, 4294901760
        %v1515 = vsub.f32 %v398, %v1514
        %1516 = vmatprep.mubr.f32.mxu0 %v1515
        %v1517 = vand.u32 %v347, 4294901760
        %v1518 = vsub.f32 %v347, %v1517
        %1519 = vmatmul.mubr.f32.gmra.mxu0 %v1518
        %v1520 = vpop.f32.mrf.mxu0
        %v1521 = vadd.f32 %v1196, %v1520
        %v1522 = vpop.f32.mrf.mxu0
        %v1523 = vadd.f32 %v1198, %v1522
        %v1524 = vand.u32 %v401, 4294901760
        %v1525 = vsub.f32 %v401, %v1524
        %1526 = vmatprep.mubr.f32.mxu0 %v1525
        %v1527 = vand.u32 %v349, 4294901760
        %v1528 = vsub.f32 %v349, %v1527
        %1529 = vmatmul.mubr.f32.gmra.mxu0 %v1528
        %v1530 = vpop.f32.mrf.mxu0
        %v1531 = vadd.f32 %v1204, %v1530
        %v1532 = vpop.f32.mrf.mxu0
        %v1533 = vadd.f32 %v1206, %v1532
        %v1534 = vand.u32 %v404, 4294901760
        %v1535 = vsub.f32 %v404, %v1534
        %1536 = vmatprep.mubr.f32.mxu0 %v1535
        %v1537 = vand.u32 %v351, 4294901760
        %v1538 = vsub.f32 %v351, %v1537
        %1539 = vmatmul.mubr.f32.gmra.mxu0 %v1538
        %v1540 = vpop.f32.mrf.mxu0
        %v1541 = vadd.f32 %v1212, %v1540
        %v1542 = vpop.f32.mrf.mxu0
        %v1543 = vadd.f32 %v1214, %v1542
        %v1544 = vand.u32 %v407, 4294901760
        %v1545 = vsub.f32 %v407, %v1544
        %1546 = vmatprep.mubr.f32.mxu0 %v1545
        %v1547 = vand.u32 %v353, 4294901760
        %v1548 = vsub.f32 %v353, %v1547
        %1549 = vmatmul.mubr.f32.gmra.mxu0 %v1548
        %v1550 = vpop.f32.mrf.mxu0
        %v1551 = vadd.f32 %v1220, %v1550
        %v1552 = vpop.f32.mrf.mxu0
        %v1553 = vadd.f32 %v1222, %v1552
        %v1554 = vand.u32 %v410, 4294901760
        %v1555 = vsub.f32 %v410, %v1554
        %1556 = vmatprep.mubr.f32.mxu0 %v1555
        %v1557 = vand.u32 %v355, 4294901760
        %v1558 = vsub.f32 %v355, %v1557
        %1559 = vmatmul.mubr.f32.gmra.mxu0 %v1558
        %v1560 = vpop.f32.mrf.mxu0
        %v1561 = vadd.f32 %v1228, %v1560
        %v1562 = vpop.f32.mrf.mxu0
        %v1563 = vadd.f32 %v1230, %v1562
        %v1564 = vand.u32 %v413, 4294901760
        %v1565 = vsub.f32 %v413, %v1564
        %1566 = vmatprep.mubr.f32.mxu0 %v1565
        %v1567 = vand.u32 %v357, 4294901760
        %v1568 = vsub.f32 %v357, %v1567
        %1569 = vmatmul.mubr.f32.gmra.mxu0 %v1568
        %v1570 = vpop.f32.mrf.mxu0
        %v1571 = vadd.f32 %v1236, %v1570
        %v1572 = vpop.f32.mrf.mxu0
        %v1573 = vadd.f32 %v1238, %v1572
        %v1574 = vand.u32 %v416, 4294901760
        %v1575 = vsub.f32 %v416, %v1574
        %1576 = vmatprep.mubr.f32.mxu0 %v1575
        %v1577 = vand.u32 %v359, 4294901760
        %v1578 = vsub.f32 %v359, %v1577
        %1579 = vmatmul.mubr.f32.gmra.mxu0 %v1578
        %v1580 = vpop.f32.mrf.mxu0
        %v1581 = vadd.f32 %v1244, %v1580
        %v1582 = vpop.f32.mrf.mxu0
        %v1583 = vadd.f32 %v1246, %v1582
        %v1584 = vand.u32 %v419, 4294901760
        %v1585 = vsub.f32 %v419, %v1584
        %1586 = vmatprep.mubr.f32.mxu0 %v1585
        %v1587 = vand.u32 %v361, 4294901760
        %v1588 = vsub.f32 %v361, %v1587
        %1589 = vmatmul.mubr.f32.gmra.mxu0 %v1588
        %v1590 = vpop.f32.mrf.mxu0
        %v1591 = vadd.f32 %v1252, %v1590
        %v1592 = vpop.f32.mrf.mxu0
        %v1593 = vadd.f32 %v1254, %v1592
        %v1594 = vand.u32 %v422, 4294901760
        %v1595 = vsub.f32 %v422, %v1594
        %1596 = vmatprep.mubr.f32.mxu0 %v1595
        %v1597 = vand.u32 %v363, 4294901760
        %v1598 = vsub.f32 %v363, %v1597
        %1599 = vmatmul.mubr.f32.gmra.mxu0 %v1598
        %v1600 = vpop.f32.mrf.mxu0
        %v1601 = vadd.f32 %v1260, %v1600
        %v1602 = vpop.f32.mrf.mxu0
        %v1603 = vadd.f32 %v1262, %v1602
        %v1604 = vand.u32 %v425, 4294901760
        %v1605 = vsub.f32 %v425, %v1604
        %1606 = vmatprep.mubr.f32.mxu0 %v1605
        %v1607 = vand.u32 %v365, 4294901760
        %v1608 = vsub.f32 %v365, %v1607
        %1609 = vmatmul.mubr.f32.gmra.mxu0 %v1608
        %v1610 = vpop.f32.mrf.mxu0
        %v1611 = vadd.f32 %v1268, %v1610
        %v1612 = vpop.f32.mrf.mxu0
        %v1613 = vadd.f32 %v1270, %v1612
        %v1614 = vand.u32 %v428, 4294901760
        %v1615 = vsub.f32 %v428, %v1614
        %1616 = vmatprep.mubr.f32.mxu0 %v1615
        %v1617 = vand.u32 %v367, 4294901760
        %v1618 = vsub.f32 %v367, %v1617
        %1619 = vmatmul.mubr.f32.gmra.mxu0 %v1618
        %v1620 = vpop.f32.mrf.mxu0
        %v1621 = vadd.f32 %v1276, %v1620
        %v1622 = vpop.f32.mrf.mxu0
        %v1623 = vadd.f32 %v1278, %v1622
        %1624 = vdwg.mxu0
        %v1625 = vand.u32 %v320, 4294901760
        %1626 = vmatprep.subr.mxu0 %v1625
        %v1627 = vand.u32 %v319, 4294901760
        %1628 = vmatpush1.msra.mxu0 %v1627
        %v1629 = vand.u32 %v318, 4294901760
        %1630 = vmatprep.subr.mxu0 %v1629
        %v1631 = vand.u32 %v317, 4294901760
        %1632 = vmatpush1.msra.mxu0 %v1631
        %v1633 = vand.u32 %v316, 4294901760
        %1634 = vmatprep.subr.mxu0 %v1633
        %v1635 = vand.u32 %v315, 4294901760
        %1636 = vmatpush1.msra.mxu0 %v1635
        %v1637 = vand.u32 %v314, 4294901760
        %1638 = vmatprep.subr.mxu0 %v1637
        %v1639 = vand.u32 %v313, 4294901760
        %1640 = vmatpush1.msra.mxu0 %v1639
        %v1641 = vand.u32 %v312, 4294901760
        %1642 = vmatprep.subr.mxu0 %v1641
        %v1643 = vand.u32 %v311, 4294901760
        %1644 = vmatpush1.msra.mxu0 %v1643
        %v1645 = vand.u32 %v310, 4294901760
        %1646 = vmatprep.subr.mxu0 %v1645
        %v1647 = vand.u32 %v309, 4294901760
        %1648 = vmatpush1.msra.mxu0 %v1647
        %v1649 = vand.u32 %v308, 4294901760
        %1650 = vmatprep.subr.mxu0 %v1649
        %v1651 = vand.u32 %v307, 4294901760
        %1652 = vmatpush1.msra.mxu0 %v1651
        %v1653 = vand.u32 %v306, 4294901760
        %1654 = vmatprep.subr.mxu0 %v1653
        %v1655 = vand.u32 %v305, 4294901760
        %1656 = vmatpush1.msra.mxu0 %v1655
        %v1657 = vand.u32 %v304, 4294901760
        %1658 = vmatprep.subr.mxu0 %v1657
        %v1659 = vand.u32 %v303, 4294901760
        %1660 = vmatpush1.msra.mxu0 %v1659
        %v1661 = vand.u32 %v302, 4294901760
        %1662 = vmatprep.subr.mxu0 %v1661
        %v1663 = vand.u32 %v301, 4294901760
        %1664 = vmatpush1.msra.mxu0 %v1663
        %v1665 = vand.u32 %v300, 4294901760
        %1666 = vmatprep.subr.mxu0 %v1665
        %v1667 = vand.u32 %v299, 4294901760
        %1668 = vmatpush1.msra.mxu0 %v1667
        %v1669 = vand.u32 %v298, 4294901760
        %1670 = vmatprep.subr.mxu0 %v1669
        %v1671 = vand.u32 %v297, 4294901760
        %1672 = vmatpush1.msra.mxu0 %v1671
        %v1673 = vand.u32 %v296, 4294901760
        %1674 = vmatprep.subr.mxu0 %v1673
        %v1675 = vand.u32 %v295, 4294901760
        %1676 = vmatpush1.msra.mxu0 %v1675
        %v1677 = vand.u32 %v294, 4294901760
        %1678 = vmatprep.subr.mxu0 %v1677
        %v1679 = vand.u32 %v293, 4294901760
        %1680 = vmatpush1.msra.mxu0 %v1679
        %v1681 = vand.u32 %v292, 4294901760
        %1682 = vmatprep.subr.mxu0 %v1681
        %v1683 = vand.u32 %v291, 4294901760
        %1684 = vmatpush1.msra.mxu0 %v1683
        %v1685 = vand.u32 %v290, 4294901760
        %1686 = vmatprep.subr.mxu0 %v1685
        %v1687 = vand.u32 %v289, 4294901760
        %1688 = vmatpush1.msra.mxu0 %v1687
        %1689 = vmatprep.subr.mxu0 0.0
        %1690 = vmatpush2.msra.mxu0 0.0
        %1691 = vmatprep.subr.mxu0 0.0
        %1692 = vmatpush2.msra.mxu0 0.0
        %1693 = vmatprep.subr.mxu0 0.0
        %1694 = vmatpush2.msra.mxu0 0.0
        %1695 = vmatprep.subr.mxu0 0.0
        %1696 = vmatpush2.msra.mxu0 0.0
        %1697 = vmatprep.subr.mxu0 0.0
        %1698 = vmatpush2.msra.mxu0 0.0
        %1699 = vmatprep.subr.mxu0 0.0
        %1700 = vmatpush2.msra.mxu0 0.0
        %1701 = vmatprep.subr.mxu0 0.0
        %1702 = vmatpush2.msra.mxu0 0.0
        %1703 = vmatprep.subr.mxu0 0.0
        %1704 = vmatpush2.msra.mxu0 0.0
        %1705 = vmatprep.subr.mxu0 0.0
        %1706 = vmatpush2.msra.mxu0 0.0
        %1707 = vmatprep.subr.mxu0 0.0
        %1708 = vmatpush2.msra.mxu0 0.0
        %1709 = vmatprep.subr.mxu0 0.0
        %1710 = vmatpush2.msra.mxu0 0.0
        %1711 = vmatprep.subr.mxu0 0.0
        %1712 = vmatpush2.msra.mxu0 0.0
        %v1713 = vand.u32 %v328, 4294901760
        %1714 = vmatprep.subr.mxu0 %v1713
        %v1715 = vand.u32 %v327, 4294901760
        %1716 = vmatpush2.msra.mxu0 %v1715
        %v1717 = vand.u32 %v326, 4294901760
        %1718 = vmatprep.subr.mxu0 %v1717
        %v1719 = vand.u32 %v325, 4294901760
        %1720 = vmatpush2.msra.mxu0 %v1719
        %v1721 = vand.u32 %v324, 4294901760
        %1722 = vmatprep.subr.mxu0 %v1721
        %v1723 = vand.u32 %v323, 4294901760
        %1724 = vmatpush2.msra.mxu0 %v1723
        %v1725 = vand.u32 %v322, 4294901760
        %1726 = vmatprep.subr.mxu0 %v1725
        %v1727 = vand.u32 %v321, 4294901760
        %1728 = vmatpush2.msra.mxu0 %v1727
        %v1729 = vand.u32 %v371, 4294901760
        %v1730 = vsub.f32 %v371, %v1729
        %v1731 = vand.u32 %v1730, 4294901760
        %1732 = vmatprep.mubr.f32.mxu0 %v1731
        %v1733 = vand.u32 %v329, 4294901760
        %v1734 = vsub.f32 %v329, %v1733
        %v1735 = vand.u32 %v1734, 4294901760
        %1736 = vmatmul.mubr.f32.gmra.mxu0 %v1735
        %v1737 = vpop.f32.mrf.mxu0
        %v1738 = vadd.f32 %v1431, %v1737
        %v1739 = vpop.f32.mrf.mxu0
        %v1740 = vadd.f32 %v1433, %v1739
        %v1741 = vand.u32 %v374, 4294901760
        %v1742 = vsub.f32 %v374, %v1741
        %v1743 = vand.u32 %v1742, 4294901760
        %1744 = vmatprep.mubr.f32.mxu0 %v1743
        %v1745 = vand.u32 %v331, 4294901760
        %v1746 = vsub.f32 %v331, %v1745
        %v1747 = vand.u32 %v1746, 4294901760
        %1748 = vmatmul.mubr.f32.gmra.mxu0 %v1747
        %v1749 = vpop.f32.mrf.mxu0
        %v1750 = vadd.f32 %v1441, %v1749
        %v1751 = vpop.f32.mrf.mxu0
        %v1752 = vadd.f32 %v1443, %v1751
        %v1753 = vand.u32 %v377, 4294901760
        %v1754 = vsub.f32 %v377, %v1753
        %v1755 = vand.u32 %v1754, 4294901760
        %1756 = vmatprep.mubr.f32.mxu0 %v1755
        %v1757 = vand.u32 %v333, 4294901760
        %v1758 = vsub.f32 %v333, %v1757
        %v1759 = vand.u32 %v1758, 4294901760
        %1760 = vmatmul.mubr.f32.gmra.mxu0 %v1759
        %v1761 = vpop.f32.mrf.mxu0
        %v1762 = vadd.f32 %v1451, %v1761
        %v1763 = vpop.f32.mrf.mxu0
        %v1764 = vadd.f32 %v1453, %v1763
        %v1765 = vand.u32 %v380, 4294901760
        %v1766 = vsub.f32 %v380, %v1765
        %v1767 = vand.u32 %v1766, 4294901760
        %1768 = vmatprep.mubr.f32.mxu0 %v1767
        %v1769 = vand.u32 %v335, 4294901760
        %v1770 = vsub.f32 %v335, %v1769
        %v1771 = vand.u32 %v1770, 4294901760
        %1772 = vmatmul.mubr.f32.gmra.mxu0 %v1771
        %v1773 = vpop.f32.mrf.mxu0
        %v1774 = vadd.f32 %v1461, %v1773
        %v1775 = vpop.f32.mrf.mxu0
        %v1776 = vadd.f32 %v1463, %v1775
        %v1777 = vand.u32 %v383, 4294901760
        %v1778 = vsub.f32 %v383, %v1777
        %v1779 = vand.u32 %v1778, 4294901760
        %1780 = vmatprep.mubr.f32.mxu0 %v1779
        %v1781 = vand.u32 %v337, 4294901760
        %v1782 = vsub.f32 %v337, %v1781
        %v1783 = vand.u32 %v1782, 4294901760
        %1784 = vmatmul.mubr.f32.gmra.mxu0 %v1783
        %v1785 = vpop.f32.mrf.mxu0
        %v1786 = vadd.f32 %v1471, %v1785
        %v1787 = vpop.f32.mrf.mxu0
        %v1788 = vadd.f32 %v1473, %v1787
        %v1789 = vand.u32 %v386, 4294901760
        %v1790 = vsub.f32 %v386, %v1789
        %v1791 = vand.u32 %v1790, 4294901760
        %1792 = vmatprep.mubr.f32.mxu0 %v1791
        %v1793 = vand.u32 %v339, 4294901760
        %v1794 = vsub.f32 %v339, %v1793
        %v1795 = vand.u32 %v1794, 4294901760
        %1796 = vmatmul.mubr.f32.gmra.mxu0 %v1795
        %v1797 = vpop.f32.mrf.mxu0
        %v1798 = vadd.f32 %v1481, %v1797
        %v1799 = vpop.f32.mrf.mxu0
        %v1800 = vadd.f32 %v1483, %v1799
        %v1801 = vand.u32 %v389, 4294901760
        %v1802 = vsub.f32 %v389, %v1801
        %v1803 = vand.u32 %v1802, 4294901760
        %1804 = vmatprep.mubr.f32.mxu0 %v1803
        %v1805 = vand.u32 %v341, 4294901760
        %v1806 = vsub.f32 %v341, %v1805
        %v1807 = vand.u32 %v1806, 4294901760
        %1808 = vmatmul.mubr.f32.gmra.mxu0 %v1807
        %v1809 = vpop.f32.mrf.mxu0
        %v1810 = vadd.f32 %v1491, %v1809
        %v1811 = vpop.f32.mrf.mxu0
        %v1812 = vadd.f32 %v1493, %v1811
        %v1813 = vand.u32 %v392, 4294901760
        %v1814 = vsub.f32 %v392, %v1813
        %v1815 = vand.u32 %v1814, 4294901760
        %1816 = vmatprep.mubr.f32.mxu0 %v1815
        %v1817 = vand.u32 %v343, 4294901760
        %v1818 = vsub.f32 %v343, %v1817
        %v1819 = vand.u32 %v1818, 4294901760
        %1820 = vmatmul.mubr.f32.gmra.mxu0 %v1819
        %v1821 = vpop.f32.mrf.mxu0
        %v1822 = vadd.f32 %v1501, %v1821
        %v1823 = vpop.f32.mrf.mxu0
        %v1824 = vadd.f32 %v1503, %v1823
        %v1825 = vand.u32 %v395, 4294901760
        %v1826 = vsub.f32 %v395, %v1825
        %v1827 = vand.u32 %v1826, 4294901760
        %1828 = vmatprep.mubr.f32.mxu0 %v1827
        %v1829 = vand.u32 %v345, 4294901760
        %v1830 = vsub.f32 %v345, %v1829
        %v1831 = vand.u32 %v1830, 4294901760
        %1832 = vmatmul.mubr.f32.gmra.mxu0 %v1831
        %v1833 = vpop.f32.mrf.mxu0
        %v1834 = vadd.f32 %v1511, %v1833
        %v1835 = vpop.f32.mrf.mxu0
        %v1836 = vadd.f32 %v1513, %v1835
        %v1837 = vand.u32 %v398, 4294901760
        %v1838 = vsub.f32 %v398, %v1837
        %v1839 = vand.u32 %v1838, 4294901760
        %1840 = vmatprep.mubr.f32.mxu0 %v1839
        %v1841 = vand.u32 %v347, 4294901760
        %v1842 = vsub.f32 %v347, %v1841
        %v1843 = vand.u32 %v1842, 4294901760
        %1844 = vmatmul.mubr.f32.gmra.mxu0 %v1843
        %v1845 = vpop.f32.mrf.mxu0
        %v1846 = vadd.f32 %v1521, %v1845
        %v1847 = vpop.f32.mrf.mxu0
        %v1848 = vadd.f32 %v1523, %v1847
        %v1849 = vand.u32 %v401, 4294901760
        %v1850 = vsub.f32 %v401, %v1849
        %v1851 = vand.u32 %v1850, 4294901760
        %1852 = vmatprep.mubr.f32.mxu0 %v1851
        %v1853 = vand.u32 %v349, 4294901760
        %v1854 = vsub.f32 %v349, %v1853
        %v1855 = vand.u32 %v1854, 4294901760
        %1856 = vmatmul.mubr.f32.gmra.mxu0 %v1855
        %v1857 = vpop.f32.mrf.mxu0
        %v1858 = vadd.f32 %v1531, %v1857
        %v1859 = vpop.f32.mrf.mxu0
        %v1860 = vadd.f32 %v1533, %v1859
        %v1861 = vand.u32 %v404, 4294901760
        %v1862 = vsub.f32 %v404, %v1861
        %v1863 = vand.u32 %v1862, 4294901760
        %1864 = vmatprep.mubr.f32.mxu0 %v1863
        %v1865 = vand.u32 %v351, 4294901760
        %v1866 = vsub.f32 %v351, %v1865
        %v1867 = vand.u32 %v1866, 4294901760
        %1868 = vmatmul.mubr.f32.gmra.mxu0 %v1867
        %v1869 = vpop.f32.mrf.mxu0
        %v1870 = vadd.f32 %v1541, %v1869
        %v1871 = vpop.f32.mrf.mxu0
        %v1872 = vadd.f32 %v1543, %v1871
        %v1873 = vand.u32 %v407, 4294901760
        %v1874 = vsub.f32 %v407, %v1873
        %v1875 = vand.u32 %v1874, 4294901760
        %1876 = vmatprep.mubr.f32.mxu0 %v1875
        %v1877 = vand.u32 %v353, 4294901760
        %v1878 = vsub.f32 %v353, %v1877
        %v1879 = vand.u32 %v1878, 4294901760
        %1880 = vmatmul.mubr.f32.gmra.mxu0 %v1879
        %v1881 = vpop.f32.mrf.mxu0
        %v1882 = vadd.f32 %v1551, %v1881
        %v1883 = vpop.f32.mrf.mxu0
        %v1884 = vadd.f32 %v1553, %v1883
        %v1885 = vand.u32 %v410, 4294901760
        %v1886 = vsub.f32 %v410, %v1885
        %v1887 = vand.u32 %v1886, 4294901760
        %1888 = vmatprep.mubr.f32.mxu0 %v1887
        %v1889 = vand.u32 %v355, 4294901760
        %v1890 = vsub.f32 %v355, %v1889
        %v1891 = vand.u32 %v1890, 4294901760
        %1892 = vmatmul.mubr.f32.gmra.mxu0 %v1891
        %v1893 = vpop.f32.mrf.mxu0
        %v1894 = vadd.f32 %v1561, %v1893
        %v1895 = vpop.f32.mrf.mxu0
        %v1896 = vadd.f32 %v1563, %v1895
        %v1897 = vand.u32 %v413, 4294901760
        %v1898 = vsub.f32 %v413, %v1897
        %v1899 = vand.u32 %v1898, 4294901760
        %1900 = vmatprep.mubr.f32.mxu0 %v1899
        %v1901 = vand.u32 %v357, 4294901760
        %v1902 = vsub.f32 %v357, %v1901
        %v1903 = vand.u32 %v1902, 4294901760
        %1904 = vmatmul.mubr.f32.gmra.mxu0 %v1903
        %v1905 = vpop.f32.mrf.mxu0
        %v1906 = vadd.f32 %v1571, %v1905
        %v1907 = vpop.f32.mrf.mxu0
        %v1908 = vadd.f32 %v1573, %v1907
        %v1909 = vand.u32 %v416, 4294901760
        %v1910 = vsub.f32 %v416, %v1909
        %v1911 = vand.u32 %v1910, 4294901760
        %1912 = vmatprep.mubr.f32.mxu0 %v1911
        %v1913 = vand.u32 %v359, 4294901760
        %v1914 = vsub.f32 %v359, %v1913
        %v1915 = vand.u32 %v1914, 4294901760
        %1916 = vmatmul.mubr.f32.gmra.mxu0 %v1915
        %v1917 = vpop.f32.mrf.mxu0
        %v1918 = vadd.f32 %v1581, %v1917
        %v1919 = vpop.f32.mrf.mxu0
        %v1920 = vadd.f32 %v1583, %v1919
        %v1921 = vand.u32 %v419, 4294901760
        %v1922 = vsub.f32 %v419, %v1921
        %v1923 = vand.u32 %v1922, 4294901760
        %1924 = vmatprep.mubr.f32.mxu0 %v1923
        %v1925 = vand.u32 %v361, 4294901760
        %v1926 = vsub.f32 %v361, %v1925
        %v1927 = vand.u32 %v1926, 4294901760
        %1928 = vmatmul.mubr.f32.gmra.mxu0 %v1927
        %v1929 = vpop.f32.mrf.mxu0
        %v1930 = vadd.f32 %v1591, %v1929
        %v1931 = vpop.f32.mrf.mxu0
        %v1932 = vadd.f32 %v1593, %v1931
        %v1933 = vand.u32 %v422, 4294901760
        %v1934 = vsub.f32 %v422, %v1933
        %v1935 = vand.u32 %v1934, 4294901760
        %1936 = vmatprep.mubr.f32.mxu0 %v1935
        %v1937 = vand.u32 %v363, 4294901760
        %v1938 = vsub.f32 %v363, %v1937
        %v1939 = vand.u32 %v1938, 4294901760
        %1940 = vmatmul.mubr.f32.gmra.mxu0 %v1939
        %v1941 = vpop.f32.mrf.mxu0
        %v1942 = vadd.f32 %v1601, %v1941
        %v1943 = vpop.f32.mrf.mxu0
        %v1944 = vadd.f32 %v1603, %v1943
        %v1945 = vand.u32 %v425, 4294901760
        %v1946 = vsub.f32 %v425, %v1945
        %v1947 = vand.u32 %v1946, 4294901760
        %1948 = vmatprep.mubr.f32.mxu0 %v1947
        %v1949 = vand.u32 %v365, 4294901760
        %v1950 = vsub.f32 %v365, %v1949
        %v1951 = vand.u32 %v1950, 4294901760
        %1952 = vmatmul.mubr.f32.gmra.mxu0 %v1951
        %v1953 = vpop.f32.mrf.mxu0
        %v1954 = vadd.f32 %v1611, %v1953
        %v1955 = vpop.f32.mrf.mxu0
        %v1956 = vadd.f32 %v1613, %v1955
        %v1957 = vand.u32 %v428, 4294901760
        %v1958 = vsub.f32 %v428, %v1957
        %v1959 = vand.u32 %v1958, 4294901760
        %1960 = vmatprep.mubr.f32.mxu0 %v1959
        %v1961 = vand.u32 %v367, 4294901760
        %v1962 = vsub.f32 %v367, %v1961
        %v1963 = vand.u32 %v1962, 4294901760
        %1964 = vmatmul.mubr.f32.gmra.mxu0 %v1963
        %v1965 = vpop.f32.mrf.mxu0
        %v1966 = vadd.f32 %v1621, %v1965
        %v1967 = vpop.f32.mrf.mxu0
        %v1968 = vadd.f32 %v1623, %v1967
        %1969 = vdwg.mxu0
        %v1970 = vand.u32 %v320, 4294901760
        %v1971 = vsub.f32 %v320, %v1970
        %v1972 = vand.u32 %v1971, 4294901760
        %1973 = vmatprep.subr.mxu0 %v1972
        %v1974 = vand.u32 %v319, 4294901760
        %v1975 = vsub.f32 %v319, %v1974
        %v1976 = vand.u32 %v1975, 4294901760
        %1977 = vmatpush1.msra.mxu0 %v1976
        %v1978 = vand.u32 %v318, 4294901760
        %v1979 = vsub.f32 %v318, %v1978
        %v1980 = vand.u32 %v1979, 4294901760
        %1981 = vmatprep.subr.mxu0 %v1980
        %v1982 = vand.u32 %v317, 4294901760
        %v1983 = vsub.f32 %v317, %v1982
        %v1984 = vand.u32 %v1983, 4294901760
        %1985 = vmatpush1.msra.mxu0 %v1984
        %v1986 = vand.u32 %v316, 4294901760
        %v1987 = vsub.f32 %v316, %v1986
        %v1988 = vand.u32 %v1987, 4294901760
        %1989 = vmatprep.subr.mxu0 %v1988
        %v1990 = vand.u32 %v315, 4294901760
        %v1991 = vsub.f32 %v315, %v1990
        %v1992 = vand.u32 %v1991, 4294901760
        %1993 = vmatpush1.msra.mxu0 %v1992
        %v1994 = vand.u32 %v314, 4294901760
        %v1995 = vsub.f32 %v314, %v1994
        %v1996 = vand.u32 %v1995, 4294901760
        %1997 = vmatprep.subr.mxu0 %v1996
        %v1998 = vand.u32 %v313, 4294901760
        %v1999 = vsub.f32 %v313, %v1998
        %v2000 = vand.u32 %v1999, 4294901760
        %2001 = vmatpush1.msra.mxu0 %v2000
        %v2002 = vand.u32 %v312, 4294901760
        %v2003 = vsub.f32 %v312, %v2002
        %v2004 = vand.u32 %v2003, 4294901760
        %2005 = vmatprep.subr.mxu0 %v2004
        %v2006 = vand.u32 %v311, 4294901760
        %v2007 = vsub.f32 %v311, %v2006
        %v2008 = vand.u32 %v2007, 4294901760
        %2009 = vmatpush1.msra.mxu0 %v2008
        %v2010 = vand.u32 %v310, 4294901760
        %v2011 = vsub.f32 %v310, %v2010
        %v2012 = vand.u32 %v2011, 4294901760
        %2013 = vmatprep.subr.mxu0 %v2012
        %v2014 = vand.u32 %v309, 4294901760
        %v2015 = vsub.f32 %v309, %v2014
        %v2016 = vand.u32 %v2015, 4294901760
        %2017 = vmatpush1.msra.mxu0 %v2016
        %v2018 = vand.u32 %v308, 4294901760
        %v2019 = vsub.f32 %v308, %v2018
        %v2020 = vand.u32 %v2019, 4294901760
        %2021 = vmatprep.subr.mxu0 %v2020
        %v2022 = vand.u32 %v307, 4294901760
        %v2023 = vsub.f32 %v307, %v2022
        %v2024 = vand.u32 %v2023, 4294901760
        %2025 = vmatpush1.msra.mxu0 %v2024
        %v2026 = vand.u32 %v306, 4294901760
        %v2027 = vsub.f32 %v306, %v2026
        %v2028 = vand.u32 %v2027, 4294901760
        %2029 = vmatprep.subr.mxu0 %v2028
        %v2030 = vand.u32 %v305, 4294901760
        %v2031 = vsub.f32 %v305, %v2030
        %v2032 = vand.u32 %v2031, 4294901760
        %2033 = vmatpush1.msra.mxu0 %v2032
        %v2034 = vand.u32 %v304, 4294901760
        %v2035 = vsub.f32 %v304, %v2034
        %v2036 = vand.u32 %v2035, 4294901760
        %2037 = vmatprep.subr.mxu0 %v2036
        %v2038 = vand.u32 %v303, 4294901760
        %v2039 = vsub.f32 %v303, %v2038
        %v2040 = vand.u32 %v2039, 4294901760
        %2041 = vmatpush1.msra.mxu0 %v2040
        %v2042 = vand.u32 %v302, 4294901760
        %v2043 = vsub.f32 %v302, %v2042
        %v2044 = vand.u32 %v2043, 4294901760
        %2045 = vmatprep.subr.mxu0 %v2044
        %v2046 = vand.u32 %v301, 4294901760
        %v2047 = vsub.f32 %v301, %v2046
        %v2048 = vand.u32 %v2047, 4294901760
        %2049 = vmatpush1.msra.mxu0 %v2048
        %v2050 = vand.u32 %v300, 4294901760
        %v2051 = vsub.f32 %v300, %v2050
        %v2052 = vand.u32 %v2051, 4294901760
        %2053 = vmatprep.subr.mxu0 %v2052
        %v2054 = vand.u32 %v299, 4294901760
        %v2055 = vsub.f32 %v299, %v2054
        %v2056 = vand.u32 %v2055, 4294901760
        %2057 = vmatpush1.msra.mxu0 %v2056
        %v2058 = vand.u32 %v298, 4294901760
        %v2059 = vsub.f32 %v298, %v2058
        %v2060 = vand.u32 %v2059, 4294901760
        %2061 = vmatprep.subr.mxu0 %v2060
        %v2062 = vand.u32 %v297, 4294901760
        %v2063 = vsub.f32 %v297, %v2062
        %v2064 = vand.u32 %v2063, 4294901760
        %2065 = vmatpush1.msra.mxu0 %v2064
        %v2066 = vand.u32 %v296, 4294901760
        %v2067 = vsub.f32 %v296, %v2066
        %v2068 = vand.u32 %v2067, 4294901760
        %2069 = vmatprep.subr.mxu0 %v2068
        %v2070 = vand.u32 %v295, 4294901760
        %v2071 = vsub.f32 %v295, %v2070
        %v2072 = vand.u32 %v2071, 4294901760
        %2073 = vmatpush1.msra.mxu0 %v2072
        %v2074 = vand.u32 %v294, 4294901760
        %v2075 = vsub.f32 %v294, %v2074
        %v2076 = vand.u32 %v2075, 4294901760
        %2077 = vmatprep.subr.mxu0 %v2076
        %v2078 = vand.u32 %v293, 4294901760
        %v2079 = vsub.f32 %v293, %v2078
        %v2080 = vand.u32 %v2079, 4294901760
        %2081 = vmatpush1.msra.mxu0 %v2080
        %v2082 = vand.u32 %v292, 4294901760
        %v2083 = vsub.f32 %v292, %v2082
        %v2084 = vand.u32 %v2083, 4294901760
        %2085 = vmatprep.subr.mxu0 %v2084
        %v2086 = vand.u32 %v291, 4294901760
        %v2087 = vsub.f32 %v291, %v2086
        %v2088 = vand.u32 %v2087, 4294901760
        %2089 = vmatpush1.msra.mxu0 %v2088
        %v2090 = vand.u32 %v290, 4294901760
        %v2091 = vsub.f32 %v290, %v2090
        %v2092 = vand.u32 %v2091, 4294901760
        %2093 = vmatprep.subr.mxu0 %v2092
        %v2094 = vand.u32 %v289, 4294901760
        %v2095 = vsub.f32 %v289, %v2094
        %v2096 = vand.u32 %v2095, 4294901760
        %2097 = vmatpush1.msra.mxu0 %v2096
        %2098 = vmatprep.subr.mxu0 0.0
        %2099 = vmatpush2.msra.mxu0 0.0
        %2100 = vmatprep.subr.mxu0 0.0
        %2101 = vmatpush2.msra.mxu0 0.0
        %2102 = vmatprep.subr.mxu0 0.0
        %2103 = vmatpush2.msra.mxu0 0.0
        %2104 = vmatprep.subr.mxu0 0.0
        %2105 = vmatpush2.msra.mxu0 0.0
        %2106 = vmatprep.subr.mxu0 0.0
        %2107 = vmatpush2.msra.mxu0 0.0
        %2108 = vmatprep.subr.mxu0 0.0
        %2109 = vmatpush2.msra.mxu0 0.0
        %2110 = vmatprep.subr.mxu0 0.0
        %2111 = vmatpush2.msra.mxu0 0.0
        %2112 = vmatprep.subr.mxu0 0.0
        %2113 = vmatpush2.msra.mxu0 0.0
        %2114 = vmatprep.subr.mxu0 0.0
        %2115 = vmatpush2.msra.mxu0 0.0
        %2116 = vmatprep.subr.mxu0 0.0
        %2117 = vmatpush2.msra.mxu0 0.0
        %2118 = vmatprep.subr.mxu0 0.0
        %2119 = vmatpush2.msra.mxu0 0.0
        %2120 = vmatprep.subr.mxu0 0.0
        %2121 = vmatpush2.msra.mxu0 0.0
        %v2122 = vand.u32 %v328, 4294901760
        %v2123 = vsub.f32 %v328, %v2122
        %v2124 = vand.u32 %v2123, 4294901760
        %2125 = vmatprep.subr.mxu0 %v2124
        %v2126 = vand.u32 %v327, 4294901760
        %v2127 = vsub.f32 %v327, %v2126
        %v2128 = vand.u32 %v2127, 4294901760
        %2129 = vmatpush2.msra.mxu0 %v2128
        %v2130 = vand.u32 %v326, 4294901760
        %v2131 = vsub.f32 %v326, %v2130
        %v2132 = vand.u32 %v2131, 4294901760
        %2133 = vmatprep.subr.mxu0 %v2132
        %v2134 = vand.u32 %v325, 4294901760
        %v2135 = vsub.f32 %v325, %v2134
        %v2136 = vand.u32 %v2135, 4294901760
        %2137 = vmatpush2.msra.mxu0 %v2136
        %v2138 = vand.u32 %v324, 4294901760
        %v2139 = vsub.f32 %v324, %v2138
        %v2140 = vand.u32 %v2139, 4294901760
        %2141 = vmatprep.subr.mxu0 %v2140
        %v2142 = vand.u32 %v323, 4294901760
        %v2143 = vsub.f32 %v323, %v2142
        %v2144 = vand.u32 %v2143, 4294901760
        %2145 = vmatpush2.msra.mxu0 %v2144
        %v2146 = vand.u32 %v322, 4294901760
        %v2147 = vsub.f32 %v322, %v2146
        %v2148 = vand.u32 %v2147, 4294901760
        %2149 = vmatprep.subr.mxu0 %v2148
        %v2150 = vand.u32 %v321, 4294901760
        %v2151 = vsub.f32 %v321, %v2150
        %v2152 = vand.u32 %v2151, 4294901760
        %2153 = vmatpush2.msra.mxu0 %v2152
        %v2154 = vand.u32 %v371, 4294901760
        %2155 = vmatprep.mubr.f32.mxu0 %v2154
        %v2156 = vand.u32 %v329, 4294901760
        %2157 = vmatmul.mubr.f32.gmra.mxu0 %v2156
        %v2158 = vpop.f32.mrf.mxu0
        %v2159 = vadd.f32 %v1738, %v2158
        %v2160 = vpop.f32.mrf.mxu0
        %v2161 = vadd.f32 %v1740, %v2160
        %v2162 = vand.u32 %v374, 4294901760
        %2163 = vmatprep.mubr.f32.mxu0 %v2162
        %v2164 = vand.u32 %v331, 4294901760
        %2165 = vmatmul.mubr.f32.gmra.mxu0 %v2164
        %v2166 = vpop.f32.mrf.mxu0
        %v2167 = vadd.f32 %v1750, %v2166
        %v2168 = vpop.f32.mrf.mxu0
        %v2169 = vadd.f32 %v1752, %v2168
        %v2170 = vand.u32 %v377, 4294901760
        %2171 = vmatprep.mubr.f32.mxu0 %v2170
        %v2172 = vand.u32 %v333, 4294901760
        %2173 = vmatmul.mubr.f32.gmra.mxu0 %v2172
        %v2174 = vpop.f32.mrf.mxu0
        %v2175 = vadd.f32 %v1762, %v2174
        %v2176 = vpop.f32.mrf.mxu0
        %v2177 = vadd.f32 %v1764, %v2176
        %v2178 = vand.u32 %v380, 4294901760
        %2179 = vmatprep.mubr.f32.mxu0 %v2178
        %v2180 = vand.u32 %v335, 4294901760
        %2181 = vmatmul.mubr.f32.gmra.mxu0 %v2180
        %v2182 = vpop.f32.mrf.mxu0
        %v2183 = vadd.f32 %v1774, %v2182
        %v2184 = vpop.f32.mrf.mxu0
        %v2185 = vadd.f32 %v1776, %v2184
        %v2186 = vand.u32 %v383, 4294901760
        %2187 = vmatprep.mubr.f32.mxu0 %v2186
        %v2188 = vand.u32 %v337, 4294901760
        %2189 = vmatmul.mubr.f32.gmra.mxu0 %v2188
        %v2190 = vpop.f32.mrf.mxu0
        %v2191 = vadd.f32 %v1786, %v2190
        %v2192 = vpop.f32.mrf.mxu0
        %v2193 = vadd.f32 %v1788, %v2192
        %v2194 = vand.u32 %v386, 4294901760
        %2195 = vmatprep.mubr.f32.mxu0 %v2194
        %v2196 = vand.u32 %v339, 4294901760
        %2197 = vmatmul.mubr.f32.gmra.mxu0 %v2196
        %v2198 = vpop.f32.mrf.mxu0
        %v2199 = vadd.f32 %v1798, %v2198
        %v2200 = vpop.f32.mrf.mxu0
        %v2201 = vadd.f32 %v1800, %v2200
        %v2202 = vand.u32 %v389, 4294901760
        %2203 = vmatprep.mubr.f32.mxu0 %v2202
        %v2204 = vand.u32 %v341, 4294901760
        %2205 = vmatmul.mubr.f32.gmra.mxu0 %v2204
        %v2206 = vpop.f32.mrf.mxu0
        %v2207 = vadd.f32 %v1810, %v2206
        %v2208 = vpop.f32.mrf.mxu0
        %v2209 = vadd.f32 %v1812, %v2208
        %v2210 = vand.u32 %v392, 4294901760
        %2211 = vmatprep.mubr.f32.mxu0 %v2210
        %v2212 = vand.u32 %v343, 4294901760
        %2213 = vmatmul.mubr.f32.gmra.mxu0 %v2212
        %v2214 = vpop.f32.mrf.mxu0
        %v2215 = vadd.f32 %v1822, %v2214
        %v2216 = vpop.f32.mrf.mxu0
        %v2217 = vadd.f32 %v1824, %v2216
        %v2218 = vand.u32 %v395, 4294901760
        %2219 = vmatprep.mubr.f32.mxu0 %v2218
        %v2220 = vand.u32 %v345, 4294901760
        %2221 = vmatmul.mubr.f32.gmra.mxu0 %v2220
        %v2222 = vpop.f32.mrf.mxu0
        %v2223 = vadd.f32 %v1834, %v2222
        %v2224 = vpop.f32.mrf.mxu0
        %v2225 = vadd.f32 %v1836, %v2224
        %v2226 = vand.u32 %v398, 4294901760
        %2227 = vmatprep.mubr.f32.mxu0 %v2226
        %v2228 = vand.u32 %v347, 4294901760
        %2229 = vmatmul.mubr.f32.gmra.mxu0 %v2228
        %v2230 = vpop.f32.mrf.mxu0
        %v2231 = vadd.f32 %v1846, %v2230
        %v2232 = vpop.f32.mrf.mxu0
        %v2233 = vadd.f32 %v1848, %v2232
        %v2234 = vand.u32 %v401, 4294901760
        %2235 = vmatprep.mubr.f32.mxu0 %v2234
        %v2236 = vand.u32 %v349, 4294901760
        %2237 = vmatmul.mubr.f32.gmra.mxu0 %v2236
        %v2238 = vpop.f32.mrf.mxu0
        %v2239 = vadd.f32 %v1858, %v2238
        %v2240 = vpop.f32.mrf.mxu0
        %v2241 = vadd.f32 %v1860, %v2240
        %v2242 = vand.u32 %v404, 4294901760
        %2243 = vmatprep.mubr.f32.mxu0 %v2242
        %v2244 = vand.u32 %v351, 4294901760
        %2245 = vmatmul.mubr.f32.gmra.mxu0 %v2244
        %v2246 = vpop.f32.mrf.mxu0
        %v2247 = vadd.f32 %v1870, %v2246
        %v2248 = vpop.f32.mrf.mxu0
        %v2249 = vadd.f32 %v1872, %v2248
        %v2250 = vand.u32 %v407, 4294901760
        %2251 = vmatprep.mubr.f32.mxu0 %v2250
        %v2252 = vand.u32 %v353, 4294901760
        %2253 = vmatmul.mubr.f32.gmra.mxu0 %v2252
        %v2254 = vpop.f32.mrf.mxu0
        %v2255 = vadd.f32 %v1882, %v2254
        %v2256 = vpop.f32.mrf.mxu0
        %v2257 = vadd.f32 %v1884, %v2256
        %v2258 = vand.u32 %v410, 4294901760
        %2259 = vmatprep.mubr.f32.mxu0 %v2258
        %v2260 = vand.u32 %v355, 4294901760
        %2261 = vmatmul.mubr.f32.gmra.mxu0 %v2260
        %v2262 = vpop.f32.mrf.mxu0
        %v2263 = vadd.f32 %v1894, %v2262
        %v2264 = vpop.f32.mrf.mxu0
        %v2265 = vadd.f32 %v1896, %v2264
        %v2266 = vand.u32 %v413, 4294901760
        %2267 = vmatprep.mubr.f32.mxu0 %v2266
        %v2268 = vand.u32 %v357, 4294901760
        %2269 = vmatmul.mubr.f32.gmra.mxu0 %v2268
        %v2270 = vpop.f32.mrf.mxu0
        %v2271 = vadd.f32 %v1906, %v2270
        %v2272 = vpop.f32.mrf.mxu0
        %v2273 = vadd.f32 %v1908, %v2272
        %v2274 = vand.u32 %v416, 4294901760
        %2275 = vmatprep.mubr.f32.mxu0 %v2274
        %v2276 = vand.u32 %v359, 4294901760
        %2277 = vmatmul.mubr.f32.gmra.mxu0 %v2276
        %v2278 = vpop.f32.mrf.mxu0
        %v2279 = vadd.f32 %v1918, %v2278
        %v2280 = vpop.f32.mrf.mxu0
        %v2281 = vadd.f32 %v1920, %v2280
        %v2282 = vand.u32 %v419, 4294901760
        %2283 = vmatprep.mubr.f32.mxu0 %v2282
        %v2284 = vand.u32 %v361, 4294901760
        %2285 = vmatmul.mubr.f32.gmra.mxu0 %v2284
        %v2286 = vpop.f32.mrf.mxu0
        %v2287 = vadd.f32 %v1930, %v2286
        %v2288 = vpop.f32.mrf.mxu0
        %v2289 = vadd.f32 %v1932, %v2288
        %v2290 = vand.u32 %v422, 4294901760
        %2291 = vmatprep.mubr.f32.mxu0 %v2290
        %v2292 = vand.u32 %v363, 4294901760
        %2293 = vmatmul.mubr.f32.gmra.mxu0 %v2292
        %v2294 = vpop.f32.mrf.mxu0
        %v2295 = vadd.f32 %v1942, %v2294
        %v2296 = vpop.f32.mrf.mxu0
        %v2297 = vadd.f32 %v1944, %v2296
        %v2298 = vand.u32 %v425, 4294901760
        %2299 = vmatprep.mubr.f32.mxu0 %v2298
        %v2300 = vand.u32 %v365, 4294901760
        %2301 = vmatmul.mubr.f32.gmra.mxu0 %v2300
        %v2302 = vpop.f32.mrf.mxu0
        %v2303 = vadd.f32 %v1954, %v2302
        %v2304 = vpop.f32.mrf.mxu0
        %v2305 = vadd.f32 %v1956, %v2304
        %v2306 = vand.u32 %v428, 4294901760
        %2307 = vmatprep.mubr.f32.mxu0 %v2306
        %v2308 = vand.u32 %v367, 4294901760
        %2309 = vmatmul.mubr.f32.gmra.mxu0 %v2308
        %v2310 = vpop.f32.mrf.mxu0
        %v2311 = vadd.f32 %v1966, %v2310
        %v2312 = vpop.f32.mrf.mxu0
        %v2313 = vadd.f32 %v1968, %v2312
        %2314 = vdwg.mxu0
        %v2315 = vand.u32 %v320, 4294901760
        %2316 = vmatprep.subr.mxu0 %v2315
        %v2317 = vand.u32 %v319, 4294901760
        %2318 = vmatpush1.msra.mxu0 %v2317
        %v2319 = vand.u32 %v318, 4294901760
        %2320 = vmatprep.subr.mxu0 %v2319
        %v2321 = vand.u32 %v317, 4294901760
        %2322 = vmatpush1.msra.mxu0 %v2321
        %v2323 = vand.u32 %v316, 4294901760
        %2324 = vmatprep.subr.mxu0 %v2323
        %v2325 = vand.u32 %v315, 4294901760
        %2326 = vmatpush1.msra.mxu0 %v2325
        %v2327 = vand.u32 %v314, 4294901760
        %2328 = vmatprep.subr.mxu0 %v2327
        %v2329 = vand.u32 %v313, 4294901760
        %2330 = vmatpush1.msra.mxu0 %v2329
        %v2331 = vand.u32 %v312, 4294901760
        %2332 = vmatprep.subr.mxu0 %v2331
        %v2333 = vand.u32 %v311, 4294901760
        %2334 = vmatpush1.msra.mxu0 %v2333
        %v2335 = vand.u32 %v310, 4294901760
        %2336 = vmatprep.subr.mxu0 %v2335
        %v2337 = vand.u32 %v309, 4294901760
        %2338 = vmatpush1.msra.mxu0 %v2337
        %v2339 = vand.u32 %v308, 4294901760
        %2340 = vmatprep.subr.mxu0 %v2339
        %v2341 = vand.u32 %v307, 4294901760
        %2342 = vmatpush1.msra.mxu0 %v2341
        %v2343 = vand.u32 %v306, 4294901760
        %2344 = vmatprep.subr.mxu0 %v2343
        %v2345 = vand.u32 %v305, 4294901760
        %2346 = vmatpush1.msra.mxu0 %v2345
        %v2347 = vand.u32 %v304, 4294901760
        %2348 = vmatprep.subr.mxu0 %v2347
        %v2349 = vand.u32 %v303, 4294901760
        %2350 = vmatpush1.msra.mxu0 %v2349
        %v2351 = vand.u32 %v302, 4294901760
        %2352 = vmatprep.subr.mxu0 %v2351
        %v2353 = vand.u32 %v301, 4294901760
        %2354 = vmatpush1.msra.mxu0 %v2353
        %v2355 = vand.u32 %v300, 4294901760
        %2356 = vmatprep.subr.mxu0 %v2355
        %v2357 = vand.u32 %v299, 4294901760
        %2358 = vmatpush1.msra.mxu0 %v2357
        %v2359 = vand.u32 %v298, 4294901760
        %2360 = vmatprep.subr.mxu0 %v2359
        %v2361 = vand.u32 %v297, 4294901760
        %2362 = vmatpush1.msra.mxu0 %v2361
        %v2363 = vand.u32 %v296, 4294901760
        %2364 = vmatprep.subr.mxu0 %v2363
        %v2365 = vand.u32 %v295, 4294901760
        %2366 = vmatpush1.msra.mxu0 %v2365
        %v2367 = vand.u32 %v294, 4294901760
        %2368 = vmatprep.subr.mxu0 %v2367
        %v2369 = vand.u32 %v293, 4294901760
        %2370 = vmatpush1.msra.mxu0 %v2369
        %v2371 = vand.u32 %v292, 4294901760
        %2372 = vmatprep.subr.mxu0 %v2371
        %v2373 = vand.u32 %v291, 4294901760
        %2374 = vmatpush1.msra.mxu0 %v2373
        %v2375 = vand.u32 %v290, 4294901760
        %2376 = vmatprep.subr.mxu0 %v2375
        %v2377 = vand.u32 %v289, 4294901760
        %2378 = vmatpush1.msra.mxu0 %v2377
        %2379 = vmatprep.subr.mxu0 0.0
        %2380 = vmatpush2.msra.mxu0 0.0
        %2381 = vmatprep.subr.mxu0 0.0
        %2382 = vmatpush2.msra.mxu0 0.0
        %2383 = vmatprep.subr.mxu0 0.0
        %2384 = vmatpush2.msra.mxu0 0.0
        %2385 = vmatprep.subr.mxu0 0.0
        %2386 = vmatpush2.msra.mxu0 0.0
        %2387 = vmatprep.subr.mxu0 0.0
        %2388 = vmatpush2.msra.mxu0 0.0
        %2389 = vmatprep.subr.mxu0 0.0
        %2390 = vmatpush2.msra.mxu0 0.0
        %2391 = vmatprep.subr.mxu0 0.0
        %2392 = vmatpush2.msra.mxu0 0.0
        %2393 = vmatprep.subr.mxu0 0.0
        %2394 = vmatpush2.msra.mxu0 0.0
        %2395 = vmatprep.subr.mxu0 0.0
        %2396 = vmatpush2.msra.mxu0 0.0
        %2397 = vmatprep.subr.mxu0 0.0
        %2398 = vmatpush2.msra.mxu0 0.0
        %2399 = vmatprep.subr.mxu0 0.0
        %2400 = vmatpush2.msra.mxu0 0.0
        %2401 = vmatprep.subr.mxu0 0.0
        %2402 = vmatpush2.msra.mxu0 0.0
        %v2403 = vand.u32 %v328, 4294901760
        %2404 = vmatprep.subr.mxu0 %v2403
        %v2405 = vand.u32 %v327, 4294901760
        %2406 = vmatpush2.msra.mxu0 %v2405
        %v2407 = vand.u32 %v326, 4294901760
        %2408 = vmatprep.subr.mxu0 %v2407
        %v2409 = vand.u32 %v325, 4294901760
        %2410 = vmatpush2.msra.mxu0 %v2409
        %v2411 = vand.u32 %v324, 4294901760
        %2412 = vmatprep.subr.mxu0 %v2411
        %v2413 = vand.u32 %v323, 4294901760
        %2414 = vmatpush2.msra.mxu0 %v2413
        %v2415 = vand.u32 %v322, 4294901760
        %2416 = vmatprep.subr.mxu0 %v2415
        %v2417 = vand.u32 %v321, 4294901760
        %2418 = vmatpush2.msra.mxu0 %v2417
        %v2419 = vand.u32 %v371, 4294901760
        %2420 = vmatprep.mubr.f32.mxu0 %v2419
        %v2421 = vand.u32 %v329, 4294901760
        %2422 = vmatmul.mubr.f32.gmra.mxu0 %v2421
        %v2423 = vpop.f32.mrf.mxu0
        %v2424 = vadd.f32 %v2159, %v2423
        %v2425 = vpop.f32.mrf.mxu0
        %v2426 = vadd.f32 %v2161, %v2425
        %v2427 = vand.u32 %v374, 4294901760
        %2428 = vmatprep.mubr.f32.mxu0 %v2427
        %v2429 = vand.u32 %v331, 4294901760
        %2430 = vmatmul.mubr.f32.gmra.mxu0 %v2429
        %v2431 = vpop.f32.mrf.mxu0
        %v2432 = vadd.f32 %v2167, %v2431
        %v2433 = vpop.f32.mrf.mxu0
        %v2434 = vadd.f32 %v2169, %v2433
        %v2435 = vand.u32 %v377, 4294901760
        %2436 = vmatprep.mubr.f32.mxu0 %v2435
        %v2437 = vand.u32 %v333, 4294901760
        %2438 = vmatmul.mubr.f32.gmra.mxu0 %v2437
        %v2439 = vpop.f32.mrf.mxu0
        %v2440 = vadd.f32 %v2175, %v2439
        %v2441 = vpop.f32.mrf.mxu0
        %v2442 = vadd.f32 %v2177, %v2441
        %v2443 = vand.u32 %v380, 4294901760
        %2444 = vmatprep.mubr.f32.mxu0 %v2443
        %v2445 = vand.u32 %v335, 4294901760
        %2446 = vmatmul.mubr.f32.gmra.mxu0 %v2445
        %v2447 = vpop.f32.mrf.mxu0
        %v2448 = vadd.f32 %v2183, %v2447
        %v2449 = vpop.f32.mrf.mxu0
        %v2450 = vadd.f32 %v2185, %v2449
        %v2451 = vand.u32 %v383, 4294901760
        %2452 = vmatprep.mubr.f32.mxu0 %v2451
        %v2453 = vand.u32 %v337, 4294901760
        %2454 = vmatmul.mubr.f32.gmra.mxu0 %v2453
        %v2455 = vpop.f32.mrf.mxu0
        %v2456 = vadd.f32 %v2191, %v2455
        %v2457 = vpop.f32.mrf.mxu0
        %v2458 = vadd.f32 %v2193, %v2457
        %v2459 = vand.u32 %v386, 4294901760
        %2460 = vmatprep.mubr.f32.mxu0 %v2459
        %v2461 = vand.u32 %v339, 4294901760
        %2462 = vmatmul.mubr.f32.gmra.mxu0 %v2461
        %v2463 = vpop.f32.mrf.mxu0
        %v2464 = vadd.f32 %v2199, %v2463
        %v2465 = vpop.f32.mrf.mxu0
        %v2466 = vadd.f32 %v2201, %v2465
        %v2467 = vand.u32 %v389, 4294901760
        %2468 = vmatprep.mubr.f32.mxu0 %v2467
        %v2469 = vand.u32 %v341, 4294901760
        %2470 = vmatmul.mubr.f32.gmra.mxu0 %v2469
        %v2471 = vpop.f32.mrf.mxu0
        %v2472 = vadd.f32 %v2207, %v2471
        %v2473 = vpop.f32.mrf.mxu0
        %v2474 = vadd.f32 %v2209, %v2473
        %v2475 = vand.u32 %v392, 4294901760
        %2476 = vmatprep.mubr.f32.mxu0 %v2475
        %v2477 = vand.u32 %v343, 4294901760
        %2478 = vmatmul.mubr.f32.gmra.mxu0 %v2477
        %v2479 = vpop.f32.mrf.mxu0
        %v2480 = vadd.f32 %v2215, %v2479
        %v2481 = vpop.f32.mrf.mxu0
        %v2482 = vadd.f32 %v2217, %v2481
        %v2483 = vand.u32 %v395, 4294901760
        %2484 = vmatprep.mubr.f32.mxu0 %v2483
        %v2485 = vand.u32 %v345, 4294901760
        %2486 = vmatmul.mubr.f32.gmra.mxu0 %v2485
        %v2487 = vpop.f32.mrf.mxu0
        %v2488 = vadd.f32 %v2223, %v2487
        %v2489 = vpop.f32.mrf.mxu0
        %v2490 = vadd.f32 %v2225, %v2489
        %v2491 = vand.u32 %v398, 4294901760
        %2492 = vmatprep.mubr.f32.mxu0 %v2491
        %v2493 = vand.u32 %v347, 4294901760
        %2494 = vmatmul.mubr.f32.gmra.mxu0 %v2493
        %v2495 = vpop.f32.mrf.mxu0
        %v2496 = vadd.f32 %v2231, %v2495
        %v2497 = vpop.f32.mrf.mxu0
        %v2498 = vadd.f32 %v2233, %v2497
        %v2499 = vand.u32 %v401, 4294901760
        %2500 = vmatprep.mubr.f32.mxu0 %v2499
        %v2501 = vand.u32 %v349, 4294901760
        %2502 = vmatmul.mubr.f32.gmra.mxu0 %v2501
        %v2503 = vpop.f32.mrf.mxu0
        %v2504 = vadd.f32 %v2239, %v2503
        %v2505 = vpop.f32.mrf.mxu0
        %v2506 = vadd.f32 %v2241, %v2505
        %v2507 = vand.u32 %v404, 4294901760
        %2508 = vmatprep.mubr.f32.mxu0 %v2507
        %v2509 = vand.u32 %v351, 4294901760
        %2510 = vmatmul.mubr.f32.gmra.mxu0 %v2509
        %v2511 = vpop.f32.mrf.mxu0
        %v2512 = vadd.f32 %v2247, %v2511
        %v2513 = vpop.f32.mrf.mxu0
        %v2514 = vadd.f32 %v2249, %v2513
        %v2515 = vand.u32 %v407, 4294901760
        %2516 = vmatprep.mubr.f32.mxu0 %v2515
        %v2517 = vand.u32 %v353, 4294901760
        %2518 = vmatmul.mubr.f32.gmra.mxu0 %v2517
        %v2519 = vpop.f32.mrf.mxu0
        %v2520 = vadd.f32 %v2255, %v2519
        %v2521 = vpop.f32.mrf.mxu0
        %v2522 = vadd.f32 %v2257, %v2521
        %v2523 = vand.u32 %v410, 4294901760
        %2524 = vmatprep.mubr.f32.mxu0 %v2523
        %v2525 = vand.u32 %v355, 4294901760
        %2526 = vmatmul.mubr.f32.gmra.mxu0 %v2525
        %v2527 = vpop.f32.mrf.mxu0
        %v2528 = vadd.f32 %v2263, %v2527
        %v2529 = vpop.f32.mrf.mxu0
        %v2530 = vadd.f32 %v2265, %v2529
        %v2531 = vand.u32 %v413, 4294901760
        %2532 = vmatprep.mubr.f32.mxu0 %v2531
        %v2533 = vand.u32 %v357, 4294901760
        %2534 = vmatmul.mubr.f32.gmra.mxu0 %v2533
        %v2535 = vpop.f32.mrf.mxu0
        %v2536 = vadd.f32 %v2271, %v2535
        %v2537 = vpop.f32.mrf.mxu0
        %v2538 = vadd.f32 %v2273, %v2537
        %v2539 = vand.u32 %v416, 4294901760
        %2540 = vmatprep.mubr.f32.mxu0 %v2539
        %v2541 = vand.u32 %v359, 4294901760
        %2542 = vmatmul.mubr.f32.gmra.mxu0 %v2541
        %v2543 = vpop.f32.mrf.mxu0
        %v2544 = vadd.f32 %v2279, %v2543
        %v2545 = vpop.f32.mrf.mxu0
        %v2546 = vadd.f32 %v2281, %v2545
        %v2547 = vand.u32 %v419, 4294901760
        %2548 = vmatprep.mubr.f32.mxu0 %v2547
        %v2549 = vand.u32 %v361, 4294901760
        %2550 = vmatmul.mubr.f32.gmra.mxu0 %v2549
        %v2551 = vpop.f32.mrf.mxu0
        %v2552 = vadd.f32 %v2287, %v2551
        %v2553 = vpop.f32.mrf.mxu0
        %v2554 = vadd.f32 %v2289, %v2553
        %v2555 = vand.u32 %v422, 4294901760
        %2556 = vmatprep.mubr.f32.mxu0 %v2555
        %v2557 = vand.u32 %v363, 4294901760
        %2558 = vmatmul.mubr.f32.gmra.mxu0 %v2557
        %v2559 = vpop.f32.mrf.mxu0
        %v2560 = vadd.f32 %v2295, %v2559
        %v2561 = vpop.f32.mrf.mxu0
        %v2562 = vadd.f32 %v2297, %v2561
        %v2563 = vand.u32 %v425, 4294901760
        %2564 = vmatprep.mubr.f32.mxu0 %v2563
        %v2565 = vand.u32 %v365, 4294901760
        %2566 = vmatmul.mubr.f32.gmra.mxu0 %v2565
        %v2567 = vpop.f32.mrf.mxu0
        %v2568 = vadd.f32 %v2303, %v2567
        %v2569 = vpop.f32.mrf.mxu0
        %v2570 = vadd.f32 %v2305, %v2569
        %v2571 = vand.u32 %v428, 4294901760
        %2572 = vmatprep.mubr.f32.mxu0 %v2571
        %v2573 = vand.u32 %v367, 4294901760
        %2574 = vmatmul.mubr.f32.gmra.mxu0 %v2573
        %v2575 = vpop.f32.mrf.mxu0
        %v2576 = vadd.f32 %v2311, %v2575
        %v2577 = vpop.f32.mrf.mxu0
        %v2578 = vadd.f32 %v2313, %v2577
        %2579 = vdwg.mxu0
        %v2580 = vld [vmem:[#allocation8] sm:$0xff]
        %v2581 = vld [vmem:[#allocation8 + $0x8] sm:$0xff]
        %v2582 = vld [vmem:[#allocation8 + $0x10] sm:$0xff]
        %v2583 = vld [vmem:[#allocation8 + $0x18] sm:$0xff]
        %v2584 = vld [vmem:[#allocation8 + $0x20] sm:$0xff]
        %v2585 = vld [vmem:[#allocation8 + $0x28] sm:$0xff]
        %v2586 = vld [vmem:[#allocation8 + $0x30] sm:$0xff]
        %v2587 = vld [vmem:[#allocation8 + $0x38] sm:$0xff]
        %v2588 = vld [vmem:[#allocation8 + $0x40] sm:$0xff]
        %v2589 = vld [vmem:[#allocation8 + $0x48] sm:$0xff]
        %v2590 = vld [vmem:[#allocation8 + $0x50] sm:$0xff]
        %v2591 = vld [vmem:[#allocation8 + $0x58] sm:$0xff]
        %v2592 = vld [vmem:[#allocation8 + $0x60] sm:$0xff]
        %v2593 = vld [vmem:[#allocation8 + $0x68] sm:$0xff]
        %v2594 = vld [vmem:[#allocation8 + $0x70] sm:$0xff]
        %v2595 = vld [vmem:[#allocation8 + $0x78] sm:$0xff]
        %v2596 = vld [vmem:[#allocation8 + $0x80] sm:$0xff]
        %v2597 = vld [vmem:[#allocation8 + $0x88] sm:$0xff]
        %v2598 = vld [vmem:[#allocation8 + $0x90] sm:$0xff]
        %v2599 = vld [vmem:[#allocation8 + $0x98] sm:$0xff]
        %v2600 = vld [vmem:[#allocation8 + $0xa0] sm:$0xff]
        %v2601 = vld [vmem:[#allocation8 + $0xa8] sm:$0xff]
        %v2602 = vld [vmem:[#allocation8 + $0xb0] sm:$0xff]
        %v2603 = vld [vmem:[#allocation8 + $0xb8] sm:$0xff]
        %v2604 = vld [vmem:[#allocation8 + $0xc0] sm:$0xff]
        %v2605 = vld [vmem:[#allocation8 + $0xc8] sm:$0xff]
        %v2606 = vld [vmem:[#allocation8 + $0xd0] sm:$0xff]
        %v2607 = vld [vmem:[#allocation8 + $0xd8] sm:$0xff]
        %v2608 = vld [vmem:[#allocation8 + $0xe0] sm:$0xff]
        %v2609 = vld [vmem:[#allocation8 + $0xe8] sm:$0xff]
        %v2610 = vld [vmem:[#allocation8 + $0xf0] sm:$0xff]
        %v2611 = vld [vmem:[#allocation8 + $0xf8] sm:$0xff]
        %v2612 = vld [vmem:[#allocation8 + $0x100] sm:$0xff]
        %v2613 = vld [vmem:[#allocation8 + $0x108] sm:$0xff]
        %v2614 = vld [vmem:[#allocation8 + $0x110] sm:$0xff]
        %v2615 = vld [vmem:[#allocation8 + $0x118] sm:$0xff]
        %v2616 = vld [vmem:[#allocation8 + $0x120] sm:$0xff]
        %v2617 = vld [vmem:[#allocation8 + $0x128] sm:$0xff]
        %v2618 = vld [vmem:[#allocation8 + $0x130] sm:$0xff]
        %v2619 = vld [vmem:[#allocation8 + $0x138] sm:$0xff]
        %v2620 = vld [vmem:[#allocation8 + $0x140] sm:$0xff]
        %v2621 = vld [vmem:[#allocation8 + $0x148] sm:$0xff]
        %v2622 = vld [vmem:[#allocation8 + $0x150] sm:$0xff]
        %v2623 = vld [vmem:[#allocation8 + $0x158] sm:$0xff]
        %v2624 = vld [vmem:[#allocation8 + $0x160] sm:$0xff]
        %v2625 = vld [vmem:[#allocation8 + $0x168] sm:$0xff]
        %v2626 = vld [vmem:[#allocation8 + $0x170] sm:$0xff]
        %v2627 = vld [vmem:[#allocation8 + $0x178] sm:$0xff]
        %v2628 = vld [vmem:[#allocation8 + $0x180] sm:$0xff]
        %v2629 = vld [vmem:[#allocation8 + $0x188] sm:$0xff]
        %v2630 = vld [vmem:[#allocation8 + $0x190] sm:$0xff]
        %v2631 = vld [vmem:[#allocation8 + $0x198] sm:$0xff]
        %v2632 = vld [vmem:[#allocation8 + $0x1a0] sm:$0xff]
        %v2633 = vld [vmem:[#allocation8 + $0x1a8] sm:$0xff]
        %v2634 = vld [vmem:[#allocation8 + $0x1b0] sm:$0xff]
        %v2635 = vld [vmem:[#allocation8 + $0x1b8] sm:$0xff]
        %v2636 = vld [vmem:[#allocation8 + $0x1c0] sm:$0xff]
        %v2637 = vld [vmem:[#allocation8 + $0x1c8] sm:$0xff]
        %v2638 = vld [vmem:[#allocation8 + $0x1d0] sm:$0xff]
        %v2639 = vld [vmem:[#allocation8 + $0x1d8] sm:$0xff]
        %v2640 = vld [vmem:[#allocation8 + $0x1e0] sm:$0xff]
        %v2641 = vld [vmem:[#allocation8 + $0x1e8] sm:$0xff]
        %v2642 = vld [vmem:[#allocation8 + $0x1f0] sm:$0xff]
        %v2643 = vld [vmem:[#allocation8 + $0x1f8] sm:$0xff]
        %v2644 = vand.u32 %v2611, 4294901760
        %2645 = vmatprep.subr.mxu0 %v2644
        %v2646 = vand.u32 %v2610, 4294901760
        %2647 = vmatpush1.msra.mxu0 %v2646
        %v2648 = vand.u32 %v2609, 4294901760
        %2649 = vmatprep.subr.mxu0 %v2648
        %v2650 = vand.u32 %v2608, 4294901760
        %2651 = vmatpush1.msra.mxu0 %v2650
        %v2652 = vand.u32 %v2607, 4294901760
        %2653 = vmatprep.subr.mxu0 %v2652
        %v2654 = vand.u32 %v2606, 4294901760
        %2655 = vmatpush1.msra.mxu0 %v2654
        %v2656 = vand.u32 %v2605, 4294901760
        %2657 = vmatprep.subr.mxu0 %v2656
        %v2658 = vand.u32 %v2604, 4294901760
        %2659 = vmatpush1.msra.mxu0 %v2658
        %v2660 = vand.u32 %v2603, 4294901760
        %2661 = vmatprep.subr.mxu0 %v2660
        %v2662 = vand.u32 %v2602, 4294901760
        %2663 = vmatpush1.msra.mxu0 %v2662
        %v2664 = vand.u32 %v2601, 4294901760
        %2665 = vmatprep.subr.mxu0 %v2664
        %v2666 = vand.u32 %v2600, 4294901760
        %2667 = vmatpush1.msra.mxu0 %v2666
        %v2668 = vand.u32 %v2599, 4294901760
        %2669 = vmatprep.subr.mxu0 %v2668
        %v2670 = vand.u32 %v2598, 4294901760
        %2671 = vmatpush1.msra.mxu0 %v2670
        %v2672 = vand.u32 %v2597, 4294901760
        %2673 = vmatprep.subr.mxu0 %v2672
        %v2674 = vand.u32 %v2596, 4294901760
        %2675 = vmatpush1.msra.mxu0 %v2674
        %v2676 = vand.u32 %v2595, 4294901760
        %2677 = vmatprep.subr.mxu0 %v2676
        %v2678 = vand.u32 %v2594, 4294901760
        %2679 = vmatpush1.msra.mxu0 %v2678
        %v2680 = vand.u32 %v2593, 4294901760
        %2681 = vmatprep.subr.mxu0 %v2680
        %v2682 = vand.u32 %v2592, 4294901760
        %2683 = vmatpush1.msra.mxu0 %v2682
        %v2684 = vand.u32 %v2591, 4294901760
        %2685 = vmatprep.subr.mxu0 %v2684
        %v2686 = vand.u32 %v2590, 4294901760
        %2687 = vmatpush1.msra.mxu0 %v2686
        %v2688 = vand.u32 %v2589, 4294901760
        %2689 = vmatprep.subr.mxu0 %v2688
        %v2690 = vand.u32 %v2588, 4294901760
        %2691 = vmatpush1.msra.mxu0 %v2690
        %v2692 = vand.u32 %v2587, 4294901760
        %2693 = vmatprep.subr.mxu0 %v2692
        %v2694 = vand.u32 %v2586, 4294901760
        %2695 = vmatpush1.msra.mxu0 %v2694
        %v2696 = vand.u32 %v2585, 4294901760
        %2697 = vmatprep.subr.mxu0 %v2696
        %v2698 = vand.u32 %v2584, 4294901760
        %2699 = vmatpush1.msra.mxu0 %v2698
        %v2700 = vand.u32 %v2583, 4294901760
        %2701 = vmatprep.subr.mxu0 %v2700
        %v2702 = vand.u32 %v2582, 4294901760
        %2703 = vmatpush1.msra.mxu0 %v2702
        %v2704 = vand.u32 %v2581, 4294901760
        %2705 = vmatprep.subr.mxu0 %v2704
        %v2706 = vand.u32 %v2580, 4294901760
        %2707 = vmatpush1.msra.mxu0 %v2706
        %v2708 = vand.u32 %v2643, 4294901760
        %2709 = vmatprep.subr.mxu0 %v2708
        %v2710 = vand.u32 %v2642, 4294901760
        %2711 = vmatpush2.msra.mxu0 %v2710
        %v2712 = vand.u32 %v2641, 4294901760
        %2713 = vmatprep.subr.mxu0 %v2712
        %v2714 = vand.u32 %v2640, 4294901760
        %2715 = vmatpush2.msra.mxu0 %v2714
        %v2716 = vand.u32 %v2639, 4294901760
        %2717 = vmatprep.subr.mxu0 %v2716
        %v2718 = vand.u32 %v2638, 4294901760
        %2719 = vmatpush2.msra.mxu0 %v2718
        %v2720 = vand.u32 %v2637, 4294901760
        %2721 = vmatprep.subr.mxu0 %v2720
        %v2722 = vand.u32 %v2636, 4294901760
        %2723 = vmatpush2.msra.mxu0 %v2722
        %v2724 = vand.u32 %v2635, 4294901760
        %2725 = vmatprep.subr.mxu0 %v2724
        %v2726 = vand.u32 %v2634, 4294901760
        %2727 = vmatpush2.msra.mxu0 %v2726
        %v2728 = vand.u32 %v2633, 4294901760
        %2729 = vmatprep.subr.mxu0 %v2728
        %v2730 = vand.u32 %v2632, 4294901760
        %2731 = vmatpush2.msra.mxu0 %v2730
        %v2732 = vand.u32 %v2631, 4294901760
        %2733 = vmatprep.subr.mxu0 %v2732
        %v2734 = vand.u32 %v2630, 4294901760
        %2735 = vmatpush2.msra.mxu0 %v2734
        %v2736 = vand.u32 %v2629, 4294901760
        %2737 = vmatprep.subr.mxu0 %v2736
        %v2738 = vand.u32 %v2628, 4294901760
        %2739 = vmatpush2.msra.mxu0 %v2738
        %v2740 = vand.u32 %v2627, 4294901760
        %2741 = vmatprep.subr.mxu0 %v2740
        %v2742 = vand.u32 %v2626, 4294901760
        %2743 = vmatpush2.msra.mxu0 %v2742
        %v2744 = vand.u32 %v2625, 4294901760
        %2745 = vmatprep.subr.mxu0 %v2744
        %v2746 = vand.u32 %v2624, 4294901760
        %2747 = vmatpush2.msra.mxu0 %v2746
        %v2748 = vand.u32 %v2623, 4294901760
        %2749 = vmatprep.subr.mxu0 %v2748
        %v2750 = vand.u32 %v2622, 4294901760
        %2751 = vmatpush2.msra.mxu0 %v2750
        %v2752 = vand.u32 %v2621, 4294901760
        %2753 = vmatprep.subr.mxu0 %v2752
        %v2754 = vand.u32 %v2620, 4294901760
        %2755 = vmatpush2.msra.mxu0 %v2754
        %v2756 = vand.u32 %v2619, 4294901760
        %2757 = vmatprep.subr.mxu0 %v2756
        %v2758 = vand.u32 %v2618, 4294901760
        %2759 = vmatpush2.msra.mxu0 %v2758
        %v2760 = vand.u32 %v2617, 4294901760
        %2761 = vmatprep.subr.mxu0 %v2760
        %v2762 = vand.u32 %v2616, 4294901760
        %2763 = vmatpush2.msra.mxu0 %v2762
        %v2764 = vand.u32 %v2615, 4294901760
        %2765 = vmatprep.subr.mxu0 %v2764
        %v2766 = vand.u32 %v2614, 4294901760
        %2767 = vmatpush2.msra.mxu0 %v2766
        %v2768 = vand.u32 %v2613, 4294901760
        %2769 = vmatprep.subr.mxu0 %v2768
        %v2770 = vand.u32 %v2612, 4294901760
        %2771 = vmatpush2.msra.mxu0 %v2770
        %v2772 = vand.u32 %v2426, 4294901760
        %v2773 = vsub.f32 %v2426, %v2772
        %v2774 = vand.u32 %v2773, 4294901760
        %v2775 = vsub.f32 %v2773, %v2774
        %v2776 = vand.u32 %v2775, 4294901760
        %2777 = vmatprep.mubr.f32.mxu0 %v2776
        %v2778 = vand.u32 %v2424, 4294901760
        %v2779 = vsub.f32 %v2424, %v2778
        %v2780 = vand.u32 %v2779, 4294901760
        %v2781 = vsub.f32 %v2779, %v2780
        %v2782 = vand.u32 %v2781, 4294901760
        %2783 = vmatmul.mubr.f32.gmra.mxu0 %v2782
        %v2784 = vpop.f32.mrf.mxu0
        %v2785 = vadd.f32 0.0, %v2784
        %v2786 = vpop.f32.mrf.mxu0
        %v2787 = vadd.f32 0.0, %v2786
        %v2788 = vand.u32 %v2434, 4294901760
        %v2789 = vsub.f32 %v2434, %v2788
        %v2790 = vand.u32 %v2789, 4294901760
        %v2791 = vsub.f32 %v2789, %v2790
        %v2792 = vand.u32 %v2791, 4294901760
        %2793 = vmatprep.mubr.f32.mxu0 %v2792
        %v2794 = vand.u32 %v2432, 4294901760
        %v2795 = vsub.f32 %v2432, %v2794
        %v2796 = vand.u32 %v2795, 4294901760
        %v2797 = vsub.f32 %v2795, %v2796
        %v2798 = vand.u32 %v2797, 4294901760
        %2799 = vmatmul.mubr.f32.gmra.mxu0 %v2798
        %v2800 = vpop.f32.mrf.mxu0
        %v2801 = vadd.f32 0.0, %v2800
        %v2802 = vpop.f32.mrf.mxu0
        %v2803 = vadd.f32 0.0, %v2802
        %v2804 = vand.u32 %v2442, 4294901760
        %v2805 = vsub.f32 %v2442, %v2804
        %v2806 = vand.u32 %v2805, 4294901760
        %v2807 = vsub.f32 %v2805, %v2806
        %v2808 = vand.u32 %v2807, 4294901760
        %2809 = vmatprep.mubr.f32.mxu0 %v2808
        %v2810 = vand.u32 %v2440, 4294901760
        %v2811 = vsub.f32 %v2440, %v2810
        %v2812 = vand.u32 %v2811, 4294901760
        %v2813 = vsub.f32 %v2811, %v2812
        %v2814 = vand.u32 %v2813, 4294901760
        %2815 = vmatmul.mubr.f32.gmra.mxu0 %v2814
        %v2816 = vpop.f32.mrf.mxu0
        %v2817 = vadd.f32 0.0, %v2816
        %v2818 = vpop.f32.mrf.mxu0
        %v2819 = vadd.f32 0.0, %v2818
        %v2820 = vand.u32 %v2450, 4294901760
        %v2821 = vsub.f32 %v2450, %v2820
        %v2822 = vand.u32 %v2821, 4294901760
        %v2823 = vsub.f32 %v2821, %v2822
        %v2824 = vand.u32 %v2823, 4294901760
        %2825 = vmatprep.mubr.f32.mxu0 %v2824
        %v2826 = vand.u32 %v2448, 4294901760
        %v2827 = vsub.f32 %v2448, %v2826
        %v2828 = vand.u32 %v2827, 4294901760
        %v2829 = vsub.f32 %v2827, %v2828
        %v2830 = vand.u32 %v2829, 4294901760
        %2831 = vmatmul.mubr.f32.gmra.mxu0 %v2830
        %v2832 = vpop.f32.mrf.mxu0
        %v2833 = vadd.f32 0.0, %v2832
        %v2834 = vpop.f32.mrf.mxu0
        %v2835 = vadd.f32 0.0, %v2834
        %v2836 = vand.u32 %v2458, 4294901760
        %v2837 = vsub.f32 %v2458, %v2836
        %v2838 = vand.u32 %v2837, 4294901760
        %v2839 = vsub.f32 %v2837, %v2838
        %v2840 = vand.u32 %v2839, 4294901760
        %2841 = vmatprep.mubr.f32.mxu0 %v2840
        %v2842 = vand.u32 %v2456, 4294901760
        %v2843 = vsub.f32 %v2456, %v2842
        %v2844 = vand.u32 %v2843, 4294901760
        %v2845 = vsub.f32 %v2843, %v2844
        %v2846 = vand.u32 %v2845, 4294901760
        %2847 = vmatmul.mubr.f32.gmra.mxu0 %v2846
        %v2848 = vpop.f32.mrf.mxu0
        %v2849 = vadd.f32 0.0, %v2848
        %v2850 = vpop.f32.mrf.mxu0
        %v2851 = vadd.f32 0.0, %v2850
        %v2852 = vand.u32 %v2466, 4294901760
        %v2853 = vsub.f32 %v2466, %v2852
        %v2854 = vand.u32 %v2853, 4294901760
        %v2855 = vsub.f32 %v2853, %v2854
        %v2856 = vand.u32 %v2855, 4294901760
        %2857 = vmatprep.mubr.f32.mxu0 %v2856
        %v2858 = vand.u32 %v2464, 4294901760
        %v2859 = vsub.f32 %v2464, %v2858
        %v2860 = vand.u32 %v2859, 4294901760
        %v2861 = vsub.f32 %v2859, %v2860
        %v2862 = vand.u32 %v2861, 4294901760
        %2863 = vmatmul.mubr.f32.gmra.mxu0 %v2862
        %v2864 = vpop.f32.mrf.mxu0
        %v2865 = vadd.f32 0.0, %v2864
        %v2866 = vpop.f32.mrf.mxu0
        %v2867 = vadd.f32 0.0, %v2866
        %v2868 = vand.u32 %v2474, 4294901760
        %v2869 = vsub.f32 %v2474, %v2868
        %v2870 = vand.u32 %v2869, 4294901760
        %v2871 = vsub.f32 %v2869, %v2870
        %v2872 = vand.u32 %v2871, 4294901760
        %2873 = vmatprep.mubr.f32.mxu0 %v2872
        %v2874 = vand.u32 %v2472, 4294901760
        %v2875 = vsub.f32 %v2472, %v2874
        %v2876 = vand.u32 %v2875, 4294901760
        %v2877 = vsub.f32 %v2875, %v2876
        %v2878 = vand.u32 %v2877, 4294901760
        %2879 = vmatmul.mubr.f32.gmra.mxu0 %v2878
        %v2880 = vpop.f32.mrf.mxu0
        %v2881 = vadd.f32 0.0, %v2880
        %v2882 = vpop.f32.mrf.mxu0
        %v2883 = vadd.f32 0.0, %v2882
        %v2884 = vand.u32 %v2482, 4294901760
        %v2885 = vsub.f32 %v2482, %v2884
        %v2886 = vand.u32 %v2885, 4294901760
        %v2887 = vsub.f32 %v2885, %v2886
        %v2888 = vand.u32 %v2887, 4294901760
        %2889 = vmatprep.mubr.f32.mxu0 %v2888
        %v2890 = vand.u32 %v2480, 4294901760
        %v2891 = vsub.f32 %v2480, %v2890
        %v2892 = vand.u32 %v2891, 4294901760
        %v2893 = vsub.f32 %v2891, %v2892
        %v2894 = vand.u32 %v2893, 4294901760
        %2895 = vmatmul.mubr.f32.gmra.mxu0 %v2894
        %v2896 = vpop.f32.mrf.mxu0
        %v2897 = vadd.f32 0.0, %v2896
        %v2898 = vpop.f32.mrf.mxu0
        %v2899 = vadd.f32 0.0, %v2898
        %v2900 = vand.u32 %v2490, 4294901760
        %v2901 = vsub.f32 %v2490, %v2900
        %v2902 = vand.u32 %v2901, 4294901760
        %v2903 = vsub.f32 %v2901, %v2902
        %v2904 = vand.u32 %v2903, 4294901760
        %2905 = vmatprep.mubr.f32.mxu0 %v2904
        %v2906 = vand.u32 %v2488, 4294901760
        %v2907 = vsub.f32 %v2488, %v2906
        %v2908 = vand.u32 %v2907, 4294901760
        %v2909 = vsub.f32 %v2907, %v2908
        %v2910 = vand.u32 %v2909, 4294901760
        %2911 = vmatmul.mubr.f32.gmra.mxu0 %v2910
        %v2912 = vpop.f32.mrf.mxu0
        %v2913 = vadd.f32 0.0, %v2912
        %v2914 = vpop.f32.mrf.mxu0
        %v2915 = vadd.f32 0.0, %v2914
        %v2916 = vand.u32 %v2498, 4294901760
        %v2917 = vsub.f32 %v2498, %v2916
        %v2918 = vand.u32 %v2917, 4294901760
        %v2919 = vsub.f32 %v2917, %v2918
        %v2920 = vand.u32 %v2919, 4294901760
        %2921 = vmatprep.mubr.f32.mxu0 %v2920
        %v2922 = vand.u32 %v2496, 4294901760
        %v2923 = vsub.f32 %v2496, %v2922
        %v2924 = vand.u32 %v2923, 4294901760
        %v2925 = vsub.f32 %v2923, %v2924
        %v2926 = vand.u32 %v2925, 4294901760
        %2927 = vmatmul.mubr.f32.gmra.mxu0 %v2926
        %v2928 = vpop.f32.mrf.mxu0
        %v2929 = vadd.f32 0.0, %v2928
        %v2930 = vpop.f32.mrf.mxu0
        %v2931 = vadd.f32 0.0, %v2930
        %v2932 = vand.u32 %v2506, 4294901760
        %v2933 = vsub.f32 %v2506, %v2932
        %v2934 = vand.u32 %v2933, 4294901760
        %v2935 = vsub.f32 %v2933, %v2934
        %v2936 = vand.u32 %v2935, 4294901760
        %2937 = vmatprep.mubr.f32.mxu0 %v2936
        %v2938 = vand.u32 %v2504, 4294901760
        %v2939 = vsub.f32 %v2504, %v2938
        %v2940 = vand.u32 %v2939, 4294901760
        %v2941 = vsub.f32 %v2939, %v2940
        %v2942 = vand.u32 %v2941, 4294901760
        %2943 = vmatmul.mubr.f32.gmra.mxu0 %v2942
        %v2944 = vpop.f32.mrf.mxu0
        %v2945 = vadd.f32 0.0, %v2944
        %v2946 = vpop.f32.mrf.mxu0
        %v2947 = vadd.f32 0.0, %v2946
        %v2948 = vand.u32 %v2514, 4294901760
        %v2949 = vsub.f32 %v2514, %v2948
        %v2950 = vand.u32 %v2949, 4294901760
        %v2951 = vsub.f32 %v2949, %v2950
        %v2952 = vand.u32 %v2951, 4294901760
        %2953 = vmatprep.mubr.f32.mxu0 %v2952
        %v2954 = vand.u32 %v2512, 4294901760
        %v2955 = vsub.f32 %v2512, %v2954
        %v2956 = vand.u32 %v2955, 4294901760
        %v2957 = vsub.f32 %v2955, %v2956
        %v2958 = vand.u32 %v2957, 4294901760
        %2959 = vmatmul.mubr.f32.gmra.mxu0 %v2958
        %v2960 = vpop.f32.mrf.mxu0
        %v2961 = vadd.f32 0.0, %v2960
        %v2962 = vpop.f32.mrf.mxu0
        %v2963 = vadd.f32 0.0, %v2962
        %v2964 = vand.u32 %v2522, 4294901760
        %v2965 = vsub.f32 %v2522, %v2964
        %v2966 = vand.u32 %v2965, 4294901760
        %v2967 = vsub.f32 %v2965, %v2966
        %v2968 = vand.u32 %v2967, 4294901760
        %2969 = vmatprep.mubr.f32.mxu0 %v2968
        %v2970 = vand.u32 %v2520, 4294901760
        %v2971 = vsub.f32 %v2520, %v2970
        %v2972 = vand.u32 %v2971, 4294901760
        %v2973 = vsub.f32 %v2971, %v2972
        %v2974 = vand.u32 %v2973, 4294901760
        %2975 = vmatmul.mubr.f32.gmra.mxu0 %v2974
        %v2976 = vpop.f32.mrf.mxu0
        %v2977 = vadd.f32 0.0, %v2976
        %v2978 = vpop.f32.mrf.mxu0
        %v2979 = vadd.f32 0.0, %v2978
        %v2980 = vand.u32 %v2530, 4294901760
        %v2981 = vsub.f32 %v2530, %v2980
        %v2982 = vand.u32 %v2981, 4294901760
        %v2983 = vsub.f32 %v2981, %v2982
        %v2984 = vand.u32 %v2983, 4294901760
        %2985 = vmatprep.mubr.f32.mxu0 %v2984
        %v2986 = vand.u32 %v2528, 4294901760
        %v2987 = vsub.f32 %v2528, %v2986
        %v2988 = vand.u32 %v2987, 4294901760
        %v2989 = vsub.f32 %v2987, %v2988
        %v2990 = vand.u32 %v2989, 4294901760
        %2991 = vmatmul.mubr.f32.gmra.mxu0 %v2990
        %v2992 = vpop.f32.mrf.mxu0
        %v2993 = vadd.f32 0.0, %v2992
        %v2994 = vpop.f32.mrf.mxu0
        %v2995 = vadd.f32 0.0, %v2994
        %v2996 = vand.u32 %v2538, 4294901760
        %v2997 = vsub.f32 %v2538, %v2996
        %v2998 = vand.u32 %v2997, 4294901760
        %v2999 = vsub.f32 %v2997, %v2998
        %v3000 = vand.u32 %v2999, 4294901760
        %3001 = vmatprep.mubr.f32.mxu0 %v3000
        %v3002 = vand.u32 %v2536, 4294901760
        %v3003 = vsub.f32 %v2536, %v3002
        %v3004 = vand.u32 %v3003, 4294901760
        %v3005 = vsub.f32 %v3003, %v3004
        %v3006 = vand.u32 %v3005, 4294901760
        %3007 = vmatmul.mubr.f32.gmra.mxu0 %v3006
        %v3008 = vpop.f32.mrf.mxu0
        %v3009 = vadd.f32 0.0, %v3008
        %v3010 = vpop.f32.mrf.mxu0
        %v3011 = vadd.f32 0.0, %v3010
        %v3012 = vand.u32 %v2546, 4294901760
        %v3013 = vsub.f32 %v2546, %v3012
        %v3014 = vand.u32 %v3013, 4294901760
        %v3015 = vsub.f32 %v3013, %v3014
        %v3016 = vand.u32 %v3015, 4294901760
        %3017 = vmatprep.mubr.f32.mxu0 %v3016
        %v3018 = vand.u32 %v2544, 4294901760
        %v3019 = vsub.f32 %v2544, %v3018
        %v3020 = vand.u32 %v3019, 4294901760
        %v3021 = vsub.f32 %v3019, %v3020
        %v3022 = vand.u32 %v3021, 4294901760
        %3023 = vmatmul.mubr.f32.gmra.mxu0 %v3022
        %v3024 = vpop.f32.mrf.mxu0
        %v3025 = vadd.f32 0.0, %v3024
        %v3026 = vpop.f32.mrf.mxu0
        %v3027 = vadd.f32 0.0, %v3026
        %v3028 = vand.u32 %v2554, 4294901760
        %v3029 = vsub.f32 %v2554, %v3028
        %v3030 = vand.u32 %v3029, 4294901760
        %v3031 = vsub.f32 %v3029, %v3030
        %v3032 = vand.u32 %v3031, 4294901760
        %3033 = vmatprep.mubr.f32.mxu0 %v3032
        %v3034 = vand.u32 %v2552, 4294901760
        %v3035 = vsub.f32 %v2552, %v3034
        %v3036 = vand.u32 %v3035, 4294901760
        %v3037 = vsub.f32 %v3035, %v3036
        %v3038 = vand.u32 %v3037, 4294901760
        %3039 = vmatmul.mubr.f32.gmra.mxu0 %v3038
        %v3040 = vpop.f32.mrf.mxu0
        %v3041 = vadd.f32 0.0, %v3040
        %v3042 = vpop.f32.mrf.mxu0
        %v3043 = vadd.f32 0.0, %v3042
        %v3044 = vand.u32 %v2562, 4294901760
        %v3045 = vsub.f32 %v2562, %v3044
        %v3046 = vand.u32 %v3045, 4294901760
        %v3047 = vsub.f32 %v3045, %v3046
        %v3048 = vand.u32 %v3047, 4294901760
        %3049 = vmatprep.mubr.f32.mxu0 %v3048
        %v3050 = vand.u32 %v2560, 4294901760
        %v3051 = vsub.f32 %v2560, %v3050
        %v3052 = vand.u32 %v3051, 4294901760
        %v3053 = vsub.f32 %v3051, %v3052
        %v3054 = vand.u32 %v3053, 4294901760
        %3055 = vmatmul.mubr.f32.gmra.mxu0 %v3054
        %v3056 = vpop.f32.mrf.mxu0
        %v3057 = vadd.f32 0.0, %v3056
        %v3058 = vpop.f32.mrf.mxu0
        %v3059 = vadd.f32 0.0, %v3058
        %v3060 = vand.u32 %v2570, 4294901760
        %v3061 = vsub.f32 %v2570, %v3060
        %v3062 = vand.u32 %v3061, 4294901760
        %v3063 = vsub.f32 %v3061, %v3062
        %v3064 = vand.u32 %v3063, 4294901760
        %3065 = vmatprep.mubr.f32.mxu0 %v3064
        %v3066 = vand.u32 %v2568, 4294901760
        %v3067 = vsub.f32 %v2568, %v3066
        %v3068 = vand.u32 %v3067, 4294901760
        %v3069 = vsub.f32 %v3067, %v3068
        %v3070 = vand.u32 %v3069, 4294901760
        %3071 = vmatmul.mubr.f32.gmra.mxu0 %v3070
        %v3072 = vpop.f32.mrf.mxu0
        %v3073 = vadd.f32 0.0, %v3072
        %v3074 = vpop.f32.mrf.mxu0
        %v3075 = vadd.f32 0.0, %v3074
        %v3076 = vand.u32 %v2578, 4294901760
        %v3077 = vsub.f32 %v2578, %v3076
        %v3078 = vand.u32 %v3077, 4294901760
        %v3079 = vsub.f32 %v3077, %v3078
        %v3080 = vand.u32 %v3079, 4294901760
        %3081 = vmatprep.mubr.f32.mxu0 %v3080
        %v3082 = vand.u32 %v2576, 4294901760
        %v3083 = vsub.f32 %v2576, %v3082
        %v3084 = vand.u32 %v3083, 4294901760
        %v3085 = vsub.f32 %v3083, %v3084
        %v3086 = vand.u32 %v3085, 4294901760
        %3087 = vmatmul.mubr.f32.gmra.mxu0 %v3086
        %v3088 = vpop.f32.mrf.mxu0
        %v3089 = vadd.f32 0.0, %v3088
        %v3090 = vpop.f32.mrf.mxu0
        %v3091 = vadd.f32 0.0, %v3090
        %3092 = vdwg.mxu0
        %v3093 = vand.u32 %v2611, 4294901760
        %v3094 = vsub.f32 %v2611, %v3093
        %v3095 = vand.u32 %v3094, 4294901760
        %v3096 = vsub.f32 %v3094, %v3095
        %v3097 = vand.u32 %v3096, 4294901760
        %3098 = vmatprep.subr.mxu0 %v3097
        %v3099 = vand.u32 %v2610, 4294901760
        %v3100 = vsub.f32 %v2610, %v3099
        %v3101 = vand.u32 %v3100, 4294901760
        %v3102 = vsub.f32 %v3100, %v3101
        %v3103 = vand.u32 %v3102, 4294901760
        %3104 = vmatpush1.msra.mxu0 %v3103
        %v3105 = vand.u32 %v2609, 4294901760
        %v3106 = vsub.f32 %v2609, %v3105
        %v3107 = vand.u32 %v3106, 4294901760
        %v3108 = vsub.f32 %v3106, %v3107
        %v3109 = vand.u32 %v3108, 4294901760
        %3110 = vmatprep.subr.mxu0 %v3109
        %v3111 = vand.u32 %v2608, 4294901760
        %v3112 = vsub.f32 %v2608, %v3111
        %v3113 = vand.u32 %v3112, 4294901760
        %v3114 = vsub.f32 %v3112, %v3113
        %v3115 = vand.u32 %v3114, 4294901760
        %3116 = vmatpush1.msra.mxu0 %v3115
        %v3117 = vand.u32 %v2607, 4294901760
        %v3118 = vsub.f32 %v2607, %v3117
        %v3119 = vand.u32 %v3118, 4294901760
        %v3120 = vsub.f32 %v3118, %v3119
        %v3121 = vand.u32 %v3120, 4294901760
        %3122 = vmatprep.subr.mxu0 %v3121
        %v3123 = vand.u32 %v2606, 4294901760
        %v3124 = vsub.f32 %v2606, %v3123
        %v3125 = vand.u32 %v3124, 4294901760
        %v3126 = vsub.f32 %v3124, %v3125
        %v3127 = vand.u32 %v3126, 4294901760
        %3128 = vmatpush1.msra.mxu0 %v3127
        %v3129 = vand.u32 %v2605, 4294901760
        %v3130 = vsub.f32 %v2605, %v3129
        %v3131 = vand.u32 %v3130, 4294901760
        %v3132 = vsub.f32 %v3130, %v3131
        %v3133 = vand.u32 %v3132, 4294901760
        %3134 = vmatprep.subr.mxu0 %v3133
        %v3135 = vand.u32 %v2604, 4294901760
        %v3136 = vsub.f32 %v2604, %v3135
        %v3137 = vand.u32 %v3136, 4294901760
        %v3138 = vsub.f32 %v3136, %v3137
        %v3139 = vand.u32 %v3138, 4294901760
        %3140 = vmatpush1.msra.mxu0 %v3139
        %v3141 = vand.u32 %v2603, 4294901760
        %v3142 = vsub.f32 %v2603, %v3141
        %v3143 = vand.u32 %v3142, 4294901760
        %v3144 = vsub.f32 %v3142, %v3143
        %v3145 = vand.u32 %v3144, 4294901760
        %3146 = vmatprep.subr.mxu0 %v3145
        %v3147 = vand.u32 %v2602, 4294901760
        %v3148 = vsub.f32 %v2602, %v3147
        %v3149 = vand.u32 %v3148, 4294901760
        %v3150 = vsub.f32 %v3148, %v3149
        %v3151 = vand.u32 %v3150, 4294901760
        %3152 = vmatpush1.msra.mxu0 %v3151
        %v3153 = vand.u32 %v2601, 4294901760
        %v3154 = vsub.f32 %v2601, %v3153
        %v3155 = vand.u32 %v3154, 4294901760
        %v3156 = vsub.f32 %v3154, %v3155
        %v3157 = vand.u32 %v3156, 4294901760
        %3158 = vmatprep.subr.mxu0 %v3157
        %v3159 = vand.u32 %v2600, 4294901760
        %v3160 = vsub.f32 %v2600, %v3159
        %v3161 = vand.u32 %v3160, 4294901760
        %v3162 = vsub.f32 %v3160, %v3161
        %v3163 = vand.u32 %v3162, 4294901760
        %3164 = vmatpush1.msra.mxu0 %v3163
        %v3165 = vand.u32 %v2599, 4294901760
        %v3166 = vsub.f32 %v2599, %v3165
        %v3167 = vand.u32 %v3166, 4294901760
        %v3168 = vsub.f32 %v3166, %v3167
        %v3169 = vand.u32 %v3168, 4294901760
        %3170 = vmatprep.subr.mxu0 %v3169
        %v3171 = vand.u32 %v2598, 4294901760
        %v3172 = vsub.f32 %v2598, %v3171
        %v3173 = vand.u32 %v3172, 4294901760
        %v3174 = vsub.f32 %v3172, %v3173
        %v3175 = vand.u32 %v3174, 4294901760
        %3176 = vmatpush1.msra.mxu0 %v3175
        %v3177 = vand.u32 %v2597, 4294901760
        %v3178 = vsub.f32 %v2597, %v3177
        %v3179 = vand.u32 %v3178, 4294901760
        %v3180 = vsub.f32 %v3178, %v3179
        %v3181 = vand.u32 %v3180, 4294901760
        %3182 = vmatprep.subr.mxu0 %v3181
        %v3183 = vand.u32 %v2596, 4294901760
        %v3184 = vsub.f32 %v2596, %v3183
        %v3185 = vand.u32 %v3184, 4294901760
        %v3186 = vsub.f32 %v3184, %v3185
        %v3187 = vand.u32 %v3186, 4294901760
        %3188 = vmatpush1.msra.mxu0 %v3187
        %v3189 = vand.u32 %v2595, 4294901760
        %v3190 = vsub.f32 %v2595, %v3189
        %v3191 = vand.u32 %v3190, 4294901760
        %v3192 = vsub.f32 %v3190, %v3191
        %v3193 = vand.u32 %v3192, 4294901760
        %3194 = vmatprep.subr.mxu0 %v3193
        %v3195 = vand.u32 %v2594, 4294901760
        %v3196 = vsub.f32 %v2594, %v3195
        %v3197 = vand.u32 %v3196, 4294901760
        %v3198 = vsub.f32 %v3196, %v3197
        %v3199 = vand.u32 %v3198, 4294901760
        %3200 = vmatpush1.msra.mxu0 %v3199
        %v3201 = vand.u32 %v2593, 4294901760
        %v3202 = vsub.f32 %v2593, %v3201
        %v3203 = vand.u32 %v3202, 4294901760
        %v3204 = vsub.f32 %v3202, %v3203
        %v3205 = vand.u32 %v3204, 4294901760
        %3206 = vmatprep.subr.mxu0 %v3205
        %v3207 = vand.u32 %v2592, 4294901760
        %v3208 = vsub.f32 %v2592, %v3207
        %v3209 = vand.u32 %v3208, 4294901760
        %v3210 = vsub.f32 %v3208, %v3209
        %v3211 = vand.u32 %v3210, 4294901760
        %3212 = vmatpush1.msra.mxu0 %v3211
        %v3213 = vand.u32 %v2591, 4294901760
        %v3214 = vsub.f32 %v2591, %v3213
        %v3215 = vand.u32 %v3214, 4294901760
        %v3216 = vsub.f32 %v3214, %v3215
        %v3217 = vand.u32 %v3216, 4294901760
        %3218 = vmatprep.subr.mxu0 %v3217
        %v3219 = vand.u32 %v2590, 4294901760
        %v3220 = vsub.f32 %v2590, %v3219
        %v3221 = vand.u32 %v3220, 4294901760
        %v3222 = vsub.f32 %v3220, %v3221
        %v3223 = vand.u32 %v3222, 4294901760
        %3224 = vmatpush1.msra.mxu0 %v3223
        %v3225 = vand.u32 %v2589, 4294901760
        %v3226 = vsub.f32 %v2589, %v3225
        %v3227 = vand.u32 %v3226, 4294901760
        %v3228 = vsub.f32 %v3226, %v3227
        %v3229 = vand.u32 %v3228, 4294901760
        %3230 = vmatprep.subr.mxu0 %v3229
        %v3231 = vand.u32 %v2588, 4294901760
        %v3232 = vsub.f32 %v2588, %v3231
        %v3233 = vand.u32 %v3232, 4294901760
        %v3234 = vsub.f32 %v3232, %v3233
        %v3235 = vand.u32 %v3234, 4294901760
        %3236 = vmatpush1.msra.mxu0 %v3235
        %v3237 = vand.u32 %v2587, 4294901760
        %v3238 = vsub.f32 %v2587, %v3237
        %v3239 = vand.u32 %v3238, 4294901760
        %v3240 = vsub.f32 %v3238, %v3239
        %v3241 = vand.u32 %v3240, 4294901760
        %3242 = vmatprep.subr.mxu0 %v3241
        %v3243 = vand.u32 %v2586, 4294901760
        %v3244 = vsub.f32 %v2586, %v3243
        %v3245 = vand.u32 %v3244, 4294901760
        %v3246 = vsub.f32 %v3244, %v3245
        %v3247 = vand.u32 %v3246, 4294901760
        %3248 = vmatpush1.msra.mxu0 %v3247
        %v3249 = vand.u32 %v2585, 4294901760
        %v3250 = vsub.f32 %v2585, %v3249
        %v3251 = vand.u32 %v3250, 4294901760
        %v3252 = vsub.f32 %v3250, %v3251
        %v3253 = vand.u32 %v3252, 4294901760
        %3254 = vmatprep.subr.mxu0 %v3253
        %v3255 = vand.u32 %v2584, 4294901760
        %v3256 = vsub.f32 %v2584, %v3255
        %v3257 = vand.u32 %v3256, 4294901760
        %v3258 = vsub.f32 %v3256, %v3257
        %v3259 = vand.u32 %v3258, 4294901760
        %3260 = vmatpush1.msra.mxu0 %v3259
        %v3261 = vand.u32 %v2583, 4294901760
        %v3262 = vsub.f32 %v2583, %v3261
        %v3263 = vand.u32 %v3262, 4294901760
        %v3264 = vsub.f32 %v3262, %v3263
        %v3265 = vand.u32 %v3264, 4294901760
        %3266 = vmatprep.subr.mxu0 %v3265
        %v3267 = vand.u32 %v2582, 4294901760
        %v3268 = vsub.f32 %v2582, %v3267
        %v3269 = vand.u32 %v3268, 4294901760
        %v3270 = vsub.f32 %v3268, %v3269
        %v3271 = vand.u32 %v3270, 4294901760
        %3272 = vmatpush1.msra.mxu0 %v3271
        %v3273 = vand.u32 %v2581, 4294901760
        %v3274 = vsub.f32 %v2581, %v3273
        %v3275 = vand.u32 %v3274, 4294901760
        %v3276 = vsub.f32 %v3274, %v3275
        %v3277 = vand.u32 %v3276, 4294901760
        %3278 = vmatprep.subr.mxu0 %v3277
        %v3279 = vand.u32 %v2580, 4294901760
        %v3280 = vsub.f32 %v2580, %v3279
        %v3281 = vand.u32 %v3280, 4294901760
        %v3282 = vsub.f32 %v3280, %v3281
        %v3283 = vand.u32 %v3282, 4294901760
        %3284 = vmatpush1.msra.mxu0 %v3283
        %v3285 = vand.u32 %v2643, 4294901760
        %v3286 = vsub.f32 %v2643, %v3285
        %v3287 = vand.u32 %v3286, 4294901760
        %v3288 = vsub.f32 %v3286, %v3287
        %v3289 = vand.u32 %v3288, 4294901760
        %3290 = vmatprep.subr.mxu0 %v3289
        %v3291 = vand.u32 %v2642, 4294901760
        %v3292 = vsub.f32 %v2642, %v3291
        %v3293 = vand.u32 %v3292, 4294901760
        %v3294 = vsub.f32 %v3292, %v3293
        %v3295 = vand.u32 %v3294, 4294901760
        %3296 = vmatpush2.msra.mxu0 %v3295
        %v3297 = vand.u32 %v2641, 4294901760
        %v3298 = vsub.f32 %v2641, %v3297
        %v3299 = vand.u32 %v3298, 4294901760
        %v3300 = vsub.f32 %v3298, %v3299
        %v3301 = vand.u32 %v3300, 4294901760
        %3302 = vmatprep.subr.mxu0 %v3301
        %v3303 = vand.u32 %v2640, 4294901760
        %v3304 = vsub.f32 %v2640, %v3303
        %v3305 = vand.u32 %v3304, 4294901760
        %v3306 = vsub.f32 %v3304, %v3305
        %v3307 = vand.u32 %v3306, 4294901760
        %3308 = vmatpush2.msra.mxu0 %v3307
        %v3309 = vand.u32 %v2639, 4294901760
        %v3310 = vsub.f32 %v2639, %v3309
        %v3311 = vand.u32 %v3310, 4294901760
        %v3312 = vsub.f32 %v3310, %v3311
        %v3313 = vand.u32 %v3312, 4294901760
        %3314 = vmatprep.subr.mxu0 %v3313
        %v3315 = vand.u32 %v2638, 4294901760
        %v3316 = vsub.f32 %v2638, %v3315
        %v3317 = vand.u32 %v3316, 4294901760
        %v3318 = vsub.f32 %v3316, %v3317
        %v3319 = vand.u32 %v3318, 4294901760
        %3320 = vmatpush2.msra.mxu0 %v3319
        %v3321 = vand.u32 %v2637, 4294901760
        %v3322 = vsub.f32 %v2637, %v3321
        %v3323 = vand.u32 %v3322, 4294901760
        %v3324 = vsub.f32 %v3322, %v3323
        %v3325 = vand.u32 %v3324, 4294901760
        %3326 = vmatprep.subr.mxu0 %v3325
        %v3327 = vand.u32 %v2636, 4294901760
        %v3328 = vsub.f32 %v2636, %v3327
        %v3329 = vand.u32 %v3328, 4294901760
        %v3330 = vsub.f32 %v3328, %v3329
        %v3331 = vand.u32 %v3330, 4294901760
        %3332 = vmatpush2.msra.mxu0 %v3331
        %v3333 = vand.u32 %v2635, 4294901760
        %v3334 = vsub.f32 %v2635, %v3333
        %v3335 = vand.u32 %v3334, 4294901760
        %v3336 = vsub.f32 %v3334, %v3335
        %v3337 = vand.u32 %v3336, 4294901760
        %3338 = vmatprep.subr.mxu0 %v3337
        %v3339 = vand.u32 %v2634, 4294901760
        %v3340 = vsub.f32 %v2634, %v3339
        %v3341 = vand.u32 %v3340, 4294901760
        %v3342 = vsub.f32 %v3340, %v3341
        %v3343 = vand.u32 %v3342, 4294901760
        %3344 = vmatpush2.msra.mxu0 %v3343
        %v3345 = vand.u32 %v2633, 4294901760
        %v3346 = vsub.f32 %v2633, %v3345
        %v3347 = vand.u32 %v3346, 4294901760
        %v3348 = vsub.f32 %v3346, %v3347
        %v3349 = vand.u32 %v3348, 4294901760
        %3350 = vmatprep.subr.mxu0 %v3349
        %v3351 = vand.u32 %v2632, 4294901760
        %v3352 = vsub.f32 %v2632, %v3351
        %v3353 = vand.u32 %v3352, 4294901760
        %v3354 = vsub.f32 %v3352, %v3353
        %v3355 = vand.u32 %v3354, 4294901760
        %3356 = vmatpush2.msra.mxu0 %v3355
        %v3357 = vand.u32 %v2631, 4294901760
        %v3358 = vsub.f32 %v2631, %v3357
        %v3359 = vand.u32 %v3358, 4294901760
        %v3360 = vsub.f32 %v3358, %v3359
        %v3361 = vand.u32 %v3360, 4294901760
        %3362 = vmatprep.subr.mxu0 %v3361
        %v3363 = vand.u32 %v2630, 4294901760
        %v3364 = vsub.f32 %v2630, %v3363
        %v3365 = vand.u32 %v3364, 4294901760
        %v3366 = vsub.f32 %v3364, %v3365
        %v3367 = vand.u32 %v3366, 4294901760
        %3368 = vmatpush2.msra.mxu0 %v3367
        %v3369 = vand.u32 %v2629, 4294901760
        %v3370 = vsub.f32 %v2629, %v3369
        %v3371 = vand.u32 %v3370, 4294901760
        %v3372 = vsub.f32 %v3370, %v3371
        %v3373 = vand.u32 %v3372, 4294901760
        %3374 = vmatprep.subr.mxu0 %v3373
        %v3375 = vand.u32 %v2628, 4294901760
        %v3376 = vsub.f32 %v2628, %v3375
        %v3377 = vand.u32 %v3376, 4294901760
        %v3378 = vsub.f32 %v3376, %v3377
        %v3379 = vand.u32 %v3378, 4294901760
        %3380 = vmatpush2.msra.mxu0 %v3379
        %v3381 = vand.u32 %v2627, 4294901760
        %v3382 = vsub.f32 %v2627, %v3381
        %v3383 = vand.u32 %v3382, 4294901760
        %v3384 = vsub.f32 %v3382, %v3383
        %v3385 = vand.u32 %v3384, 4294901760
        %3386 = vmatprep.subr.mxu0 %v3385
        %v3387 = vand.u32 %v2626, 4294901760
        %v3388 = vsub.f32 %v2626, %v3387
        %v3389 = vand.u32 %v3388, 4294901760
        %v3390 = vsub.f32 %v3388, %v3389
        %v3391 = vand.u32 %v3390, 4294901760
        %3392 = vmatpush2.msra.mxu0 %v3391
        %v3393 = vand.u32 %v2625, 4294901760
        %v3394 = vsub.f32 %v2625, %v3393
        %v3395 = vand.u32 %v3394, 4294901760
        %v3396 = vsub.f32 %v3394, %v3395
        %v3397 = vand.u32 %v3396, 4294901760
        %3398 = vmatprep.subr.mxu0 %v3397
        %v3399 = vand.u32 %v2624, 4294901760
        %v3400 = vsub.f32 %v2624, %v3399
        %v3401 = vand.u32 %v3400, 4294901760
        %v3402 = vsub.f32 %v3400, %v3401
        %v3403 = vand.u32 %v3402, 4294901760
        %3404 = vmatpush2.msra.mxu0 %v3403
        %v3405 = vand.u32 %v2623, 4294901760
        %v3406 = vsub.f32 %v2623, %v3405
        %v3407 = vand.u32 %v3406, 4294901760
        %v3408 = vsub.f32 %v3406, %v3407
        %v3409 = vand.u32 %v3408, 4294901760
        %3410 = vmatprep.subr.mxu0 %v3409
        %v3411 = vand.u32 %v2622, 4294901760
        %v3412 = vsub.f32 %v2622, %v3411
        %v3413 = vand.u32 %v3412, 4294901760
        %v3414 = vsub.f32 %v3412, %v3413
        %v3415 = vand.u32 %v3414, 4294901760
        %3416 = vmatpush2.msra.mxu0 %v3415
        %v3417 = vand.u32 %v2621, 4294901760
        %v3418 = vsub.f32 %v2621, %v3417
        %v3419 = vand.u32 %v3418, 4294901760
        %v3420 = vsub.f32 %v3418, %v3419
        %v3421 = vand.u32 %v3420, 4294901760
        %3422 = vmatprep.subr.mxu0 %v3421
        %v3423 = vand.u32 %v2620, 4294901760
        %v3424 = vsub.f32 %v2620, %v3423
        %v3425 = vand.u32 %v3424, 4294901760
        %v3426 = vsub.f32 %v3424, %v3425
        %v3427 = vand.u32 %v3426, 4294901760
        %3428 = vmatpush2.msra.mxu0 %v3427
        %v3429 = vand.u32 %v2619, 4294901760
        %v3430 = vsub.f32 %v2619, %v3429
        %v3431 = vand.u32 %v3430, 4294901760
        %v3432 = vsub.f32 %v3430, %v3431
        %v3433 = vand.u32 %v3432, 4294901760
        %3434 = vmatprep.subr.mxu0 %v3433
        %v3435 = vand.u32 %v2618, 4294901760
        %v3436 = vsub.f32 %v2618, %v3435
        %v3437 = vand.u32 %v3436, 4294901760
        %v3438 = vsub.f32 %v3436, %v3437
        %v3439 = vand.u32 %v3438, 4294901760
        %3440 = vmatpush2.msra.mxu0 %v3439
        %v3441 = vand.u32 %v2617, 4294901760
        %v3442 = vsub.f32 %v2617, %v3441
        %v3443 = vand.u32 %v3442, 4294901760
        %v3444 = vsub.f32 %v3442, %v3443
        %v3445 = vand.u32 %v3444, 4294901760
        %3446 = vmatprep.subr.mxu0 %v3445
        %v3447 = vand.u32 %v2616, 4294901760
        %v3448 = vsub.f32 %v2616, %v3447
        %v3449 = vand.u32 %v3448, 4294901760
        %v3450 = vsub.f32 %v3448, %v3449
        %v3451 = vand.u32 %v3450, 4294901760
        %3452 = vmatpush2.msra.mxu0 %v3451
        %v3453 = vand.u32 %v2615, 4294901760
        %v3454 = vsub.f32 %v2615, %v3453
        %v3455 = vand.u32 %v3454, 4294901760
        %v3456 = vsub.f32 %v3454, %v3455
        %v3457 = vand.u32 %v3456, 4294901760
        %3458 = vmatprep.subr.mxu0 %v3457
        %v3459 = vand.u32 %v2614, 4294901760
        %v3460 = vsub.f32 %v2614, %v3459
        %v3461 = vand.u32 %v3460, 4294901760
        %v3462 = vsub.f32 %v3460, %v3461
        %v3463 = vand.u32 %v3462, 4294901760
        %3464 = vmatpush2.msra.mxu0 %v3463
        %v3465 = vand.u32 %v2613, 4294901760
        %v3466 = vsub.f32 %v2613, %v3465
        %v3467 = vand.u32 %v3466, 4294901760
        %v3468 = vsub.f32 %v3466, %v3467
        %v3469 = vand.u32 %v3468, 4294901760
        %3470 = vmatprep.subr.mxu0 %v3469
        %v3471 = vand.u32 %v2612, 4294901760
        %v3472 = vsub.f32 %v2612, %v3471
        %v3473 = vand.u32 %v3472, 4294901760
        %v3474 = vsub.f32 %v3472, %v3473
        %v3475 = vand.u32 %v3474, 4294901760
        %3476 = vmatpush2.msra.mxu0 %v3475
        %v3477 = vand.u32 %v2426, 4294901760
        %3478 = vmatprep.mubr.f32.mxu0 %v3477
        %v3479 = vand.u32 %v2424, 4294901760
        %3480 = vmatmul.mubr.f32.gmra.mxu0 %v3479
        %v3481 = vpop.f32.mrf.mxu0
        %v3482 = vadd.f32 %v2785, %v3481
        %v3483 = vpop.f32.mrf.mxu0
        %v3484 = vadd.f32 %v2787, %v3483
        %v3485 = vand.u32 %v2434, 4294901760
        %3486 = vmatprep.mubr.f32.mxu0 %v3485
        %v3487 = vand.u32 %v2432, 4294901760
        %3488 = vmatmul.mubr.f32.gmra.mxu0 %v3487
        %v3489 = vpop.f32.mrf.mxu0
        %v3490 = vadd.f32 %v2801, %v3489
        %v3491 = vpop.f32.mrf.mxu0
        %v3492 = vadd.f32 %v2803, %v3491
        %v3493 = vand.u32 %v2442, 4294901760
        %3494 = vmatprep.mubr.f32.mxu0 %v3493
        %v3495 = vand.u32 %v2440, 4294901760
        %3496 = vmatmul.mubr.f32.gmra.mxu0 %v3495
        %v3497 = vpop.f32.mrf.mxu0
        %v3498 = vadd.f32 %v2817, %v3497
        %v3499 = vpop.f32.mrf.mxu0
        %v3500 = vadd.f32 %v2819, %v3499
        %v3501 = vand.u32 %v2450, 4294901760
        %3502 = vmatprep.mubr.f32.mxu0 %v3501
        %v3503 = vand.u32 %v2448, 4294901760
        %3504 = vmatmul.mubr.f32.gmra.mxu0 %v3503
        %v3505 = vpop.f32.mrf.mxu0
        %v3506 = vadd.f32 %v2833, %v3505
        %v3507 = vpop.f32.mrf.mxu0
        %v3508 = vadd.f32 %v2835, %v3507
        %v3509 = vand.u32 %v2458, 4294901760
        %3510 = vmatprep.mubr.f32.mxu0 %v3509
        %v3511 = vand.u32 %v2456, 4294901760
        %3512 = vmatmul.mubr.f32.gmra.mxu0 %v3511
        %v3513 = vpop.f32.mrf.mxu0
        %v3514 = vadd.f32 %v2849, %v3513
        %v3515 = vpop.f32.mrf.mxu0
        %v3516 = vadd.f32 %v2851, %v3515
        %v3517 = vand.u32 %v2466, 4294901760
        %3518 = vmatprep.mubr.f32.mxu0 %v3517
        %v3519 = vand.u32 %v2464, 4294901760
        %3520 = vmatmul.mubr.f32.gmra.mxu0 %v3519
        %v3521 = vpop.f32.mrf.mxu0
        %v3522 = vadd.f32 %v2865, %v3521
        %v3523 = vpop.f32.mrf.mxu0
        %v3524 = vadd.f32 %v2867, %v3523
        %v3525 = vand.u32 %v2474, 4294901760
        %3526 = vmatprep.mubr.f32.mxu0 %v3525
        %v3527 = vand.u32 %v2472, 4294901760
        %3528 = vmatmul.mubr.f32.gmra.mxu0 %v3527
        %v3529 = vpop.f32.mrf.mxu0
        %v3530 = vadd.f32 %v2881, %v3529
        %v3531 = vpop.f32.mrf.mxu0
        %v3532 = vadd.f32 %v2883, %v3531
        %v3533 = vand.u32 %v2482, 4294901760
        %3534 = vmatprep.mubr.f32.mxu0 %v3533
        %v3535 = vand.u32 %v2480, 4294901760
        %3536 = vmatmul.mubr.f32.gmra.mxu0 %v3535
        %v3537 = vpop.f32.mrf.mxu0
        %v3538 = vadd.f32 %v2897, %v3537
        %v3539 = vpop.f32.mrf.mxu0
        %v3540 = vadd.f32 %v2899, %v3539
        %v3541 = vand.u32 %v2490, 4294901760
        %3542 = vmatprep.mubr.f32.mxu0 %v3541
        %v3543 = vand.u32 %v2488, 4294901760
        %3544 = vmatmul.mubr.f32.gmra.mxu0 %v3543
        %v3545 = vpop.f32.mrf.mxu0
        %v3546 = vadd.f32 %v2913, %v3545
        %v3547 = vpop.f32.mrf.mxu0
        %v3548 = vadd.f32 %v2915, %v3547
        %v3549 = vand.u32 %v2498, 4294901760
        %3550 = vmatprep.mubr.f32.mxu0 %v3549
        %v3551 = vand.u32 %v2496, 4294901760
        %3552 = vmatmul.mubr.f32.gmra.mxu0 %v3551
        %v3553 = vpop.f32.mrf.mxu0
        %v3554 = vadd.f32 %v2929, %v3553
        %v3555 = vpop.f32.mrf.mxu0
        %v3556 = vadd.f32 %v2931, %v3555
        %v3557 = vand.u32 %v2506, 4294901760
        %3558 = vmatprep.mubr.f32.mxu0 %v3557
        %v3559 = vand.u32 %v2504, 4294901760
        %3560 = vmatmul.mubr.f32.gmra.mxu0 %v3559
        %v3561 = vpop.f32.mrf.mxu0
        %v3562 = vadd.f32 %v2945, %v3561
        %v3563 = vpop.f32.mrf.mxu0
        %v3564 = vadd.f32 %v2947, %v3563
        %v3565 = vand.u32 %v2514, 4294901760
        %3566 = vmatprep.mubr.f32.mxu0 %v3565
        %v3567 = vand.u32 %v2512, 4294901760
        %3568 = vmatmul.mubr.f32.gmra.mxu0 %v3567
        %v3569 = vpop.f32.mrf.mxu0
        %v3570 = vadd.f32 %v2961, %v3569
        %v3571 = vpop.f32.mrf.mxu0
        %v3572 = vadd.f32 %v2963, %v3571
        %v3573 = vand.u32 %v2522, 4294901760
        %3574 = vmatprep.mubr.f32.mxu0 %v3573
        %v3575 = vand.u32 %v2520, 4294901760
        %3576 = vmatmul.mubr.f32.gmra.mxu0 %v3575
        %v3577 = vpop.f32.mrf.mxu0
        %v3578 = vadd.f32 %v2977, %v3577
        %v3579 = vpop.f32.mrf.mxu0
        %v3580 = vadd.f32 %v2979, %v3579
        %v3581 = vand.u32 %v2530, 4294901760
        %3582 = vmatprep.mubr.f32.mxu0 %v3581
        %v3583 = vand.u32 %v2528, 4294901760
        %3584 = vmatmul.mubr.f32.gmra.mxu0 %v3583
        %v3585 = vpop.f32.mrf.mxu0
        %v3586 = vadd.f32 %v2993, %v3585
        %v3587 = vpop.f32.mrf.mxu0
        %v3588 = vadd.f32 %v2995, %v3587
        %v3589 = vand.u32 %v2538, 4294901760
        %3590 = vmatprep.mubr.f32.mxu0 %v3589
        %v3591 = vand.u32 %v2536, 4294901760
        %3592 = vmatmul.mubr.f32.gmra.mxu0 %v3591
        %v3593 = vpop.f32.mrf.mxu0
        %v3594 = vadd.f32 %v3009, %v3593
        %v3595 = vpop.f32.mrf.mxu0
        %v3596 = vadd.f32 %v3011, %v3595
        %v3597 = vand.u32 %v2546, 4294901760
        %3598 = vmatprep.mubr.f32.mxu0 %v3597
        %v3599 = vand.u32 %v2544, 4294901760
        %3600 = vmatmul.mubr.f32.gmra.mxu0 %v3599
        %v3601 = vpop.f32.mrf.mxu0
        %v3602 = vadd.f32 %v3025, %v3601
        %v3603 = vpop.f32.mrf.mxu0
        %v3604 = vadd.f32 %v3027, %v3603
        %v3605 = vand.u32 %v2554, 4294901760
        %3606 = vmatprep.mubr.f32.mxu0 %v3605
        %v3607 = vand.u32 %v2552, 4294901760
        %3608 = vmatmul.mubr.f32.gmra.mxu0 %v3607
        %v3609 = vpop.f32.mrf.mxu0
        %v3610 = vadd.f32 %v3041, %v3609
        %v3611 = vpop.f32.mrf.mxu0
        %v3612 = vadd.f32 %v3043, %v3611
        %v3613 = vand.u32 %v2562, 4294901760
        %3614 = vmatprep.mubr.f32.mxu0 %v3613
        %v3615 = vand.u32 %v2560, 4294901760
        %3616 = vmatmul.mubr.f32.gmra.mxu0 %v3615
        %v3617 = vpop.f32.mrf.mxu0
        %v3618 = vadd.f32 %v3057, %v3617
        %v3619 = vpop.f32.mrf.mxu0
        %v3620 = vadd.f32 %v3059, %v3619
        %v3621 = vand.u32 %v2570, 4294901760
        %3622 = vmatprep.mubr.f32.mxu0 %v3621
        %v3623 = vand.u32 %v2568, 4294901760
        %3624 = vmatmul.mubr.f32.gmra.mxu0 %v3623
        %v3625 = vpop.f32.mrf.mxu0
        %v3626 = vadd.f32 %v3073, %v3625
        %v3627 = vpop.f32.mrf.mxu0
        %v3628 = vadd.f32 %v3075, %v3627
        %v3629 = vand.u32 %v2578, 4294901760
        %3630 = vmatprep.mubr.f32.mxu0 %v3629
        %v3631 = vand.u32 %v2576, 4294901760
        %3632 = vmatmul.mubr.f32.gmra.mxu0 %v3631
        %v3633 = vpop.f32.mrf.mxu0
        %v3634 = vadd.f32 %v3089, %v3633
        %v3635 = vpop.f32.mrf.mxu0
        %v3636 = vadd.f32 %v3091, %v3635
        %3637 = vdwg.mxu0
        %v3638 = vand.u32 %v2611, 4294901760
        %v3639 = vsub.f32 %v2611, %v3638
        %3640 = vmatprep.subr.mxu0 %v3639
        %v3641 = vand.u32 %v2610, 4294901760
        %v3642 = vsub.f32 %v2610, %v3641
        %3643 = vmatpush1.msra.mxu0 %v3642
        %v3644 = vand.u32 %v2609, 4294901760
        %v3645 = vsub.f32 %v2609, %v3644
        %3646 = vmatprep.subr.mxu0 %v3645
        %v3647 = vand.u32 %v2608, 4294901760
        %v3648 = vsub.f32 %v2608, %v3647
        %3649 = vmatpush1.msra.mxu0 %v3648
        %v3650 = vand.u32 %v2607, 4294901760
        %v3651 = vsub.f32 %v2607, %v3650
        %3652 = vmatprep.subr.mxu0 %v3651
        %v3653 = vand.u32 %v2606, 4294901760
        %v3654 = vsub.f32 %v2606, %v3653
        %3655 = vmatpush1.msra.mxu0 %v3654
        %v3656 = vand.u32 %v2605, 4294901760
        %v3657 = vsub.f32 %v2605, %v3656
        %3658 = vmatprep.subr.mxu0 %v3657
        %v3659 = vand.u32 %v2604, 4294901760
        %v3660 = vsub.f32 %v2604, %v3659
        %3661 = vmatpush1.msra.mxu0 %v3660
        %v3662 = vand.u32 %v2603, 4294901760
        %v3663 = vsub.f32 %v2603, %v3662
        %3664 = vmatprep.subr.mxu0 %v3663
        %v3665 = vand.u32 %v2602, 4294901760
        %v3666 = vsub.f32 %v2602, %v3665
        %3667 = vmatpush1.msra.mxu0 %v3666
        %v3668 = vand.u32 %v2601, 4294901760
        %v3669 = vsub.f32 %v2601, %v3668
        %3670 = vmatprep.subr.mxu0 %v3669
        %v3671 = vand.u32 %v2600, 4294901760
        %v3672 = vsub.f32 %v2600, %v3671
        %3673 = vmatpush1.msra.mxu0 %v3672
        %v3674 = vand.u32 %v2599, 4294901760
        %v3675 = vsub.f32 %v2599, %v3674
        %3676 = vmatprep.subr.mxu0 %v3675
        %v3677 = vand.u32 %v2598, 4294901760
        %v3678 = vsub.f32 %v2598, %v3677
        %3679 = vmatpush1.msra.mxu0 %v3678
        %v3680 = vand.u32 %v2597, 4294901760
        %v3681 = vsub.f32 %v2597, %v3680
        %3682 = vmatprep.subr.mxu0 %v3681
        %v3683 = vand.u32 %v2596, 4294901760
        %v3684 = vsub.f32 %v2596, %v3683
        %3685 = vmatpush1.msra.mxu0 %v3684
        %v3686 = vand.u32 %v2595, 4294901760
        %v3687 = vsub.f32 %v2595, %v3686
        %3688 = vmatprep.subr.mxu0 %v3687
        %v3689 = vand.u32 %v2594, 4294901760
        %v3690 = vsub.f32 %v2594, %v3689
        %3691 = vmatpush1.msra.mxu0 %v3690
        %v3692 = vand.u32 %v2593, 4294901760
        %v3693 = vsub.f32 %v2593, %v3692
        %3694 = vmatprep.subr.mxu0 %v3693
        %v3695 = vand.u32 %v2592, 4294901760
        %v3696 = vsub.f32 %v2592, %v3695
        %3697 = vmatpush1.msra.mxu0 %v3696
        %v3698 = vand.u32 %v2591, 4294901760
        %v3699 = vsub.f32 %v2591, %v3698
        %3700 = vmatprep.subr.mxu0 %v3699
        %v3701 = vand.u32 %v2590, 4294901760
        %v3702 = vsub.f32 %v2590, %v3701
        %3703 = vmatpush1.msra.mxu0 %v3702
        %v3704 = vand.u32 %v2589, 4294901760
        %v3705 = vsub.f32 %v2589, %v3704
        %3706 = vmatprep.subr.mxu0 %v3705
        %v3707 = vand.u32 %v2588, 4294901760
        %v3708 = vsub.f32 %v2588, %v3707
        %3709 = vmatpush1.msra.mxu0 %v3708
        %v3710 = vand.u32 %v2587, 4294901760
        %v3711 = vsub.f32 %v2587, %v3710
        %3712 = vmatprep.subr.mxu0 %v3711
        %v3713 = vand.u32 %v2586, 4294901760
        %v3714 = vsub.f32 %v2586, %v3713
        %3715 = vmatpush1.msra.mxu0 %v3714
        %v3716 = vand.u32 %v2585, 4294901760
        %v3717 = vsub.f32 %v2585, %v3716
        %3718 = vmatprep.subr.mxu0 %v3717
        %v3719 = vand.u32 %v2584, 4294901760
        %v3720 = vsub.f32 %v2584, %v3719
        %3721 = vmatpush1.msra.mxu0 %v3720
        %v3722 = vand.u32 %v2583, 4294901760
        %v3723 = vsub.f32 %v2583, %v3722
        %3724 = vmatprep.subr.mxu0 %v3723
        %v3725 = vand.u32 %v2582, 4294901760
        %v3726 = vsub.f32 %v2582, %v3725
        %3727 = vmatpush1.msra.mxu0 %v3726
        %v3728 = vand.u32 %v2581, 4294901760
        %v3729 = vsub.f32 %v2581, %v3728
        %3730 = vmatprep.subr.mxu0 %v3729
        %v3731 = vand.u32 %v2580, 4294901760
        %v3732 = vsub.f32 %v2580, %v3731
        %3733 = vmatpush1.msra.mxu0 %v3732
        %v3734 = vand.u32 %v2643, 4294901760
        %v3735 = vsub.f32 %v2643, %v3734
        %3736 = vmatprep.subr.mxu0 %v3735
        %v3737 = vand.u32 %v2642, 4294901760
        %v3738 = vsub.f32 %v2642, %v3737
        %3739 = vmatpush2.msra.mxu0 %v3738
        %v3740 = vand.u32 %v2641, 4294901760
        %v3741 = vsub.f32 %v2641, %v3740
        %3742 = vmatprep.subr.mxu0 %v3741
        %v3743 = vand.u32 %v2640, 4294901760
        %v3744 = vsub.f32 %v2640, %v3743
        %3745 = vmatpush2.msra.mxu0 %v3744
        %v3746 = vand.u32 %v2639, 4294901760
        %v3747 = vsub.f32 %v2639, %v3746
        %3748 = vmatprep.subr.mxu0 %v3747
        %v3749 = vand.u32 %v2638, 4294901760
        %v3750 = vsub.f32 %v2638, %v3749
        %3751 = vmatpush2.msra.mxu0 %v3750
        %v3752 = vand.u32 %v2637, 4294901760
        %v3753 = vsub.f32 %v2637, %v3752
        %3754 = vmatprep.subr.mxu0 %v3753
        %v3755 = vand.u32 %v2636, 4294901760
        %v3756 = vsub.f32 %v2636, %v3755
        %3757 = vmatpush2.msra.mxu0 %v3756
        %v3758 = vand.u32 %v2635, 4294901760
        %v3759 = vsub.f32 %v2635, %v3758
        %3760 = vmatprep.subr.mxu0 %v3759
        %v3761 = vand.u32 %v2634, 4294901760
        %v3762 = vsub.f32 %v2634, %v3761
        %3763 = vmatpush2.msra.mxu0 %v3762
        %v3764 = vand.u32 %v2633, 4294901760
        %v3765 = vsub.f32 %v2633, %v3764
        %3766 = vmatprep.subr.mxu0 %v3765
        %v3767 = vand.u32 %v2632, 4294901760
        %v3768 = vsub.f32 %v2632, %v3767
        %3769 = vmatpush2.msra.mxu0 %v3768
        %v3770 = vand.u32 %v2631, 4294901760
        %v3771 = vsub.f32 %v2631, %v3770
        %3772 = vmatprep.subr.mxu0 %v3771
        %v3773 = vand.u32 %v2630, 4294901760
        %v3774 = vsub.f32 %v2630, %v3773
        %3775 = vmatpush2.msra.mxu0 %v3774
        %v3776 = vand.u32 %v2629, 4294901760
        %v3777 = vsub.f32 %v2629, %v3776
        %3778 = vmatprep.subr.mxu0 %v3777
        %v3779 = vand.u32 %v2628, 4294901760
        %v3780 = vsub.f32 %v2628, %v3779
        %3781 = vmatpush2.msra.mxu0 %v3780
        %v3782 = vand.u32 %v2627, 4294901760
        %v3783 = vsub.f32 %v2627, %v3782
        %3784 = vmatprep.subr.mxu0 %v3783
        %v3785 = vand.u32 %v2626, 4294901760
        %v3786 = vsub.f32 %v2626, %v3785
        %3787 = vmatpush2.msra.mxu0 %v3786
        %v3788 = vand.u32 %v2625, 4294901760
        %v3789 = vsub.f32 %v2625, %v3788
        %3790 = vmatprep.subr.mxu0 %v3789
        %v3791 = vand.u32 %v2624, 4294901760
        %v3792 = vsub.f32 %v2624, %v3791
        %3793 = vmatpush2.msra.mxu0 %v3792
        %v3794 = vand.u32 %v2623, 4294901760
        %v3795 = vsub.f32 %v2623, %v3794
        %3796 = vmatprep.subr.mxu0 %v3795
        %v3797 = vand.u32 %v2622, 4294901760
        %v3798 = vsub.f32 %v2622, %v3797
        %3799 = vmatpush2.msra.mxu0 %v3798
        %v3800 = vand.u32 %v2621, 4294901760
        %v3801 = vsub.f32 %v2621, %v3800
        %3802 = vmatprep.subr.mxu0 %v3801
        %v3803 = vand.u32 %v2620, 4294901760
        %v3804 = vsub.f32 %v2620, %v3803
        %3805 = vmatpush2.msra.mxu0 %v3804
        %v3806 = vand.u32 %v2619, 4294901760
        %v3807 = vsub.f32 %v2619, %v3806
        %3808 = vmatprep.subr.mxu0 %v3807
        %v3809 = vand.u32 %v2618, 4294901760
        %v3810 = vsub.f32 %v2618, %v3809
        %3811 = vmatpush2.msra.mxu0 %v3810
        %v3812 = vand.u32 %v2617, 4294901760
        %v3813 = vsub.f32 %v2617, %v3812
        %3814 = vmatprep.subr.mxu0 %v3813
        %v3815 = vand.u32 %v2616, 4294901760
        %v3816 = vsub.f32 %v2616, %v3815
        %3817 = vmatpush2.msra.mxu0 %v3816
        %v3818 = vand.u32 %v2615, 4294901760
        %v3819 = vsub.f32 %v2615, %v3818
        %3820 = vmatprep.subr.mxu0 %v3819
        %v3821 = vand.u32 %v2614, 4294901760
        %v3822 = vsub.f32 %v2614, %v3821
        %3823 = vmatpush2.msra.mxu0 %v3822
        %v3824 = vand.u32 %v2613, 4294901760
        %v3825 = vsub.f32 %v2613, %v3824
        %3826 = vmatprep.subr.mxu0 %v3825
        %v3827 = vand.u32 %v2612, 4294901760
        %v3828 = vsub.f32 %v2612, %v3827
        %3829 = vmatpush2.msra.mxu0 %v3828
        %v3830 = vand.u32 %v2426, 4294901760
        %v3831 = vsub.f32 %v2426, %v3830
        %3832 = vmatprep.mubr.f32.mxu0 %v3831
        %v3833 = vand.u32 %v2424, 4294901760
        %v3834 = vsub.f32 %v2424, %v3833
        %3835 = vmatmul.mubr.f32.gmra.mxu0 %v3834
        %v3836 = vpop.f32.mrf.mxu0
        %v3837 = vadd.f32 %v3482, %v3836
        %v3838 = vpop.f32.mrf.mxu0
        %v3839 = vadd.f32 %v3484, %v3838
        %v3840 = vand.u32 %v2434, 4294901760
        %v3841 = vsub.f32 %v2434, %v3840
        %3842 = vmatprep.mubr.f32.mxu0 %v3841
        %v3843 = vand.u32 %v2432, 4294901760
        %v3844 = vsub.f32 %v2432, %v3843
        %3845 = vmatmul.mubr.f32.gmra.mxu0 %v3844
        %v3846 = vpop.f32.mrf.mxu0
        %v3847 = vadd.f32 %v3490, %v3846
        %v3848 = vpop.f32.mrf.mxu0
        %v3849 = vadd.f32 %v3492, %v3848
        %v3850 = vand.u32 %v2442, 4294901760
        %v3851 = vsub.f32 %v2442, %v3850
        %3852 = vmatprep.mubr.f32.mxu0 %v3851
        %v3853 = vand.u32 %v2440, 4294901760
        %v3854 = vsub.f32 %v2440, %v3853
        %3855 = vmatmul.mubr.f32.gmra.mxu0 %v3854
        %v3856 = vpop.f32.mrf.mxu0
        %v3857 = vadd.f32 %v3498, %v3856
        %v3858 = vpop.f32.mrf.mxu0
        %v3859 = vadd.f32 %v3500, %v3858
        %v3860 = vand.u32 %v2450, 4294901760
        %v3861 = vsub.f32 %v2450, %v3860
        %3862 = vmatprep.mubr.f32.mxu0 %v3861
        %v3863 = vand.u32 %v2448, 4294901760
        %v3864 = vsub.f32 %v2448, %v3863
        %3865 = vmatmul.mubr.f32.gmra.mxu0 %v3864
        %v3866 = vpop.f32.mrf.mxu0
        %v3867 = vadd.f32 %v3506, %v3866
        %v3868 = vpop.f32.mrf.mxu0
        %v3869 = vadd.f32 %v3508, %v3868
        %v3870 = vand.u32 %v2458, 4294901760
        %v3871 = vsub.f32 %v2458, %v3870
        %3872 = vmatprep.mubr.f32.mxu0 %v3871
        %v3873 = vand.u32 %v2456, 4294901760
        %v3874 = vsub.f32 %v2456, %v3873
        %3875 = vmatmul.mubr.f32.gmra.mxu0 %v3874
        %v3876 = vpop.f32.mrf.mxu0
        %v3877 = vadd.f32 %v3514, %v3876
        %v3878 = vpop.f32.mrf.mxu0
        %v3879 = vadd.f32 %v3516, %v3878
        %v3880 = vand.u32 %v2466, 4294901760
        %v3881 = vsub.f32 %v2466, %v3880
        %3882 = vmatprep.mubr.f32.mxu0 %v3881
        %v3883 = vand.u32 %v2464, 4294901760
        %v3884 = vsub.f32 %v2464, %v3883
        %3885 = vmatmul.mubr.f32.gmra.mxu0 %v3884
        %v3886 = vpop.f32.mrf.mxu0
        %v3887 = vadd.f32 %v3522, %v3886
        %v3888 = vpop.f32.mrf.mxu0
        %v3889 = vadd.f32 %v3524, %v3888
        %v3890 = vand.u32 %v2474, 4294901760
        %v3891 = vsub.f32 %v2474, %v3890
        %3892 = vmatprep.mubr.f32.mxu0 %v3891
        %v3893 = vand.u32 %v2472, 4294901760
        %v3894 = vsub.f32 %v2472, %v3893
        %3895 = vmatmul.mubr.f32.gmra.mxu0 %v3894
        %v3896 = vpop.f32.mrf.mxu0
        %v3897 = vadd.f32 %v3530, %v3896
        %v3898 = vpop.f32.mrf.mxu0
        %v3899 = vadd.f32 %v3532, %v3898
        %v3900 = vand.u32 %v2482, 4294901760
        %v3901 = vsub.f32 %v2482, %v3900
        %3902 = vmatprep.mubr.f32.mxu0 %v3901
        %v3903 = vand.u32 %v2480, 4294901760
        %v3904 = vsub.f32 %v2480, %v3903
        %3905 = vmatmul.mubr.f32.gmra.mxu0 %v3904
        %v3906 = vpop.f32.mrf.mxu0
        %v3907 = vadd.f32 %v3538, %v3906
        %v3908 = vpop.f32.mrf.mxu0
        %v3909 = vadd.f32 %v3540, %v3908
        %v3910 = vand.u32 %v2490, 4294901760
        %v3911 = vsub.f32 %v2490, %v3910
        %3912 = vmatprep.mubr.f32.mxu0 %v3911
        %v3913 = vand.u32 %v2488, 4294901760
        %v3914 = vsub.f32 %v2488, %v3913
        %3915 = vmatmul.mubr.f32.gmra.mxu0 %v3914
        %v3916 = vpop.f32.mrf.mxu0
        %v3917 = vadd.f32 %v3546, %v3916
        %v3918 = vpop.f32.mrf.mxu0
        %v3919 = vadd.f32 %v3548, %v3918
        %v3920 = vand.u32 %v2498, 4294901760
        %v3921 = vsub.f32 %v2498, %v3920
        %3922 = vmatprep.mubr.f32.mxu0 %v3921
        %v3923 = vand.u32 %v2496, 4294901760
        %v3924 = vsub.f32 %v2496, %v3923
        %3925 = vmatmul.mubr.f32.gmra.mxu0 %v3924
        %v3926 = vpop.f32.mrf.mxu0
        %v3927 = vadd.f32 %v3554, %v3926
        %v3928 = vpop.f32.mrf.mxu0
        %v3929 = vadd.f32 %v3556, %v3928
        %v3930 = vand.u32 %v2506, 4294901760
        %v3931 = vsub.f32 %v2506, %v3930
        %3932 = vmatprep.mubr.f32.mxu0 %v3931
        %v3933 = vand.u32 %v2504, 4294901760
        %v3934 = vsub.f32 %v2504, %v3933
        %3935 = vmatmul.mubr.f32.gmra.mxu0 %v3934
        %v3936 = vpop.f32.mrf.mxu0
        %v3937 = vadd.f32 %v3562, %v3936
        %v3938 = vpop.f32.mrf.mxu0
        %v3939 = vadd.f32 %v3564, %v3938
        %v3940 = vand.u32 %v2514, 4294901760
        %v3941 = vsub.f32 %v2514, %v3940
        %3942 = vmatprep.mubr.f32.mxu0 %v3941
        %v3943 = vand.u32 %v2512, 4294901760
        %v3944 = vsub.f32 %v2512, %v3943
        %3945 = vmatmul.mubr.f32.gmra.mxu0 %v3944
        %v3946 = vpop.f32.mrf.mxu0
        %v3947 = vadd.f32 %v3570, %v3946
        %v3948 = vpop.f32.mrf.mxu0
        %v3949 = vadd.f32 %v3572, %v3948
        %v3950 = vand.u32 %v2522, 4294901760
        %v3951 = vsub.f32 %v2522, %v3950
        %3952 = vmatprep.mubr.f32.mxu0 %v3951
        %v3953 = vand.u32 %v2520, 4294901760
        %v3954 = vsub.f32 %v2520, %v3953
        %3955 = vmatmul.mubr.f32.gmra.mxu0 %v3954
        %v3956 = vpop.f32.mrf.mxu0
        %v3957 = vadd.f32 %v3578, %v3956
        %v3958 = vpop.f32.mrf.mxu0
        %v3959 = vadd.f32 %v3580, %v3958
        %v3960 = vand.u32 %v2530, 4294901760
        %v3961 = vsub.f32 %v2530, %v3960
        %3962 = vmatprep.mubr.f32.mxu0 %v3961
        %v3963 = vand.u32 %v2528, 4294901760
        %v3964 = vsub.f32 %v2528, %v3963
        %3965 = vmatmul.mubr.f32.gmra.mxu0 %v3964
        %v3966 = vpop.f32.mrf.mxu0
        %v3967 = vadd.f32 %v3586, %v3966
        %v3968 = vpop.f32.mrf.mxu0
        %v3969 = vadd.f32 %v3588, %v3968
        %v3970 = vand.u32 %v2538, 4294901760
        %v3971 = vsub.f32 %v2538, %v3970
        %3972 = vmatprep.mubr.f32.mxu0 %v3971
        %v3973 = vand.u32 %v2536, 4294901760
        %v3974 = vsub.f32 %v2536, %v3973
        %3975 = vmatmul.mubr.f32.gmra.mxu0 %v3974
        %v3976 = vpop.f32.mrf.mxu0
        %v3977 = vadd.f32 %v3594, %v3976
        %v3978 = vpop.f32.mrf.mxu0
        %v3979 = vadd.f32 %v3596, %v3978
        %v3980 = vand.u32 %v2546, 4294901760
        %v3981 = vsub.f32 %v2546, %v3980
        %3982 = vmatprep.mubr.f32.mxu0 %v3981
        %v3983 = vand.u32 %v2544, 4294901760
        %v3984 = vsub.f32 %v2544, %v3983
        %3985 = vmatmul.mubr.f32.gmra.mxu0 %v3984
        %v3986 = vpop.f32.mrf.mxu0
        %v3987 = vadd.f32 %v3602, %v3986
        %v3988 = vpop.f32.mrf.mxu0
        %v3989 = vadd.f32 %v3604, %v3988
        %v3990 = vand.u32 %v2554, 4294901760
        %v3991 = vsub.f32 %v2554, %v3990
        %3992 = vmatprep.mubr.f32.mxu0 %v3991
        %v3993 = vand.u32 %v2552, 4294901760
        %v3994 = vsub.f32 %v2552, %v3993
        %3995 = vmatmul.mubr.f32.gmra.mxu0 %v3994
        %v3996 = vpop.f32.mrf.mxu0
        %v3997 = vadd.f32 %v3610, %v3996
        %v3998 = vpop.f32.mrf.mxu0
        %v3999 = vadd.f32 %v3612, %v3998
        %v4000 = vand.u32 %v2562, 4294901760
        %v4001 = vsub.f32 %v2562, %v4000
        %4002 = vmatprep.mubr.f32.mxu0 %v4001
        %v4003 = vand.u32 %v2560, 4294901760
        %v4004 = vsub.f32 %v2560, %v4003
        %4005 = vmatmul.mubr.f32.gmra.mxu0 %v4004
        %v4006 = vpop.f32.mrf.mxu0
        %v4007 = vadd.f32 %v3618, %v4006
        %v4008 = vpop.f32.mrf.mxu0
        %v4009 = vadd.f32 %v3620, %v4008
        %v4010 = vand.u32 %v2570, 4294901760
        %v4011 = vsub.f32 %v2570, %v4010
        %4012 = vmatprep.mubr.f32.mxu0 %v4011
        %v4013 = vand.u32 %v2568, 4294901760
        %v4014 = vsub.f32 %v2568, %v4013
        %4015 = vmatmul.mubr.f32.gmra.mxu0 %v4014
        %v4016 = vpop.f32.mrf.mxu0
        %v4017 = vadd.f32 %v3626, %v4016
        %v4018 = vpop.f32.mrf.mxu0
        %v4019 = vadd.f32 %v3628, %v4018
        %v4020 = vand.u32 %v2578, 4294901760
        %v4021 = vsub.f32 %v2578, %v4020
        %4022 = vmatprep.mubr.f32.mxu0 %v4021
        %v4023 = vand.u32 %v2576, 4294901760
        %v4024 = vsub.f32 %v2576, %v4023
        %4025 = vmatmul.mubr.f32.gmra.mxu0 %v4024
        %v4026 = vpop.f32.mrf.mxu0
        %v4027 = vadd.f32 %v3634, %v4026
        %v4028 = vpop.f32.mrf.mxu0
        %v4029 = vadd.f32 %v3636, %v4028
        %4030 = vdwg.mxu0
        %v4031 = vand.u32 %v2611, 4294901760
        %4032 = vmatprep.subr.mxu0 %v4031
        %v4033 = vand.u32 %v2610, 4294901760
        %4034 = vmatpush1.msra.mxu0 %v4033
        %v4035 = vand.u32 %v2609, 4294901760
        %4036 = vmatprep.subr.mxu0 %v4035
        %v4037 = vand.u32 %v2608, 4294901760
        %4038 = vmatpush1.msra.mxu0 %v4037
        %v4039 = vand.u32 %v2607, 4294901760
        %4040 = vmatprep.subr.mxu0 %v4039
        %v4041 = vand.u32 %v2606, 4294901760
        %4042 = vmatpush1.msra.mxu0 %v4041
        %v4043 = vand.u32 %v2605, 4294901760
        %4044 = vmatprep.subr.mxu0 %v4043
        %v4045 = vand.u32 %v2604, 4294901760
        %4046 = vmatpush1.msra.mxu0 %v4045
        %v4047 = vand.u32 %v2603, 4294901760
        %4048 = vmatprep.subr.mxu0 %v4047
        %v4049 = vand.u32 %v2602, 4294901760
        %4050 = vmatpush1.msra.mxu0 %v4049
        %v4051 = vand.u32 %v2601, 4294901760
        %4052 = vmatprep.subr.mxu0 %v4051
        %v4053 = vand.u32 %v2600, 4294901760
        %4054 = vmatpush1.msra.mxu0 %v4053
        %v4055 = vand.u32 %v2599, 4294901760
        %4056 = vmatprep.subr.mxu0 %v4055
        %v4057 = vand.u32 %v2598, 4294901760
        %4058 = vmatpush1.msra.mxu0 %v4057
        %v4059 = vand.u32 %v2597, 4294901760
        %4060 = vmatprep.subr.mxu0 %v4059
        %v4061 = vand.u32 %v2596, 4294901760
        %4062 = vmatpush1.msra.mxu0 %v4061
        %v4063 = vand.u32 %v2595, 4294901760
        %4064 = vmatprep.subr.mxu0 %v4063
        %v4065 = vand.u32 %v2594, 4294901760
        %4066 = vmatpush1.msra.mxu0 %v4065
        %v4067 = vand.u32 %v2593, 4294901760
        %4068 = vmatprep.subr.mxu0 %v4067
        %v4069 = vand.u32 %v2592, 4294901760
        %4070 = vmatpush1.msra.mxu0 %v4069
        %v4071 = vand.u32 %v2591, 4294901760
        %4072 = vmatprep.subr.mxu0 %v4071
        %v4073 = vand.u32 %v2590, 4294901760
        %4074 = vmatpush1.msra.mxu0 %v4073
        %v4075 = vand.u32 %v2589, 4294901760
        %4076 = vmatprep.subr.mxu0 %v4075
        %v4077 = vand.u32 %v2588, 4294901760
        %4078 = vmatpush1.msra.mxu0 %v4077
        %v4079 = vand.u32 %v2587, 4294901760
        %4080 = vmatprep.subr.mxu0 %v4079
        %v4081 = vand.u32 %v2586, 4294901760
        %4082 = vmatpush1.msra.mxu0 %v4081
        %v4083 = vand.u32 %v2585, 4294901760
        %4084 = vmatprep.subr.mxu0 %v4083
        %v4085 = vand.u32 %v2584, 4294901760
        %4086 = vmatpush1.msra.mxu0 %v4085
        %v4087 = vand.u32 %v2583, 4294901760
        %4088 = vmatprep.subr.mxu0 %v4087
        %v4089 = vand.u32 %v2582, 4294901760
        %4090 = vmatpush1.msra.mxu0 %v4089
        %v4091 = vand.u32 %v2581, 4294901760
        %4092 = vmatprep.subr.mxu0 %v4091
        %v4093 = vand.u32 %v2580, 4294901760
        %4094 = vmatpush1.msra.mxu0 %v4093
        %v4095 = vand.u32 %v2643, 4294901760
        %4096 = vmatprep.subr.mxu0 %v4095
        %v4097 = vand.u32 %v2642, 4294901760
        %4098 = vmatpush2.msra.mxu0 %v4097
        %v4099 = vand.u32 %v2641, 4294901760
        %4100 = vmatprep.subr.mxu0 %v4099
        %v4101 = vand.u32 %v2640, 4294901760
        %4102 = vmatpush2.msra.mxu0 %v4101
        %v4103 = vand.u32 %v2639, 4294901760
        %4104 = vmatprep.subr.mxu0 %v4103
        %v4105 = vand.u32 %v2638, 4294901760
        %4106 = vmatpush2.msra.mxu0 %v4105
        %v4107 = vand.u32 %v2637, 4294901760
        %4108 = vmatprep.subr.mxu0 %v4107
        %v4109 = vand.u32 %v2636, 4294901760
        %4110 = vmatpush2.msra.mxu0 %v4109
        %v4111 = vand.u32 %v2635, 4294901760
        %4112 = vmatprep.subr.mxu0 %v4111
        %v4113 = vand.u32 %v2634, 4294901760
        %4114 = vmatpush2.msra.mxu0 %v4113
        %v4115 = vand.u32 %v2633, 4294901760
        %4116 = vmatprep.subr.mxu0 %v4115
        %v4117 = vand.u32 %v2632, 4294901760
        %4118 = vmatpush2.msra.mxu0 %v4117
        %v4119 = vand.u32 %v2631, 4294901760
        %4120 = vmatprep.subr.mxu0 %v4119
        %v4121 = vand.u32 %v2630, 4294901760
        %4122 = vmatpush2.msra.mxu0 %v4121
        %v4123 = vand.u32 %v2629, 4294901760
        %4124 = vmatprep.subr.mxu0 %v4123
        %v4125 = vand.u32 %v2628, 4294901760
        %4126 = vmatpush2.msra.mxu0 %v4125
        %v4127 = vand.u32 %v2627, 4294901760
        %4128 = vmatprep.subr.mxu0 %v4127
        %v4129 = vand.u32 %v2626, 4294901760
        %4130 = vmatpush2.msra.mxu0 %v4129
        %v4131 = vand.u32 %v2625, 4294901760
        %4132 = vmatprep.subr.mxu0 %v4131
        %v4133 = vand.u32 %v2624, 4294901760
        %4134 = vmatpush2.msra.mxu0 %v4133
        %v4135 = vand.u32 %v2623, 4294901760
        %4136 = vmatprep.subr.mxu0 %v4135
        %v4137 = vand.u32 %v2622, 4294901760
        %4138 = vmatpush2.msra.mxu0 %v4137
        %v4139 = vand.u32 %v2621, 4294901760
        %4140 = vmatprep.subr.mxu0 %v4139
        %v4141 = vand.u32 %v2620, 4294901760
        %4142 = vmatpush2.msra.mxu0 %v4141
        %v4143 = vand.u32 %v2619, 4294901760
        %4144 = vmatprep.subr.mxu0 %v4143
        %v4145 = vand.u32 %v2618, 4294901760
        %4146 = vmatpush2.msra.mxu0 %v4145
        %v4147 = vand.u32 %v2617, 4294901760
        %4148 = vmatprep.subr.mxu0 %v4147
        %v4149 = vand.u32 %v2616, 4294901760
        %4150 = vmatpush2.msra.mxu0 %v4149
        %v4151 = vand.u32 %v2615, 4294901760
        %4152 = vmatprep.subr.mxu0 %v4151
        %v4153 = vand.u32 %v2614, 4294901760
        %4154 = vmatpush2.msra.mxu0 %v4153
        %v4155 = vand.u32 %v2613, 4294901760
        %4156 = vmatprep.subr.mxu0 %v4155
        %v4157 = vand.u32 %v2612, 4294901760
        %4158 = vmatpush2.msra.mxu0 %v4157
        %v4159 = vand.u32 %v2426, 4294901760
        %v4160 = vsub.f32 %v2426, %v4159
        %v4161 = vand.u32 %v4160, 4294901760
        %4162 = vmatprep.mubr.f32.mxu0 %v4161
        %v4163 = vand.u32 %v2424, 4294901760
        %v4164 = vsub.f32 %v2424, %v4163
        %v4165 = vand.u32 %v4164, 4294901760
        %4166 = vmatmul.mubr.f32.gmra.mxu0 %v4165
        %v4167 = vpop.f32.mrf.mxu0
        %v4168 = vadd.f32 %v3837, %v4167
        %v4169 = vpop.f32.mrf.mxu0
        %v4170 = vadd.f32 %v3839, %v4169
        %v4171 = vand.u32 %v2434, 4294901760
        %v4172 = vsub.f32 %v2434, %v4171
        %v4173 = vand.u32 %v4172, 4294901760
        %4174 = vmatprep.mubr.f32.mxu0 %v4173
        %v4175 = vand.u32 %v2432, 4294901760
        %v4176 = vsub.f32 %v2432, %v4175
        %v4177 = vand.u32 %v4176, 4294901760
        %4178 = vmatmul.mubr.f32.gmra.mxu0 %v4177
        %v4179 = vpop.f32.mrf.mxu0
        %v4180 = vadd.f32 %v3847, %v4179
        %v4181 = vpop.f32.mrf.mxu0
        %v4182 = vadd.f32 %v3849, %v4181
        %v4183 = vand.u32 %v2442, 4294901760
        %v4184 = vsub.f32 %v2442, %v4183
        %v4185 = vand.u32 %v4184, 4294901760
        %4186 = vmatprep.mubr.f32.mxu0 %v4185
        %v4187 = vand.u32 %v2440, 4294901760
        %v4188 = vsub.f32 %v2440, %v4187
        %v4189 = vand.u32 %v4188, 4294901760
        %4190 = vmatmul.mubr.f32.gmra.mxu0 %v4189
        %v4191 = vpop.f32.mrf.mxu0
        %v4192 = vadd.f32 %v3857, %v4191
        %v4193 = vpop.f32.mrf.mxu0
        %v4194 = vadd.f32 %v3859, %v4193
        %v4195 = vand.u32 %v2450, 4294901760
        %v4196 = vsub.f32 %v2450, %v4195
        %v4197 = vand.u32 %v4196, 4294901760
        %4198 = vmatprep.mubr.f32.mxu0 %v4197
        %v4199 = vand.u32 %v2448, 4294901760
        %v4200 = vsub.f32 %v2448, %v4199
        %v4201 = vand.u32 %v4200, 4294901760
        %4202 = vmatmul.mubr.f32.gmra.mxu0 %v4201
        %v4203 = vpop.f32.mrf.mxu0
        %v4204 = vadd.f32 %v3867, %v4203
        %v4205 = vpop.f32.mrf.mxu0
        %v4206 = vadd.f32 %v3869, %v4205
        %v4207 = vand.u32 %v2458, 4294901760
        %v4208 = vsub.f32 %v2458, %v4207
        %v4209 = vand.u32 %v4208, 4294901760
        %4210 = vmatprep.mubr.f32.mxu0 %v4209
        %v4211 = vand.u32 %v2456, 4294901760
        %v4212 = vsub.f32 %v2456, %v4211
        %v4213 = vand.u32 %v4212, 4294901760
        %4214 = vmatmul.mubr.f32.gmra.mxu0 %v4213
        %v4215 = vpop.f32.mrf.mxu0
        %v4216 = vadd.f32 %v3877, %v4215
        %v4217 = vpop.f32.mrf.mxu0
        %v4218 = vadd.f32 %v3879, %v4217
        %v4219 = vand.u32 %v2466, 4294901760
        %v4220 = vsub.f32 %v2466, %v4219
        %v4221 = vand.u32 %v4220, 4294901760
        %4222 = vmatprep.mubr.f32.mxu0 %v4221
        %v4223 = vand.u32 %v2464, 4294901760
        %v4224 = vsub.f32 %v2464, %v4223
        %v4225 = vand.u32 %v4224, 4294901760
        %4226 = vmatmul.mubr.f32.gmra.mxu0 %v4225
        %v4227 = vpop.f32.mrf.mxu0
        %v4228 = vadd.f32 %v3887, %v4227
        %v4229 = vpop.f32.mrf.mxu0
        %v4230 = vadd.f32 %v3889, %v4229
        %v4231 = vand.u32 %v2474, 4294901760
        %v4232 = vsub.f32 %v2474, %v4231
        %v4233 = vand.u32 %v4232, 4294901760
        %4234 = vmatprep.mubr.f32.mxu0 %v4233
        %v4235 = vand.u32 %v2472, 4294901760
        %v4236 = vsub.f32 %v2472, %v4235
        %v4237 = vand.u32 %v4236, 4294901760
        %4238 = vmatmul.mubr.f32.gmra.mxu0 %v4237
        %v4239 = vpop.f32.mrf.mxu0
        %v4240 = vadd.f32 %v3897, %v4239
        %v4241 = vpop.f32.mrf.mxu0
        %v4242 = vadd.f32 %v3899, %v4241
        %v4243 = vand.u32 %v2482, 4294901760
        %v4244 = vsub.f32 %v2482, %v4243
        %v4245 = vand.u32 %v4244, 4294901760
        %4246 = vmatprep.mubr.f32.mxu0 %v4245
        %v4247 = vand.u32 %v2480, 4294901760
        %v4248 = vsub.f32 %v2480, %v4247
        %v4249 = vand.u32 %v4248, 4294901760
        %4250 = vmatmul.mubr.f32.gmra.mxu0 %v4249
        %v4251 = vpop.f32.mrf.mxu0
        %v4252 = vadd.f32 %v3907, %v4251
        %v4253 = vpop.f32.mrf.mxu0
        %v4254 = vadd.f32 %v3909, %v4253
        %v4255 = vand.u32 %v2490, 4294901760
        %v4256 = vsub.f32 %v2490, %v4255
        %v4257 = vand.u32 %v4256, 4294901760
        %4258 = vmatprep.mubr.f32.mxu0 %v4257
        %v4259 = vand.u32 %v2488, 4294901760
        %v4260 = vsub.f32 %v2488, %v4259
        %v4261 = vand.u32 %v4260, 4294901760
        %4262 = vmatmul.mubr.f32.gmra.mxu0 %v4261
        %v4263 = vpop.f32.mrf.mxu0
        %v4264 = vadd.f32 %v3917, %v4263
        %v4265 = vpop.f32.mrf.mxu0
        %v4266 = vadd.f32 %v3919, %v4265
        %v4267 = vand.u32 %v2498, 4294901760
        %v4268 = vsub.f32 %v2498, %v4267
        %v4269 = vand.u32 %v4268, 4294901760
        %4270 = vmatprep.mubr.f32.mxu0 %v4269
        %v4271 = vand.u32 %v2496, 4294901760
        %v4272 = vsub.f32 %v2496, %v4271
        %v4273 = vand.u32 %v4272, 4294901760
        %4274 = vmatmul.mubr.f32.gmra.mxu0 %v4273
        %v4275 = vpop.f32.mrf.mxu0
        %v4276 = vadd.f32 %v3927, %v4275
        %v4277 = vpop.f32.mrf.mxu0
        %v4278 = vadd.f32 %v3929, %v4277
        %v4279 = vand.u32 %v2506, 4294901760
        %v4280 = vsub.f32 %v2506, %v4279
        %v4281 = vand.u32 %v4280, 4294901760
        %4282 = vmatprep.mubr.f32.mxu0 %v4281
        %v4283 = vand.u32 %v2504, 4294901760
        %v4284 = vsub.f32 %v2504, %v4283
        %v4285 = vand.u32 %v4284, 4294901760
        %4286 = vmatmul.mubr.f32.gmra.mxu0 %v4285
        %v4287 = vpop.f32.mrf.mxu0
        %v4288 = vadd.f32 %v3937, %v4287
        %v4289 = vpop.f32.mrf.mxu0
        %v4290 = vadd.f32 %v3939, %v4289
        %v4291 = vand.u32 %v2514, 4294901760
        %v4292 = vsub.f32 %v2514, %v4291
        %v4293 = vand.u32 %v4292, 4294901760
        %4294 = vmatprep.mubr.f32.mxu0 %v4293
        %v4295 = vand.u32 %v2512, 4294901760
        %v4296 = vsub.f32 %v2512, %v4295
        %v4297 = vand.u32 %v4296, 4294901760
        %4298 = vmatmul.mubr.f32.gmra.mxu0 %v4297
        %v4299 = vpop.f32.mrf.mxu0
        %v4300 = vadd.f32 %v3947, %v4299
        %v4301 = vpop.f32.mrf.mxu0
        %v4302 = vadd.f32 %v3949, %v4301
        %v4303 = vand.u32 %v2522, 4294901760
        %v4304 = vsub.f32 %v2522, %v4303
        %v4305 = vand.u32 %v4304, 4294901760
        %4306 = vmatprep.mubr.f32.mxu0 %v4305
        %v4307 = vand.u32 %v2520, 4294901760
        %v4308 = vsub.f32 %v2520, %v4307
        %v4309 = vand.u32 %v4308, 4294901760
        %4310 = vmatmul.mubr.f32.gmra.mxu0 %v4309
        %v4311 = vpop.f32.mrf.mxu0
        %v4312 = vadd.f32 %v3957, %v4311
        %v4313 = vpop.f32.mrf.mxu0
        %v4314 = vadd.f32 %v3959, %v4313
        %v4315 = vand.u32 %v2530, 4294901760
        %v4316 = vsub.f32 %v2530, %v4315
        %v4317 = vand.u32 %v4316, 4294901760
        %4318 = vmatprep.mubr.f32.mxu0 %v4317
        %v4319 = vand.u32 %v2528, 4294901760
        %v4320 = vsub.f32 %v2528, %v4319
        %v4321 = vand.u32 %v4320, 4294901760
        %4322 = vmatmul.mubr.f32.gmra.mxu0 %v4321
        %v4323 = vpop.f32.mrf.mxu0
        %v4324 = vadd.f32 %v3967, %v4323
        %v4325 = vpop.f32.mrf.mxu0
        %v4326 = vadd.f32 %v3969, %v4325
        %v4327 = vand.u32 %v2538, 4294901760
        %v4328 = vsub.f32 %v2538, %v4327
        %v4329 = vand.u32 %v4328, 4294901760
        %4330 = vmatprep.mubr.f32.mxu0 %v4329
        %v4331 = vand.u32 %v2536, 4294901760
        %v4332 = vsub.f32 %v2536, %v4331
        %v4333 = vand.u32 %v4332, 4294901760
        %4334 = vmatmul.mubr.f32.gmra.mxu0 %v4333
        %v4335 = vpop.f32.mrf.mxu0
        %v4336 = vadd.f32 %v3977, %v4335
        %v4337 = vpop.f32.mrf.mxu0
        %v4338 = vadd.f32 %v3979, %v4337
        %v4339 = vand.u32 %v2546, 4294901760
        %v4340 = vsub.f32 %v2546, %v4339
        %v4341 = vand.u32 %v4340, 4294901760
        %4342 = vmatprep.mubr.f32.mxu0 %v4341
        %v4343 = vand.u32 %v2544, 4294901760
        %v4344 = vsub.f32 %v2544, %v4343
        %v4345 = vand.u32 %v4344, 4294901760
        %4346 = vmatmul.mubr.f32.gmra.mxu0 %v4345
        %v4347 = vpop.f32.mrf.mxu0
        %v4348 = vadd.f32 %v3987, %v4347
        %v4349 = vpop.f32.mrf.mxu0
        %v4350 = vadd.f32 %v3989, %v4349
        %v4351 = vand.u32 %v2554, 4294901760
        %v4352 = vsub.f32 %v2554, %v4351
        %v4353 = vand.u32 %v4352, 4294901760
        %4354 = vmatprep.mubr.f32.mxu0 %v4353
        %v4355 = vand.u32 %v2552, 4294901760
        %v4356 = vsub.f32 %v2552, %v4355
        %v4357 = vand.u32 %v4356, 4294901760
        %4358 = vmatmul.mubr.f32.gmra.mxu0 %v4357
        %v4359 = vpop.f32.mrf.mxu0
        %v4360 = vadd.f32 %v3997, %v4359
        %v4361 = vpop.f32.mrf.mxu0
        %v4362 = vadd.f32 %v3999, %v4361
        %v4363 = vand.u32 %v2562, 4294901760
        %v4364 = vsub.f32 %v2562, %v4363
        %v4365 = vand.u32 %v4364, 4294901760
        %4366 = vmatprep.mubr.f32.mxu0 %v4365
        %v4367 = vand.u32 %v2560, 4294901760
        %v4368 = vsub.f32 %v2560, %v4367
        %v4369 = vand.u32 %v4368, 4294901760
        %4370 = vmatmul.mubr.f32.gmra.mxu0 %v4369
        %v4371 = vpop.f32.mrf.mxu0
        %v4372 = vadd.f32 %v4007, %v4371
        %v4373 = vpop.f32.mrf.mxu0
        %v4374 = vadd.f32 %v4009, %v4373
        %v4375 = vand.u32 %v2570, 4294901760
        %v4376 = vsub.f32 %v2570, %v4375
        %v4377 = vand.u32 %v4376, 4294901760
        %4378 = vmatprep.mubr.f32.mxu0 %v4377
        %v4379 = vand.u32 %v2568, 4294901760
        %v4380 = vsub.f32 %v2568, %v4379
        %v4381 = vand.u32 %v4380, 4294901760
        %4382 = vmatmul.mubr.f32.gmra.mxu0 %v4381
        %v4383 = vpop.f32.mrf.mxu0
        %v4384 = vadd.f32 %v4017, %v4383
        %v4385 = vpop.f32.mrf.mxu0
        %v4386 = vadd.f32 %v4019, %v4385
        %v4387 = vand.u32 %v2578, 4294901760
        %v4388 = vsub.f32 %v2578, %v4387
        %v4389 = vand.u32 %v4388, 4294901760
        %4390 = vmatprep.mubr.f32.mxu0 %v4389
        %v4391 = vand.u32 %v2576, 4294901760
        %v4392 = vsub.f32 %v2576, %v4391
        %v4393 = vand.u32 %v4392, 4294901760
        %4394 = vmatmul.mubr.f32.gmra.mxu0 %v4393
        %v4395 = vpop.f32.mrf.mxu0
        %v4396 = vadd.f32 %v4027, %v4395
        %v4397 = vpop.f32.mrf.mxu0
        %v4398 = vadd.f32 %v4029, %v4397
        %4399 = vdwg.mxu0
        %v4400 = vand.u32 %v2611, 4294901760
        %v4401 = vsub.f32 %v2611, %v4400
        %v4402 = vand.u32 %v4401, 4294901760
        %4403 = vmatprep.subr.mxu0 %v4402
        %v4404 = vand.u32 %v2610, 4294901760
        %v4405 = vsub.f32 %v2610, %v4404
        %v4406 = vand.u32 %v4405, 4294901760
        %4407 = vmatpush1.msra.mxu0 %v4406
        %v4408 = vand.u32 %v2609, 4294901760
        %v4409 = vsub.f32 %v2609, %v4408
        %v4410 = vand.u32 %v4409, 4294901760
        %4411 = vmatprep.subr.mxu0 %v4410
        %v4412 = vand.u32 %v2608, 4294901760
        %v4413 = vsub.f32 %v2608, %v4412
        %v4414 = vand.u32 %v4413, 4294901760
        %4415 = vmatpush1.msra.mxu0 %v4414
        %v4416 = vand.u32 %v2607, 4294901760
        %v4417 = vsub.f32 %v2607, %v4416
        %v4418 = vand.u32 %v4417, 4294901760
        %4419 = vmatprep.subr.mxu0 %v4418
        %v4420 = vand.u32 %v2606, 4294901760
        %v4421 = vsub.f32 %v2606, %v4420
        %v4422 = vand.u32 %v4421, 4294901760
        %4423 = vmatpush1.msra.mxu0 %v4422
        %v4424 = vand.u32 %v2605, 4294901760
        %v4425 = vsub.f32 %v2605, %v4424
        %v4426 = vand.u32 %v4425, 4294901760
        %4427 = vmatprep.subr.mxu0 %v4426
        %v4428 = vand.u32 %v2604, 4294901760
        %v4429 = vsub.f32 %v2604, %v4428
        %v4430 = vand.u32 %v4429, 4294901760
        %4431 = vmatpush1.msra.mxu0 %v4430
        %v4432 = vand.u32 %v2603, 4294901760
        %v4433 = vsub.f32 %v2603, %v4432
        %v4434 = vand.u32 %v4433, 4294901760
        %4435 = vmatprep.subr.mxu0 %v4434
        %v4436 = vand.u32 %v2602, 4294901760
        %v4437 = vsub.f32 %v2602, %v4436
        %v4438 = vand.u32 %v4437, 4294901760
        %4439 = vmatpush1.msra.mxu0 %v4438
        %v4440 = vand.u32 %v2601, 4294901760
        %v4441 = vsub.f32 %v2601, %v4440
        %v4442 = vand.u32 %v4441, 4294901760
        %4443 = vmatprep.subr.mxu0 %v4442
        %v4444 = vand.u32 %v2600, 4294901760
        %v4445 = vsub.f32 %v2600, %v4444
        %v4446 = vand.u32 %v4445, 4294901760
        %4447 = vmatpush1.msra.mxu0 %v4446
        %v4448 = vand.u32 %v2599, 4294901760
        %v4449 = vsub.f32 %v2599, %v4448
        %v4450 = vand.u32 %v4449, 4294901760
        %4451 = vmatprep.subr.mxu0 %v4450
        %v4452 = vand.u32 %v2598, 4294901760
        %v4453 = vsub.f32 %v2598, %v4452
        %v4454 = vand.u32 %v4453, 4294901760
        %4455 = vmatpush1.msra.mxu0 %v4454
        %v4456 = vand.u32 %v2597, 4294901760
        %v4457 = vsub.f32 %v2597, %v4456
        %v4458 = vand.u32 %v4457, 4294901760
        %4459 = vmatprep.subr.mxu0 %v4458
        %v4460 = vand.u32 %v2596, 4294901760
        %v4461 = vsub.f32 %v2596, %v4460
        %v4462 = vand.u32 %v4461, 4294901760
        %4463 = vmatpush1.msra.mxu0 %v4462
        %v4464 = vand.u32 %v2595, 4294901760
        %v4465 = vsub.f32 %v2595, %v4464
        %v4466 = vand.u32 %v4465, 4294901760
        %4467 = vmatprep.subr.mxu0 %v4466
        %v4468 = vand.u32 %v2594, 4294901760
        %v4469 = vsub.f32 %v2594, %v4468
        %v4470 = vand.u32 %v4469, 4294901760
        %4471 = vmatpush1.msra.mxu0 %v4470
        %v4472 = vand.u32 %v2593, 4294901760
        %v4473 = vsub.f32 %v2593, %v4472
        %v4474 = vand.u32 %v4473, 4294901760
        %4475 = vmatprep.subr.mxu0 %v4474
        %v4476 = vand.u32 %v2592, 4294901760
        %v4477 = vsub.f32 %v2592, %v4476
        %v4478 = vand.u32 %v4477, 4294901760
        %4479 = vmatpush1.msra.mxu0 %v4478
        %v4480 = vand.u32 %v2591, 4294901760
        %v4481 = vsub.f32 %v2591, %v4480
        %v4482 = vand.u32 %v4481, 4294901760
        %4483 = vmatprep.subr.mxu0 %v4482
        %v4484 = vand.u32 %v2590, 4294901760
        %v4485 = vsub.f32 %v2590, %v4484
        %v4486 = vand.u32 %v4485, 4294901760
        %4487 = vmatpush1.msra.mxu0 %v4486
        %v4488 = vand.u32 %v2589, 4294901760
        %v4489 = vsub.f32 %v2589, %v4488
        %v4490 = vand.u32 %v4489, 4294901760
        %4491 = vmatprep.subr.mxu0 %v4490
        %v4492 = vand.u32 %v2588, 4294901760
        %v4493 = vsub.f32 %v2588, %v4492
        %v4494 = vand.u32 %v4493, 4294901760
        %4495 = vmatpush1.msra.mxu0 %v4494
        %v4496 = vand.u32 %v2587, 4294901760
        %v4497 = vsub.f32 %v2587, %v4496
        %v4498 = vand.u32 %v4497, 4294901760
        %4499 = vmatprep.subr.mxu0 %v4498
        %v4500 = vand.u32 %v2586, 4294901760
        %v4501 = vsub.f32 %v2586, %v4500
        %v4502 = vand.u32 %v4501, 4294901760
        %4503 = vmatpush1.msra.mxu0 %v4502
        %v4504 = vand.u32 %v2585, 4294901760
        %v4505 = vsub.f32 %v2585, %v4504
        %v4506 = vand.u32 %v4505, 4294901760
        %4507 = vmatprep.subr.mxu0 %v4506
        %v4508 = vand.u32 %v2584, 4294901760
        %v4509 = vsub.f32 %v2584, %v4508
        %v4510 = vand.u32 %v4509, 4294901760
        %4511 = vmatpush1.msra.mxu0 %v4510
        %v4512 = vand.u32 %v2583, 4294901760
        %v4513 = vsub.f32 %v2583, %v4512
        %v4514 = vand.u32 %v4513, 4294901760
        %4515 = vmatprep.subr.mxu0 %v4514
        %v4516 = vand.u32 %v2582, 4294901760
        %v4517 = vsub.f32 %v2582, %v4516
        %v4518 = vand.u32 %v4517, 4294901760
        %4519 = vmatpush1.msra.mxu0 %v4518
        %v4520 = vand.u32 %v2581, 4294901760
        %v4521 = vsub.f32 %v2581, %v4520
        %v4522 = vand.u32 %v4521, 4294901760
        %4523 = vmatprep.subr.mxu0 %v4522
        %v4524 = vand.u32 %v2580, 4294901760
        %v4525 = vsub.f32 %v2580, %v4524
        %v4526 = vand.u32 %v4525, 4294901760
        %4527 = vmatpush1.msra.mxu0 %v4526
        %v4528 = vand.u32 %v2643, 4294901760
        %v4529 = vsub.f32 %v2643, %v4528
        %v4530 = vand.u32 %v4529, 4294901760
        %4531 = vmatprep.subr.mxu0 %v4530
        %v4532 = vand.u32 %v2642, 4294901760
        %v4533 = vsub.f32 %v2642, %v4532
        %v4534 = vand.u32 %v4533, 4294901760
        %4535 = vmatpush2.msra.mxu0 %v4534
        %v4536 = vand.u32 %v2641, 4294901760
        %v4537 = vsub.f32 %v2641, %v4536
        %v4538 = vand.u32 %v4537, 4294901760
        %4539 = vmatprep.subr.mxu0 %v4538
        %v4540 = vand.u32 %v2640, 4294901760
        %v4541 = vsub.f32 %v2640, %v4540
        %v4542 = vand.u32 %v4541, 4294901760
        %4543 = vmatpush2.msra.mxu0 %v4542
        %v4544 = vand.u32 %v2639, 4294901760
        %v4545 = vsub.f32 %v2639, %v4544
        %v4546 = vand.u32 %v4545, 4294901760
        %4547 = vmatprep.subr.mxu0 %v4546
        %v4548 = vand.u32 %v2638, 4294901760
        %v4549 = vsub.f32 %v2638, %v4548
        %v4550 = vand.u32 %v4549, 4294901760
        %4551 = vmatpush2.msra.mxu0 %v4550
        %v4552 = vand.u32 %v2637, 4294901760
        %v4553 = vsub.f32 %v2637, %v4552
        %v4554 = vand.u32 %v4553, 4294901760
        %4555 = vmatprep.subr.mxu0 %v4554
        %v4556 = vand.u32 %v2636, 4294901760
        %v4557 = vsub.f32 %v2636, %v4556
        %v4558 = vand.u32 %v4557, 4294901760
        %4559 = vmatpush2.msra.mxu0 %v4558
        %v4560 = vand.u32 %v2635, 4294901760
        %v4561 = vsub.f32 %v2635, %v4560
        %v4562 = vand.u32 %v4561, 4294901760
        %4563 = vmatprep.subr.mxu0 %v4562
        %v4564 = vand.u32 %v2634, 4294901760
        %v4565 = vsub.f32 %v2634, %v4564
        %v4566 = vand.u32 %v4565, 4294901760
        %4567 = vmatpush2.msra.mxu0 %v4566
        %v4568 = vand.u32 %v2633, 4294901760
        %v4569 = vsub.f32 %v2633, %v4568
        %v4570 = vand.u32 %v4569, 4294901760
        %4571 = vmatprep.subr.mxu0 %v4570
        %v4572 = vand.u32 %v2632, 4294901760
        %v4573 = vsub.f32 %v2632, %v4572
        %v4574 = vand.u32 %v4573, 4294901760
        %4575 = vmatpush2.msra.mxu0 %v4574
        %v4576 = vand.u32 %v2631, 4294901760
        %v4577 = vsub.f32 %v2631, %v4576
        %v4578 = vand.u32 %v4577, 4294901760
        %4579 = vmatprep.subr.mxu0 %v4578
        %v4580 = vand.u32 %v2630, 4294901760
        %v4581 = vsub.f32 %v2630, %v4580
        %v4582 = vand.u32 %v4581, 4294901760
        %4583 = vmatpush2.msra.mxu0 %v4582
        %v4584 = vand.u32 %v2629, 4294901760
        %v4585 = vsub.f32 %v2629, %v4584
        %v4586 = vand.u32 %v4585, 4294901760
        %4587 = vmatprep.subr.mxu0 %v4586
        %v4588 = vand.u32 %v2628, 4294901760
        %v4589 = vsub.f32 %v2628, %v4588
        %v4590 = vand.u32 %v4589, 4294901760
        %4591 = vmatpush2.msra.mxu0 %v4590
        %v4592 = vand.u32 %v2627, 4294901760
        %v4593 = vsub.f32 %v2627, %v4592
        %v4594 = vand.u32 %v4593, 4294901760
        %4595 = vmatprep.subr.mxu0 %v4594
        %v4596 = vand.u32 %v2626, 4294901760
        %v4597 = vsub.f32 %v2626, %v4596
        %v4598 = vand.u32 %v4597, 4294901760
        %4599 = vmatpush2.msra.mxu0 %v4598
        %v4600 = vand.u32 %v2625, 4294901760
        %v4601 = vsub.f32 %v2625, %v4600
        %v4602 = vand.u32 %v4601, 4294901760
        %4603 = vmatprep.subr.mxu0 %v4602
        %v4604 = vand.u32 %v2624, 4294901760
        %v4605 = vsub.f32 %v2624, %v4604
        %v4606 = vand.u32 %v4605, 4294901760
        %4607 = vmatpush2.msra.mxu0 %v4606
        %v4608 = vand.u32 %v2623, 4294901760
        %v4609 = vsub.f32 %v2623, %v4608
        %v4610 = vand.u32 %v4609, 4294901760
        %4611 = vmatprep.subr.mxu0 %v4610
        %v4612 = vand.u32 %v2622, 4294901760
        %v4613 = vsub.f32 %v2622, %v4612
        %v4614 = vand.u32 %v4613, 4294901760
        %4615 = vmatpush2.msra.mxu0 %v4614
        %v4616 = vand.u32 %v2621, 4294901760
        %v4617 = vsub.f32 %v2621, %v4616
        %v4618 = vand.u32 %v4617, 4294901760
        %4619 = vmatprep.subr.mxu0 %v4618
        %v4620 = vand.u32 %v2620, 4294901760
        %v4621 = vsub.f32 %v2620, %v4620
        %v4622 = vand.u32 %v4621, 4294901760
        %4623 = vmatpush2.msra.mxu0 %v4622
        %v4624 = vand.u32 %v2619, 4294901760
        %v4625 = vsub.f32 %v2619, %v4624
        %v4626 = vand.u32 %v4625, 4294901760
        %4627 = vmatprep.subr.mxu0 %v4626
        %v4628 = vand.u32 %v2618, 4294901760
        %v4629 = vsub.f32 %v2618, %v4628
        %v4630 = vand.u32 %v4629, 4294901760
        %4631 = vmatpush2.msra.mxu0 %v4630
        %v4632 = vand.u32 %v2617, 4294901760
        %v4633 = vsub.f32 %v2617, %v4632
        %v4634 = vand.u32 %v4633, 4294901760
        %4635 = vmatprep.subr.mxu0 %v4634
        %v4636 = vand.u32 %v2616, 4294901760
        %v4637 = vsub.f32 %v2616, %v4636
        %v4638 = vand.u32 %v4637, 4294901760
        %4639 = vmatpush2.msra.mxu0 %v4638
        %v4640 = vand.u32 %v2615, 4294901760
        %v4641 = vsub.f32 %v2615, %v4640
        %v4642 = vand.u32 %v4641, 4294901760
        %4643 = vmatprep.subr.mxu0 %v4642
        %v4644 = vand.u32 %v2614, 4294901760
        %v4645 = vsub.f32 %v2614, %v4644
        %v4646 = vand.u32 %v4645, 4294901760
        %4647 = vmatpush2.msra.mxu0 %v4646
        %v4648 = vand.u32 %v2613, 4294901760
        %v4649 = vsub.f32 %v2613, %v4648
        %v4650 = vand.u32 %v4649, 4294901760
        %4651 = vmatprep.subr.mxu0 %v4650
        %v4652 = vand.u32 %v2612, 4294901760
        %v4653 = vsub.f32 %v2612, %v4652
        %v4654 = vand.u32 %v4653, 4294901760
        %4655 = vmatpush2.msra.mxu0 %v4654
        %v4656 = vand.u32 %v2426, 4294901760
        %4657 = vmatprep.mubr.f32.mxu0 %v4656
        %v4658 = vand.u32 %v2424, 4294901760
        %4659 = vmatmul.mubr.f32.gmra.mxu0 %v4658
        %v4660 = vpop.f32.mrf.mxu0
        %v4661 = vadd.f32 %v4168, %v4660
        %v4662 = vpop.f32.mrf.mxu0
        %v4663 = vadd.f32 %v4170, %v4662
        %v4664 = vand.u32 %v2434, 4294901760
        %4665 = vmatprep.mubr.f32.mxu0 %v4664
        %v4666 = vand.u32 %v2432, 4294901760
        %4667 = vmatmul.mubr.f32.gmra.mxu0 %v4666
        %v4668 = vpop.f32.mrf.mxu0
        %v4669 = vadd.f32 %v4180, %v4668
        %v4670 = vpop.f32.mrf.mxu0
        %v4671 = vadd.f32 %v4182, %v4670
        %v4672 = vand.u32 %v2442, 4294901760
        %4673 = vmatprep.mubr.f32.mxu0 %v4672
        %v4674 = vand.u32 %v2440, 4294901760
        %4675 = vmatmul.mubr.f32.gmra.mxu0 %v4674
        %v4676 = vpop.f32.mrf.mxu0
        %v4677 = vadd.f32 %v4192, %v4676
        %v4678 = vpop.f32.mrf.mxu0
        %v4679 = vadd.f32 %v4194, %v4678
        %v4680 = vand.u32 %v2450, 4294901760
        %4681 = vmatprep.mubr.f32.mxu0 %v4680
        %v4682 = vand.u32 %v2448, 4294901760
        %4683 = vmatmul.mubr.f32.gmra.mxu0 %v4682
        %v4684 = vpop.f32.mrf.mxu0
        %v4685 = vadd.f32 %v4204, %v4684
        %v4686 = vpop.f32.mrf.mxu0
        %v4687 = vadd.f32 %v4206, %v4686
        %v4688 = vand.u32 %v2458, 4294901760
        %4689 = vmatprep.mubr.f32.mxu0 %v4688
        %v4690 = vand.u32 %v2456, 4294901760
        %4691 = vmatmul.mubr.f32.gmra.mxu0 %v4690
        %v4692 = vpop.f32.mrf.mxu0
        %v4693 = vadd.f32 %v4216, %v4692
        %v4694 = vpop.f32.mrf.mxu0
        %v4695 = vadd.f32 %v4218, %v4694
        %v4696 = vand.u32 %v2466, 4294901760
        %4697 = vmatprep.mubr.f32.mxu0 %v4696
        %v4698 = vand.u32 %v2464, 4294901760
        %4699 = vmatmul.mubr.f32.gmra.mxu0 %v4698
        %v4700 = vpop.f32.mrf.mxu0
        %v4701 = vadd.f32 %v4228, %v4700
        %v4702 = vpop.f32.mrf.mxu0
        %v4703 = vadd.f32 %v4230, %v4702
        %v4704 = vand.u32 %v2474, 4294901760
        %4705 = vmatprep.mubr.f32.mxu0 %v4704
        %v4706 = vand.u32 %v2472, 4294901760
        %4707 = vmatmul.mubr.f32.gmra.mxu0 %v4706
        %v4708 = vpop.f32.mrf.mxu0
        %v4709 = vadd.f32 %v4240, %v4708
        %v4710 = vpop.f32.mrf.mxu0
        %v4711 = vadd.f32 %v4242, %v4710
        %v4712 = vand.u32 %v2482, 4294901760
        %4713 = vmatprep.mubr.f32.mxu0 %v4712
        %v4714 = vand.u32 %v2480, 4294901760
        %4715 = vmatmul.mubr.f32.gmra.mxu0 %v4714
        %v4716 = vpop.f32.mrf.mxu0
        %v4717 = vadd.f32 %v4252, %v4716
        %v4718 = vpop.f32.mrf.mxu0
        %v4719 = vadd.f32 %v4254, %v4718
        %v4720 = vand.u32 %v2490, 4294901760
        %4721 = vmatprep.mubr.f32.mxu0 %v4720
        %v4722 = vand.u32 %v2488, 4294901760
        %4723 = vmatmul.mubr.f32.gmra.mxu0 %v4722
        %v4724 = vpop.f32.mrf.mxu0
        %v4725 = vadd.f32 %v4264, %v4724
        %v4726 = vpop.f32.mrf.mxu0
        %v4727 = vadd.f32 %v4266, %v4726
        %v4728 = vand.u32 %v2498, 4294901760
        %4729 = vmatprep.mubr.f32.mxu0 %v4728
        %v4730 = vand.u32 %v2496, 4294901760
        %4731 = vmatmul.mubr.f32.gmra.mxu0 %v4730
        %v4732 = vpop.f32.mrf.mxu0
        %v4733 = vadd.f32 %v4276, %v4732
        %v4734 = vpop.f32.mrf.mxu0
        %v4735 = vadd.f32 %v4278, %v4734
        %v4736 = vand.u32 %v2506, 4294901760
        %4737 = vmatprep.mubr.f32.mxu0 %v4736
        %v4738 = vand.u32 %v2504, 4294901760
        %4739 = vmatmul.mubr.f32.gmra.mxu0 %v4738
        %v4740 = vpop.f32.mrf.mxu0
        %v4741 = vadd.f32 %v4288, %v4740
        %v4742 = vpop.f32.mrf.mxu0
        %v4743 = vadd.f32 %v4290, %v4742
        %v4744 = vand.u32 %v2514, 4294901760
        %4745 = vmatprep.mubr.f32.mxu0 %v4744
        %v4746 = vand.u32 %v2512, 4294901760
        %4747 = vmatmul.mubr.f32.gmra.mxu0 %v4746
        %v4748 = vpop.f32.mrf.mxu0
        %v4749 = vadd.f32 %v4300, %v4748
        %v4750 = vpop.f32.mrf.mxu0
        %v4751 = vadd.f32 %v4302, %v4750
        %v4752 = vand.u32 %v2522, 4294901760
        %4753 = vmatprep.mubr.f32.mxu0 %v4752
        %v4754 = vand.u32 %v2520, 4294901760
        %4755 = vmatmul.mubr.f32.gmra.mxu0 %v4754
        %v4756 = vpop.f32.mrf.mxu0
        %v4757 = vadd.f32 %v4312, %v4756
        %v4758 = vpop.f32.mrf.mxu0
        %v4759 = vadd.f32 %v4314, %v4758
        %v4760 = vand.u32 %v2530, 4294901760
        %4761 = vmatprep.mubr.f32.mxu0 %v4760
        %v4762 = vand.u32 %v2528, 4294901760
        %4763 = vmatmul.mubr.f32.gmra.mxu0 %v4762
        %v4764 = vpop.f32.mrf.mxu0
        %v4765 = vadd.f32 %v4324, %v4764
        %v4766 = vpop.f32.mrf.mxu0
        %v4767 = vadd.f32 %v4326, %v4766
        %v4768 = vand.u32 %v2538, 4294901760
        %4769 = vmatprep.mubr.f32.mxu0 %v4768
        %v4770 = vand.u32 %v2536, 4294901760
        %4771 = vmatmul.mubr.f32.gmra.mxu0 %v4770
        %v4772 = vpop.f32.mrf.mxu0
        %v4773 = vadd.f32 %v4336, %v4772
        %v4774 = vpop.f32.mrf.mxu0
        %v4775 = vadd.f32 %v4338, %v4774
        %v4776 = vand.u32 %v2546, 4294901760
        %4777 = vmatprep.mubr.f32.mxu0 %v4776
        %v4778 = vand.u32 %v2544, 4294901760
        %4779 = vmatmul.mubr.f32.gmra.mxu0 %v4778
        %v4780 = vpop.f32.mrf.mxu0
        %v4781 = vadd.f32 %v4348, %v4780
        %v4782 = vpop.f32.mrf.mxu0
        %v4783 = vadd.f32 %v4350, %v4782
        %v4784 = vand.u32 %v2554, 4294901760
        %4785 = vmatprep.mubr.f32.mxu0 %v4784
        %v4786 = vand.u32 %v2552, 4294901760
        %4787 = vmatmul.mubr.f32.gmra.mxu0 %v4786
        %v4788 = vpop.f32.mrf.mxu0
        %v4789 = vadd.f32 %v4360, %v4788
        %v4790 = vpop.f32.mrf.mxu0
        %v4791 = vadd.f32 %v4362, %v4790
        %v4792 = vand.u32 %v2562, 4294901760
        %4793 = vmatprep.mubr.f32.mxu0 %v4792
        %v4794 = vand.u32 %v2560, 4294901760
        %4795 = vmatmul.mubr.f32.gmra.mxu0 %v4794
        %v4796 = vpop.f32.mrf.mxu0
        %v4797 = vadd.f32 %v4372, %v4796
        %v4798 = vpop.f32.mrf.mxu0
        %v4799 = vadd.f32 %v4374, %v4798
        %v4800 = vand.u32 %v2570, 4294901760
        %4801 = vmatprep.mubr.f32.mxu0 %v4800
        %v4802 = vand.u32 %v2568, 4294901760
        %4803 = vmatmul.mubr.f32.gmra.mxu0 %v4802
        %v4804 = vpop.f32.mrf.mxu0
        %v4805 = vadd.f32 %v4384, %v4804
        %v4806 = vpop.f32.mrf.mxu0
        %v4807 = vadd.f32 %v4386, %v4806
        %v4808 = vand.u32 %v2578, 4294901760
        %4809 = vmatprep.mubr.f32.mxu0 %v4808
        %v4810 = vand.u32 %v2576, 4294901760
        %4811 = vmatmul.mubr.f32.gmra.mxu0 %v4810
        %v4812 = vpop.f32.mrf.mxu0
        %v4813 = vadd.f32 %v4396, %v4812
        %v4814 = vpop.f32.mrf.mxu0
        %v4815 = vadd.f32 %v4398, %v4814
        %4816 = vdwg.mxu0
        %v4817 = vand.u32 %v2611, 4294901760
        %4818 = vmatprep.subr.mxu0 %v4817
        %v4819 = vand.u32 %v2610, 4294901760
        %4820 = vmatpush1.msra.mxu0 %v4819
        %v4821 = vand.u32 %v2609, 4294901760
        %4822 = vmatprep.subr.mxu0 %v4821
        %v4823 = vand.u32 %v2608, 4294901760
        %4824 = vmatpush1.msra.mxu0 %v4823
        %v4825 = vand.u32 %v2607, 4294901760
        %4826 = vmatprep.subr.mxu0 %v4825
        %v4827 = vand.u32 %v2606, 4294901760
        %4828 = vmatpush1.msra.mxu0 %v4827
        %v4829 = vand.u32 %v2605, 4294901760
        %4830 = vmatprep.subr.mxu0 %v4829
        %v4831 = vand.u32 %v2604, 4294901760
        %4832 = vmatpush1.msra.mxu0 %v4831
        %v4833 = vand.u32 %v2603, 4294901760
        %4834 = vmatprep.subr.mxu0 %v4833
        %v4835 = vand.u32 %v2602, 4294901760
        %4836 = vmatpush1.msra.mxu0 %v4835
        %v4837 = vand.u32 %v2601, 4294901760
        %4838 = vmatprep.subr.mxu0 %v4837
        %v4839 = vand.u32 %v2600, 4294901760
        %4840 = vmatpush1.msra.mxu0 %v4839
        %v4841 = vand.u32 %v2599, 4294901760
        %4842 = vmatprep.subr.mxu0 %v4841
        %v4843 = vand.u32 %v2598, 4294901760
        %4844 = vmatpush1.msra.mxu0 %v4843
        %v4845 = vand.u32 %v2597, 4294901760
        %4846 = vmatprep.subr.mxu0 %v4845
        %v4847 = vand.u32 %v2596, 4294901760
        %4848 = vmatpush1.msra.mxu0 %v4847
        %v4849 = vand.u32 %v2595, 4294901760
        %4850 = vmatprep.subr.mxu0 %v4849
        %v4851 = vand.u32 %v2594, 4294901760
        %4852 = vmatpush1.msra.mxu0 %v4851
        %v4853 = vand.u32 %v2593, 4294901760
        %4854 = vmatprep.subr.mxu0 %v4853
        %v4855 = vand.u32 %v2592, 4294901760
        %4856 = vmatpush1.msra.mxu0 %v4855
        %v4857 = vand.u32 %v2591, 4294901760
        %4858 = vmatprep.subr.mxu0 %v4857
        %v4859 = vand.u32 %v2590, 4294901760
        %4860 = vmatpush1.msra.mxu0 %v4859
        %v4861 = vand.u32 %v2589, 4294901760
        %4862 = vmatprep.subr.mxu0 %v4861
        %v4863 = vand.u32 %v2588, 4294901760
        %4864 = vmatpush1.msra.mxu0 %v4863
        %v4865 = vand.u32 %v2587, 4294901760
        %4866 = vmatprep.subr.mxu0 %v4865
        %v4867 = vand.u32 %v2586, 4294901760
        %4868 = vmatpush1.msra.mxu0 %v4867
        %v4869 = vand.u32 %v2585, 4294901760
        %4870 = vmatprep.subr.mxu0 %v4869
        %v4871 = vand.u32 %v2584, 4294901760
        %4872 = vmatpush1.msra.mxu0 %v4871
        %v4873 = vand.u32 %v2583, 4294901760
        %4874 = vmatprep.subr.mxu0 %v4873
        %v4875 = vand.u32 %v2582, 4294901760
        %4876 = vmatpush1.msra.mxu0 %v4875
        %v4877 = vand.u32 %v2581, 4294901760
        %4878 = vmatprep.subr.mxu0 %v4877
        %v4879 = vand.u32 %v2580, 4294901760
        %4880 = vmatpush1.msra.mxu0 %v4879
        %v4881 = vand.u32 %v2643, 4294901760
        %4882 = vmatprep.subr.mxu0 %v4881
        %v4883 = vand.u32 %v2642, 4294901760
        %4884 = vmatpush2.msra.mxu0 %v4883
        %v4885 = vand.u32 %v2641, 4294901760
        %4886 = vmatprep.subr.mxu0 %v4885
        %v4887 = vand.u32 %v2640, 4294901760
        %4888 = vmatpush2.msra.mxu0 %v4887
        %v4889 = vand.u32 %v2639, 4294901760
        %4890 = vmatprep.subr.mxu0 %v4889
        %v4891 = vand.u32 %v2638, 4294901760
        %4892 = vmatpush2.msra.mxu0 %v4891
        %v4893 = vand.u32 %v2637, 4294901760
        %4894 = vmatprep.subr.mxu0 %v4893
        %v4895 = vand.u32 %v2636, 4294901760
        %4896 = vmatpush2.msra.mxu0 %v4895
        %v4897 = vand.u32 %v2635, 4294901760
        %4898 = vmatprep.subr.mxu0 %v4897
        %v4899 = vand.u32 %v2634, 4294901760
        %4900 = vmatpush2.msra.mxu0 %v4899
        %v4901 = vand.u32 %v2633, 4294901760
        %4902 = vmatprep.subr.mxu0 %v4901
        %v4903 = vand.u32 %v2632, 4294901760
        %4904 = vmatpush2.msra.mxu0 %v4903
        %v4905 = vand.u32 %v2631, 4294901760
        %4906 = vmatprep.subr.mxu0 %v4905
        %v4907 = vand.u32 %v2630, 4294901760
        %4908 = vmatpush2.msra.mxu0 %v4907
        %v4909 = vand.u32 %v2629, 4294901760
        %4910 = vmatprep.subr.mxu0 %v4909
        %v4911 = vand.u32 %v2628, 4294901760
        %4912 = vmatpush2.msra.mxu0 %v4911
        %v4913 = vand.u32 %v2627, 4294901760
        %4914 = vmatprep.subr.mxu0 %v4913
        %v4915 = vand.u32 %v2626, 4294901760
        %4916 = vmatpush2.msra.mxu0 %v4915
        %v4917 = vand.u32 %v2625, 4294901760
        %4918 = vmatprep.subr.mxu0 %v4917
        %v4919 = vand.u32 %v2624, 4294901760
        %4920 = vmatpush2.msra.mxu0 %v4919
        %v4921 = vand.u32 %v2623, 4294901760
        %4922 = vmatprep.subr.mxu0 %v4921
        %v4923 = vand.u32 %v2622, 4294901760
        %4924 = vmatpush2.msra.mxu0 %v4923
        %v4925 = vand.u32 %v2621, 4294901760
        %4926 = vmatprep.subr.mxu0 %v4925
        %v4927 = vand.u32 %v2620, 4294901760
        %4928 = vmatpush2.msra.mxu0 %v4927
        %v4929 = vand.u32 %v2619, 4294901760
        %4930 = vmatprep.subr.mxu0 %v4929
        %v4931 = vand.u32 %v2618, 4294901760
        %4932 = vmatpush2.msra.mxu0 %v4931
        %v4933 = vand.u32 %v2617, 4294901760
        %4934 = vmatprep.subr.mxu0 %v4933
        %v4935 = vand.u32 %v2616, 4294901760
        %4936 = vmatpush2.msra.mxu0 %v4935
        %v4937 = vand.u32 %v2615, 4294901760
        %4938 = vmatprep.subr.mxu0 %v4937
        %v4939 = vand.u32 %v2614, 4294901760
        %4940 = vmatpush2.msra.mxu0 %v4939
        %v4941 = vand.u32 %v2613, 4294901760
        %4942 = vmatprep.subr.mxu0 %v4941
        %v4943 = vand.u32 %v2612, 4294901760
        %4944 = vmatpush2.msra.mxu0 %v4943
        %v4945 = vand.u32 %v2426, 4294901760
        %4946 = vmatprep.mubr.f32.mxu0 %v4945
        %v4947 = vand.u32 %v2424, 4294901760
        %4948 = vmatmul.mubr.f32.gmra.mxu0 %v4947
        %v4949 = vpop.f32.mrf.mxu0
        %v4950 = vadd.f32 %v4661, %v4949
        %v4951 = vpop.f32.mrf.mxu0
        %v4952 = vadd.f32 %v4663, %v4951
        %v4953 = vand.u32 %v2434, 4294901760
        %4954 = vmatprep.mubr.f32.mxu0 %v4953
        %v4955 = vand.u32 %v2432, 4294901760
        %4956 = vmatmul.mubr.f32.gmra.mxu0 %v4955
        %v4957 = vpop.f32.mrf.mxu0
        %v4958 = vadd.f32 %v4669, %v4957
        %v4959 = vpop.f32.mrf.mxu0
        %v4960 = vadd.f32 %v4671, %v4959
        %v4961 = vand.u32 %v2442, 4294901760
        %4962 = vmatprep.mubr.f32.mxu0 %v4961
        %v4963 = vand.u32 %v2440, 4294901760
        %4964 = vmatmul.mubr.f32.gmra.mxu0 %v4963
        %v4965 = vpop.f32.mrf.mxu0
        %v4966 = vadd.f32 %v4677, %v4965
        %v4967 = vpop.f32.mrf.mxu0
        %v4968 = vadd.f32 %v4679, %v4967
        %v4969 = vand.u32 %v2450, 4294901760
        %4970 = vmatprep.mubr.f32.mxu0 %v4969
        %v4971 = vand.u32 %v2448, 4294901760
        %4972 = vmatmul.mubr.f32.gmra.mxu0 %v4971
        %v4973 = vpop.f32.mrf.mxu0
        %v4974 = vadd.f32 %v4685, %v4973
        %v4975 = vpop.f32.mrf.mxu0
        %v4976 = vadd.f32 %v4687, %v4975
        %v4977 = vand.u32 %v2458, 4294901760
        %4978 = vmatprep.mubr.f32.mxu0 %v4977
        %v4979 = vand.u32 %v2456, 4294901760
        %4980 = vmatmul.mubr.f32.gmra.mxu0 %v4979
        %v4981 = vpop.f32.mrf.mxu0
        %v4982 = vadd.f32 %v4693, %v4981
        %v4983 = vpop.f32.mrf.mxu0
        %v4984 = vadd.f32 %v4695, %v4983
        %v4985 = vand.u32 %v2466, 4294901760
        %4986 = vmatprep.mubr.f32.mxu0 %v4985
        %v4987 = vand.u32 %v2464, 4294901760
        %4988 = vmatmul.mubr.f32.gmra.mxu0 %v4987
        %v4989 = vpop.f32.mrf.mxu0
        %v4990 = vadd.f32 %v4701, %v4989
        %v4991 = vpop.f32.mrf.mxu0
        %v4992 = vadd.f32 %v4703, %v4991
        %v4993 = vand.u32 %v2474, 4294901760
        %4994 = vmatprep.mubr.f32.mxu0 %v4993
        %v4995 = vand.u32 %v2472, 4294901760
        %4996 = vmatmul.mubr.f32.gmra.mxu0 %v4995
        %v4997 = vpop.f32.mrf.mxu0
        %v4998 = vadd.f32 %v4709, %v4997
        %v4999 = vpop.f32.mrf.mxu0
        %v5000 = vadd.f32 %v4711, %v4999
        %v5001 = vand.u32 %v2482, 4294901760
        %5002 = vmatprep.mubr.f32.mxu0 %v5001
        %v5003 = vand.u32 %v2480, 4294901760
        %5004 = vmatmul.mubr.f32.gmra.mxu0 %v5003
        %v5005 = vpop.f32.mrf.mxu0
        %v5006 = vadd.f32 %v4717, %v5005
        %v5007 = vpop.f32.mrf.mxu0
        %v5008 = vadd.f32 %v4719, %v5007
        %v5009 = vand.u32 %v2490, 4294901760
        %5010 = vmatprep.mubr.f32.mxu0 %v5009
        %v5011 = vand.u32 %v2488, 4294901760
        %5012 = vmatmul.mubr.f32.gmra.mxu0 %v5011
        %v5013 = vpop.f32.mrf.mxu0
        %v5014 = vadd.f32 %v4725, %v5013
        %v5015 = vpop.f32.mrf.mxu0
        %v5016 = vadd.f32 %v4727, %v5015
        %v5017 = vand.u32 %v2498, 4294901760
        %5018 = vmatprep.mubr.f32.mxu0 %v5017
        %v5019 = vand.u32 %v2496, 4294901760
        %5020 = vmatmul.mubr.f32.gmra.mxu0 %v5019
        %v5021 = vpop.f32.mrf.mxu0
        %v5022 = vadd.f32 %v4733, %v5021
        %v5023 = vpop.f32.mrf.mxu0
        %v5024 = vadd.f32 %v4735, %v5023
        %v5025 = vand.u32 %v2506, 4294901760
        %5026 = vmatprep.mubr.f32.mxu0 %v5025
        %v5027 = vand.u32 %v2504, 4294901760
        %5028 = vmatmul.mubr.f32.gmra.mxu0 %v5027
        %v5029 = vpop.f32.mrf.mxu0
        %v5030 = vadd.f32 %v4741, %v5029
        %v5031 = vpop.f32.mrf.mxu0
        %v5032 = vadd.f32 %v4743, %v5031
        %v5033 = vand.u32 %v2514, 4294901760
        %5034 = vmatprep.mubr.f32.mxu0 %v5033
        %v5035 = vand.u32 %v2512, 4294901760
        %5036 = vmatmul.mubr.f32.gmra.mxu0 %v5035
        %v5037 = vpop.f32.mrf.mxu0
        %v5038 = vadd.f32 %v4749, %v5037
        %v5039 = vpop.f32.mrf.mxu0
        %v5040 = vadd.f32 %v4751, %v5039
        %v5041 = vand.u32 %v2522, 4294901760
        %5042 = vmatprep.mubr.f32.mxu0 %v5041
        %v5043 = vand.u32 %v2520, 4294901760
        %5044 = vmatmul.mubr.f32.gmra.mxu0 %v5043
        %v5045 = vpop.f32.mrf.mxu0
        %v5046 = vadd.f32 %v4757, %v5045
        %v5047 = vpop.f32.mrf.mxu0
        %v5048 = vadd.f32 %v4759, %v5047
        %v5049 = vand.u32 %v2530, 4294901760
        %5050 = vmatprep.mubr.f32.mxu0 %v5049
        %v5051 = vand.u32 %v2528, 4294901760
        %5052 = vmatmul.mubr.f32.gmra.mxu0 %v5051
        %v5053 = vpop.f32.mrf.mxu0
        %v5054 = vadd.f32 %v4765, %v5053
        %v5055 = vpop.f32.mrf.mxu0
        %v5056 = vadd.f32 %v4767, %v5055
        %v5057 = vand.u32 %v2538, 4294901760
        %5058 = vmatprep.mubr.f32.mxu0 %v5057
        %v5059 = vand.u32 %v2536, 4294901760
        %5060 = vmatmul.mubr.f32.gmra.mxu0 %v5059
        %v5061 = vpop.f32.mrf.mxu0
        %v5062 = vadd.f32 %v4773, %v5061
        %v5063 = vpop.f32.mrf.mxu0
        %v5064 = vadd.f32 %v4775, %v5063
        %v5065 = vand.u32 %v2546, 4294901760
        %5066 = vmatprep.mubr.f32.mxu0 %v5065
        %v5067 = vand.u32 %v2544, 4294901760
        %5068 = vmatmul.mubr.f32.gmra.mxu0 %v5067
        %v5069 = vpop.f32.mrf.mxu0
        %v5070 = vadd.f32 %v4781, %v5069
        %v5071 = vpop.f32.mrf.mxu0
        %v5072 = vadd.f32 %v4783, %v5071
        %v5073 = vand.u32 %v2554, 4294901760
        %5074 = vmatprep.mubr.f32.mxu0 %v5073
        %v5075 = vand.u32 %v2552, 4294901760
        %5076 = vmatmul.mubr.f32.gmra.mxu0 %v5075
        %v5077 = vpop.f32.mrf.mxu0
        %v5078 = vadd.f32 %v4789, %v5077
        %v5079 = vpop.f32.mrf.mxu0
        %v5080 = vadd.f32 %v4791, %v5079
        %v5081 = vand.u32 %v2562, 4294901760
        %5082 = vmatprep.mubr.f32.mxu0 %v5081
        %v5083 = vand.u32 %v2560, 4294901760
        %5084 = vmatmul.mubr.f32.gmra.mxu0 %v5083
        %v5085 = vpop.f32.mrf.mxu0
        %v5086 = vadd.f32 %v4797, %v5085
        %v5087 = vpop.f32.mrf.mxu0
        %v5088 = vadd.f32 %v4799, %v5087
        %v5089 = vand.u32 %v2570, 4294901760
        %5090 = vmatprep.mubr.f32.mxu0 %v5089
        %v5091 = vand.u32 %v2568, 4294901760
        %5092 = vmatmul.mubr.f32.gmra.mxu0 %v5091
        %v5093 = vpop.f32.mrf.mxu0
        %v5094 = vadd.f32 %v4805, %v5093
        %v5095 = vpop.f32.mrf.mxu0
        %v5096 = vadd.f32 %v4807, %v5095
        %v5097 = vand.u32 %v2578, 4294901760
        %5098 = vmatprep.mubr.f32.mxu0 %v5097
        %v5099 = vand.u32 %v2576, 4294901760
        %5100 = vmatmul.mubr.f32.gmra.mxu0 %v5099
        %v5101 = vpop.f32.mrf.mxu0
        %v5102 = vadd.f32 %v4813, %v5101
        %v5103 = vpop.f32.mrf.mxu0
        %v5104 = vadd.f32 %v4815, %v5103
        %5105 = vdwg.mxu0
        %v5106 = vmul.f32 %v4950, %v4950
        %v5107 = vmul.f32 %v4952, %v4952
        %v5108 = vmul.f32 %v4958, %v4958
        %v5109 = vmul.f32 %v4960, %v4960
        %v5110 = vmul.f32 %v4966, %v4966
        %v5111 = vmul.f32 %v4968, %v4968
        %v5112 = vmul.f32 %v4974, %v4974
        %v5113 = vmul.f32 %v4976, %v4976
        %v5114 = vmul.f32 %v4982, %v4982
        %v5115 = vmul.f32 %v4984, %v4984
        %v5116 = vmul.f32 %v4990, %v4990
        %v5117 = vmul.f32 %v4992, %v4992
        %v5118 = vmul.f32 %v4998, %v4998
        %v5119 = vmul.f32 %v5000, %v5000
        %v5120 = vmul.f32 %v5006, %v5006
        %v5121 = vmul.f32 %v5008, %v5008
        %v5122 = vmul.f32 %v4950, %v4982
        %v5123 = vmul.f32 %v4952, %v4984
        %v5124 = vmul.f32 %v4958, %v4990
        %v5125 = vmul.f32 %v4960, %v4992
        %v5126 = vmul.f32 %v4966, %v4998
        %v5127 = vmul.f32 %v4968, %v5000
        %v5128 = vmul.f32 %v4974, %v5006
        %v5129 = vmul.f32 %v4976, %v5008
        %v5130 = vsub.f32 %v5014, %v5106
        %v5131 = vsub.f32 %v5016, %v5107
        %v5132 = vsub.f32 %v5022, %v5108
        %v5133 = vsub.f32 %v5024, %v5109
        %v5134 = vsub.f32 %v5030, %v5110
        %v5135 = vsub.f32 %v5032, %v5111
        %v5136 = vsub.f32 %v5038, %v5112
        %v5137 = vsub.f32 %v5040, %v5113
        %v5138 = vsub.f32 %v5046, %v5114
        %v5139 = vsub.f32 %v5048, %v5115
        %v5140 = vsub.f32 %v5054, %v5116
        %v5141 = vsub.f32 %v5056, %v5117
        %v5142 = vsub.f32 %v5062, %v5118
        %v5143 = vsub.f32 %v5064, %v5119
        %v5144 = vsub.f32 %v5070, %v5120
        %v5145 = vsub.f32 %v5072, %v5121
        %v5146 = vsub.f32 %v5078, %v5122
        %v5147 = vsub.f32 %v5080, %v5123
        %v5148 = vsub.f32 %v5086, %v5124
        %v5149 = vsub.f32 %v5088, %v5125
        %v5150 = vsub.f32 %v5094, %v5126
        %v5151 = vsub.f32 %v5096, %v5127
        %v5152 = vsub.f32 %v5102, %v5128
        %v5153 = vsub.f32 %v5104, %v5129
        %v5154 = vmul.f32 %v5122, 2.0
        %v5155 = vmul.f32 %v5123, 2.0
        %v5156 = vmul.f32 %v5124, 2.0
        %v5157 = vmul.f32 %v5125, 2.0
        %v5158 = vmul.f32 %v5126, 2.0
        %v5159 = vmul.f32 %v5127, 2.0
        %v5160 = vmul.f32 %v5128, 2.0
        %v5161 = vmul.f32 %v5129, 2.0
        %v5162 = vadd.f32 %v5154, 0.0001
        %v5163 = vadd.f32 %v5155, 0.0001
        %v5164 = vadd.f32 %v5156, 0.0001
        %v5165 = vadd.f32 %v5157, 0.0001
        %v5166 = vadd.f32 %v5158, 0.0001
        %v5167 = vadd.f32 %v5159, 0.0001
        %v5168 = vadd.f32 %v5160, 0.0001
        %v5169 = vadd.f32 %v5161, 0.0001
        %v5170 = vmul.f32 %v5146, 2.0
        %v5171 = vmul.f32 %v5147, 2.0
        %v5172 = vmul.f32 %v5148, 2.0
        %v5173 = vmul.f32 %v5149, 2.0
        %v5174 = vmul.f32 %v5150, 2.0
        %v5175 = vmul.f32 %v5151, 2.0
        %v5176 = vmul.f32 %v5152, 2.0
        %v5177 = vmul.f32 %v5153, 2.0
        %v5178 = vadd.f32 %v5170, 0.0009
        %v5179 = vadd.f32 %v5171, 0.0009
        %v5180 = vadd.f32 %v5172, 0.0009
        %v5181 = vadd.f32 %v5173, 0.0009
        %v5182 = vadd.f32 %v5174, 0.0009
        %v5183 = vadd.f32 %v5175, 0.0009
        %v5184 = vadd.f32 %v5176, 0.0009
        %v5185 = vadd.f32 %v5177, 0.0009
        %v5186 = vmul.f32 %v5162, %v5178
        %v5187 = vmul.f32 %v5163, %v5179
        %v5188 = vmul.f32 %v5164, %v5180
        %v5189 = vmul.f32 %v5165, %v5181
        %v5190 = vmul.f32 %v5166, %v5182
        %v5191 = vmul.f32 %v5167, %v5183
        %v5192 = vmul.f32 %v5168, %v5184
        %v5193 = vmul.f32 %v5169, %v5185
        %v5194 = vadd.f32 %v5106, %v5114
        %v5195 = vadd.f32 %v5107, %v5115
        %v5196 = vadd.f32 %v5108, %v5116
        %v5197 = vadd.f32 %v5109, %v5117
        %v5198 = vadd.f32 %v5110, %v5118
        %v5199 = vadd.f32 %v5111, %v5119
        %v5200 = vadd.f32 %v5112, %v5120
        %v5201 = vadd.f32 %v5113, %v5121
        %v5202 = vadd.f32 %v5194, 0.0001
        %v5203 = vadd.f32 %v5195, 0.0001
        %v5204 = vadd.f32 %v5196, 0.0001
        %v5205 = vadd.f32 %v5197, 0.0001
        %v5206 = vadd.f32 %v5198, 0.0001
        %v5207 = vadd.f32 %v5199, 0.0001
        %v5208 = vadd.f32 %v5200, 0.0001
        %v5209 = vadd.f32 %v5201, 0.0001
        %v5210 = vadd.f32 %v5130, %v5138
        %v5211 = vadd.f32 %v5131, %v5139
        %v5212 = vadd.f32 %v5132, %v5140
        %v5213 = vadd.f32 %v5133, %v5141
        %v5214 = vadd.f32 %v5134, %v5142
        %v5215 = vadd.f32 %v5135, %v5143
        %v5216 = vadd.f32 %v5136, %v5144
        %v5217 = vadd.f32 %v5137, %v5145
        %v5218 = vadd.f32 %v5210, 0.0009
        %v5219 = vadd.f32 %v5211, 0.0009
        %v5220 = vadd.f32 %v5212, 0.0009
        %v5221 = vadd.f32 %v5213, 0.0009
        %v5222 = vadd.f32 %v5214, 0.0009
        %v5223 = vadd.f32 %v5215, 0.0009
        %v5224 = vadd.f32 %v5216, 0.0009
        %v5225 = vadd.f32 %v5217, 0.0009
        %v5226 = vmul.f32 %v5202, %v5218
        %v5227 = vmul.f32 %v5203, %v5219
        %v5228 = vmul.f32 %v5204, %v5220
        %v5229 = vmul.f32 %v5205, %v5221
        %v5230 = vmul.f32 %v5206, %v5222
        %v5231 = vmul.f32 %v5207, %v5223
        %v5232 = vmul.f32 %v5208, %v5224
        %v5233 = vmul.f32 %v5209, %v5225
        %v5234 = vrcp.pop %v5226
        %v5235 = vrcp.pop %v5227
        %v5236 = vrcp.pop %v5228
        %v5237 = vrcp.pop %v5229
        %v5238 = vrcp.pop %v5230
        %v5239 = vrcp.pop %v5231
        %v5240 = vrcp.pop %v5232
        %v5241 = vrcp.pop %v5233
        %v5242 = vmul.f32 %v5186, %v5234
        %v5243 = vmul.f32 %v5187, %v5235
        %v5244 = vmul.f32 %v5188, %v5236
        %v5245 = vmul.f32 %v5189, %v5237
        %v5246 = vmul.f32 %v5190, %v5238
        %v5247 = vmul.f32 %v5191, %v5239
        %v5248 = vmul.f32 %v5192, %v5240
        %v5249 = vmul.f32 %v5193, %v5241
        %v5250 = vadd.f32 %v5242, %v5243
        %v5251 = vadd.f32 %v5250, %v5244
        %v5252 = vadd.f32 %v5251, %v5245
        %v5253 = vadd.f32 %v5252, %v5246
        %v5254 = vadd.f32 %v5253, %v5247
        %v5255 = vadd.f32 %v5254, %v5248
        %v5256 = vadd.f32 %v5255, %v5249
        %5257 = vadd.xlane.f32.xlu0 %v5256
        %v5258 = vpop.xlane.xlu0 %5257
        %v5259 = vrot.slane %v5258, 4
        %v5260 = vadd.f32 %v5258, %v5259
        %v5261 = vrot.slane %v5260, 2
        %v5262 = vadd.f32 %v5260, %v5261
        %v5263 = vrot.slane %v5262, 1
        %v5264 = vadd.f32 %v5262, %v5263
        %s5265 = vtos %v5264
        %v5266 = vstv %s5265
        %5267 = vst [vmem:[%s286] sm:$0xff] %v5266
        %s5268 = sand.u32 %s127, 1
        %s5269 = scalar_lea.sflag [#allocation4], %s5268
        %s5270 = sand.u32 %s127, 1
        %s5271 = smul.addr %s5270, 8
        %s5272 = scalar_lea.vmem [#allocation10], %s5271
        // Predicated region
        $region53: #{tpu_custom_call.1} parent=35 // pred_check
          %p5273 = pneg %p137
        $region54: #{tpu_custom_call.1} parent=35 // pred_check_branch
          %5275 = sbr.rel (%p5273) target = $region56
        $region55: #{tpu_custom_call.1} parent=35 // pred_region
          %s5277 = ssub.s32 128, 128
          %5278 = vsyncadd %s5269, %s5277
          %s5279 = smul.addr %s25, 128
          %s5280 = scalar_lea.hbm %s4, %s5279
          %s5282 = sshll.u32 %s5272, 4
          %s5283 = int_to_ptr.vmem [resolvable:$true] %s5282
          %5285 = dma.vmem_to_hbm [thread:$0]  %s5283, 128, %s5280, %s5269
        $region56: #{tpu_custom_call.1} parent=35 // pred_fallthru
          _
      $region36: #{tpu_custom_call.1} parent=5 // pred_fallthru
        _
      %p5286 = scmp.le.s32.totalorder 2, %s20
      // Predicated region
      $region57: #{tpu_custom_call.1} parent=5 // pred_check
        %p5287 = pneg %p5286
      $region58: #{tpu_custom_call.1} parent=5 // pred_check_branch
        %5289 = sbr.rel (%p5287) target = $region60
      $region59: #{tpu_custom_call.1} parent=5 // pred_region
        %s5290 = ssub.s32 %s20, 2
        // Predicated region
        $region61: #{tpu_custom_call.1} parent=59 // pred_check
          %p5291 = pneg %p143
        $region62: #{tpu_custom_call.1} parent=59 // pred_check_branch
          %5293 = sbr.rel (%p5291) target = $region64
        $region63: #{tpu_custom_call.1} parent=59 // pred_region
          %s5294 = sand.u32 %s128, 1
          %s5295 = scalar_lea.sflag [#allocation4], %s5294
          %s5296 = sand.u32 %s128, 1
          %s5297 = smul.addr %s5296, 8
          %s5298 = scalar_lea.vmem [#allocation10], %s5297
          %5299 = dma.done %s5295, 128
        $region64: #{tpu_custom_call.1} parent=59 // pred_fallthru
          _
      $region60: #{tpu_custom_call.1} parent=5 // pred_fallthru
        _
    $region6: #{tpu_custom_call.1} parent=1 // loop_footer
      %s24 = sadd.s32 1, %s20
    $region7: #{tpu_custom_call.1} parent=1 // loop_footer_branch
      %19 = sbr.rel target = $region3
    $region8: #{tpu_custom_call.1} parent=1 // loop_exit
      _
    %5300 = vsyncpa [#allocation3], 1
    %s5301 = scalar_lea.sflag [#allocation3], 1
    %5302 = vsyncpa %s5301, 1
    %5303 = vsyncpa [#allocation6], 1
    %s5304 = scalar_lea.sflag [#allocation6], 1
    %5305 = vsyncpa %s5304, 1
    %5306 = vsyncpa [#allocation9], 1
    %5307 = vsyncpa [#allocation4], 1
    %s5308 = scalar_lea.sflag [#allocation4], 1
    %5309 = vsyncpa %s5308, 1

</llo_original>
